<compile_context>
chip_gen: v7x
topology: tpu7x:2x2x1
jax: 0.10.0
libtpu: 0.0.40
codegen_flags: <defaults>
</compile_context>

<pallas_src>
import math

import jax
import jax.numpy as jnp
from jax.experimental import pallas as pl
from jax.experimental.pallas import tpu as pltpu


def _make_kernel(num_heads, head_dim, bt, Sq, Sk, hidden,
                 *, eps=1e-5, approx_recip=False):
    Rq = bt * Sq

    def kernel(q_ref, k_ref, v_ref,
               wq_ref, bq_ref, wk_ref, bk_ref, wv_ref, bv_ref,
               wo_ref, bo_ref, wl_ref, bl_ref, gamma_ref, beta_ref,
               w1_ref, b1_ref, w2_ref, b2_ref, out_ref):
        cdt = wq_ref.dtype                       # MXU operand dtype (f32 or bf16)

        def mm(a, w):
            # MXU matmul: operands in compute dtype, accumulate in f32.
            return jnp.dot(a.astype(w.dtype), w, preferred_element_type=jnp.float32)

        xq = q_ref[...]                          # (Rq, H)
        xk = k_ref[...]                          # (Rk, H)
        xv = v_ref[...]                          # (Rk, H)

        # --- fused full-width Q/K/V projections (1/sqrt(dh) folded into wq/bq) ---
        Q = mm(xq, wq_ref[...]) + bq_ref[...]    # (Rq, H) f32
        K = mm(xk, wk_ref[...]) + bk_ref[...]    # (Rk, H) f32
        V = mm(xv, wv_ref[...]) + bv_ref[...]    # (Rk, H) f32

        Qc = Q.astype(cdt)
        Kc = K.astype(cdt)
        Vc = V.astype(cdt)

        # --- per-head attention on static lane slices; softmax in f32 ---
        ctx_heads = []
        for h in range(num_heads):
            lo = h * head_dim
            qh = Qc[:, lo:lo + head_dim].reshape(bt, Sq, head_dim)
            kh = Kc[:, lo:lo + head_dim].reshape(bt, Sk, head_dim)
            vh = Vc[:, lo:lo + head_dim].reshape(bt, Sk, head_dim)

            s = jnp.einsum("bqd,bkd->bqk", qh, kh,
                           preferred_element_type=jnp.float32)        # (bt, Sq, Sk)
            s = s - jnp.max(s, axis=-1, keepdims=True)
            p = jnp.exp(s)
            p = p * pl.reciprocal(jnp.sum(p, axis=-1, keepdims=True),
                                  approx=approx_recip)
            ctx = jnp.einsum("bqk,bkd->bqd", p.astype(cdt), vh,
                             preferred_element_type=jnp.float32)      # (bt, Sq, dh)
            ctx_heads.append(ctx.reshape(Rq, head_dim))

        # lane-concat of head contexts, then ONE (Rq,H)@(H,H) out-projection.
        ctx_all = jnp.concatenate(ctx_heads, axis=-1)                 # (Rq, H) f32
        attn = mm(ctx_all, wo_ref[...]) + bo_ref[...]                 # (Rq, H)

        # --- extra Linear of CrossAttention ---
        y = mm(attn, wl_ref[...]) + bl_ref[...]

        # --- LayerNorm (biased variance, eps=1e-5, f32 math) ---
        mean = jnp.mean(y, axis=-1, keepdims=True)
        var = jnp.mean((y - mean) ** 2, axis=-1, keepdims=True)
        y = (y - mean) * jax.lax.rsqrt(var + eps)
        y = y * gamma_ref[...] + beta_ref[...]

        # --- FFN: Linear -> ReLU -> Linear (ffn_hidden == hidden) ---
        h1 = jnp.maximum(mm(y, w1_ref[...]) + b1_ref[...], 0.0)
        out = mm(h1, w2_ref[...]) + b2_ref[...]       # (Rq, Hp), Hp % 128 == 0

        out_ref[...] = out.astype(out_ref.dtype)

    return kernel


def _pick_batch_tile(B, Sq, Sk, *, target_rows=1024, row_align=8):
    """Largest divisor of B giving sublane-aligned row tiles <= target_rows,
    preferring a grid of >= 2 steps (keeps both v7x TensorCores busy)."""
    divisors = [d for d in range(1, B + 1) if B % d == 0]

    def ok(d):
        rq, rk = d * Sq, d * Sk
        if rq > target_rows and d != 1:
            return False
        if rq % row_align and d != B:
            return False
        if rk % row_align and d != B:
            return False
        return True

    cands = [d for d in divisors if ok(d)]
    if not cands:
        return B
    multi = [d for d in cands if B // d >= 2]
    return max(multi) if multi else max(cands)


def _vmem_limit(weight_bytes, io_bytes, scratch_bytes):
    cap = 64 * 1024 * 1024
    try:
        info = pltpu.get_tpu_info()
        cap = int(getattr(info, "vmem_capacity_bytes", cap) or cap)
    except Exception:
        pass
    want = int(1.5 * (weight_bytes + io_bytes + scratch_bytes)) + (8 << 20)
    return int(min(max(32 << 20, want), int(cap * 0.9)))


def cross_attention_layer(q, k, v, params, num_heads, *,
                          compute_dtype=jnp.float32,
                          approx_softmax_recip=False,
                          batch_tile=None,
                          out_dtype=None,
                          target_rows=1024):
    """q: (B, Sq, H), k/v: (B, Sk, H).  Returns (B, Sq, H) in q.dtype."""
    B, Sq, H = q.shape
    Sk = k.shape[1]
    assert H % num_heads == 0
    dh = H // num_heads
    Hp = ((H + 127) // 128) * 128              # lane-dense padded output width

    if out_dtype is None:
        out_dtype = q.dtype
    out_dtype = jnp.dtype(out_dtype)

    # Row tiles must respect the sublane packing of the narrowest streamed dtype.
    min_item = min(jnp.dtype(q.dtype).itemsize, out_dtype.itemsize)
    row_align = 8 * max(1, 4 // max(1, min_item))

    bt = batch_tile if batch_tile is not None else _pick_batch_tile(
        B, Sq, Sk, target_rows=target_rows, row_align=row_align)
    assert B % bt == 0
    grid = (B // bt,)
    Rq, Rk = bt * Sq, bt * Sk

    scale = 1.0 / math.sqrt(dh)
    cdt = compute_dtype

    # Pre-transposed (K, N)-layout weights; MHA scale folded into Wq/bq.
    wqT = (params["wq"] * scale).T.astype(cdt)
    bq = (params["bq"] * scale).astype(jnp.float32)
    wkT = params["wk"].T.astype(cdt)
    bk = params["bk"].astype(jnp.float32)
    wvT = params["wv"].T.astype(cdt)
    bv = params["bv"].astype(jnp.float32)
    woT = params["wo"].T.astype(cdt)
    bo = params["bo"].astype(jnp.float32)
    wlT = params["wl"].T.astype(cdt)
    bl = params["bl"].astype(jnp.float32)
    gamma = params["gamma"].astype(jnp.float32)
    beta = params["beta"].astype(jnp.float32)
    w1T = params["w1"].T.astype(cdt)
    b1 = params["b1"].astype(jnp.float32)
    w2Tp = jnp.pad(params["w2"].T, ((0, 0), (0, Hp - H))).astype(cdt)
    b2p = jnp.pad(params["b2"], ((0, 0), (0, Hp - H))).astype(jnp.float32)

    # Fold batch into the row dimension for all dense matmuls.
    q2 = q.reshape(B * Sq, H)
    k2 = k.reshape(B * Sk, H)
    v2 = v.reshape(B * Sk, H)

    operands = (q2, k2, v2,
                wqT, bq, wkT, bk, wvT, bv,
                woT, bo, wlT, bl, gamma, beta,
                w1T, b1, w2Tp, b2p)
    weight_arrays = operands[3:]

    weight_bytes = sum(int(a.size) * a.dtype.itemsize for a in weight_arrays)
    io_bytes = 2 * ((Rq + 2 * Rk) * H * jnp.dtype(q2.dtype).itemsize
                    + Rq * Hp * out_dtype.itemsize)
    scratch_bytes = 4 * (8 * Rq * max(H, Hp) + 3 * Rk * H
                         + 2 * bt * Sq * max(Sk, 128))
    vmem_limit = _vmem_limit(weight_bytes, io_bytes, scratch_bytes)

    kernel = _make_kernel(num_heads, dh, bt, Sq, Sk, H,
                          approx_recip=approx_softmax_recip)

    def run(single_buffer_weights):
        def rows(r, width):
            return pl.BlockSpec((r, width), lambda i: (i, 0))

        def weight_spec(arr):
            nd = arr.ndim
            idx = lambda i, _nd=nd: (0,) * _nd
            if single_buffer_weights:
                # Constant index map -> the weight block never changes; one buffer
                # is enough and halves resident weight VMEM (key for v7x's 64 MiB).
                return pl.BlockSpec(arr.shape, idx, pipeline_mode=pl.Buffered(1))
            return pl.BlockSpec(arr.shape, idx)

        in_specs = [rows(Rq, H), rows(Rk, H), rows(Rk, H)]
        in_specs += [weight_spec(a) for a in weight_arrays]

        return pl.pallas_call(
            kernel,
            out_shape=jax.ShapeDtypeStruct((B * Sq, Hp), out_dtype),
            grid_spec=pltpu.PrefetchScalarGridSpec(
                num_scalar_prefetch=0,
                grid=grid,
                in_specs=in_specs,
                out_specs=rows(Rq, Hp),
            ),
            compiler_params=pltpu.CompilerParams(
                dimension_semantics=("parallel",),   # shards batch tiles across TCs
                vmem_limit_bytes=vmem_limit,
            ),
        )(*operands)

    if hasattr(pl, "Buffered"):
        try:
            out = jax.block_until_ready(run(True))
        except Exception:
            out = run(False)      # fall back to default (double-buffered) weights
    else:
        out = run(False)

    return out[:, :H].reshape(B, Sq, H).astype(q.dtype)


def _reference(q, k, v, params, num_heads):
    """Pure-JAX reference mirroring the PyTorch forward pass semantics."""
    H = q.shape[-1]
    dh = H // num_heads
    scale = 1.0 / math.sqrt(dh)

    def proj(x, w, b):
        return x @ w.T + b[0]

    Q = proj(q, params["wq"], params["bq"])
    K = proj(k, params["wk"], params["bk"])
    V = proj(v, params["wv"], params["bv"])

    B, Sq, _ = Q.shape
    Sk = K.shape[1]
    Qh = Q.reshape(B, Sq, num_heads, dh).transpose(0, 2, 1, 3)
    Kh = K.reshape(B, Sk, num_heads, dh).transpose(0, 2, 1, 3)
    Vh = V.reshape(B, Sk, num_heads, dh).transpose(0, 2, 1, 3)
    s = jnp.einsum("bhqd,bhkd->bhqk", Qh, Kh) * scale
    p = jax.nn.softmax(s, axis=-1)
    ctx = jnp.einsum("bhqk,bhkd->bhqd", p, Vh).transpose(0, 2, 1, 3).reshape(B, Sq, H)

    attn_out = proj(ctx, params["wo"], params["bo"])
    y = proj(attn_out, params["wl"], params["bl"])

    mean = jnp.mean(y, axis=-1, keepdims=True)
    var = jnp.mean((y - mean) ** 2, axis=-1, keepdims=True)
    y = (y - mean) / jnp.sqrt(var + 1e-5) * params["gamma"][0] + params["beta"][0]

    h1 = jnp.maximum(proj(y, params["w1"], params["b1"]), 0.0)
    return proj(h1, params["w2"], params["b2"])


def _init_params(key, hidden):
    keys = jax.random.split(key, 16)
    sc = 1.0 / math.sqrt(hidden)

    def mat(k):
        return (jax.random.uniform(k, (hidden, hidden), jnp.float32) * 2 - 1) * sc

    def vec(k):
        return (jax.random.uniform(k, (1, hidden), jnp.float32) * 2 - 1) * sc

    return {
        "wq": mat(keys[0]), "bq": vec(keys[1]),
        "wk": mat(keys[2]), "bk": vec(keys[3]),
        "wv": mat(keys[4]), "bv": vec(keys[5]),
        "wo": mat(keys[6]), "bo": vec(keys[7]),
        "wl": mat(keys[8]), "bl": vec(keys[9]),
        "gamma": jnp.ones((1, hidden), jnp.float32),
        "beta": jnp.zeros((1, hidden), jnp.float32),
        "w1": mat(keys[10]), "b1": vec(keys[11]),
        "w2": mat(keys[12]), "b2": vec(keys[13]),
    }


if __name__ == "__main__":
    B, Sq, Sk, H, num_heads = 2, 8, 8, 32, 4

    key = jax.random.PRNGKey(0)
    kq, kk, kv, kp = jax.random.split(key, 4)
    q = jax.random.normal(kq, (B, Sq, H), jnp.float32)
    k = jax.random.normal(kk, (B, Sk, H), jnp.float32)
    v = jax.random.normal(kv, (B, Sk, H), jnp.float32)
    params = _init_params(kp, H)

    ref = _reference(q, k, v, params, num_heads)

    # f32 MXU operands: strict check vs the pure-JAX reference.
    out = cross_attention_layer(q, k, v, params, num_heads)
    out = jax.block_until_ready(out)
    assert out.shape == (B, Sq, H)
    assert jnp.allclose(out, ref, atol=1e-4, rtol=1e-4), "f32 kernel mismatch vs reference"

    # bf16 MXU operands + approximate softmax reciprocal (fast path on v6e/v7x):
    # loose check; accumulation / softmax / LayerNorm stay f32.
    out_bf16 = cross_attention_layer(q, k, v, params, num_heads,
                                     compute_dtype=jnp.bfloat16,
                                     approx_softmax_recip=True)
    out_bf16 = jax.block_until_ready(out_bf16)
    assert jnp.allclose(out_bf16, ref, atol=1.5e-1, rtol=1.5e-1), \
        "bf16 kernel mismatch vs reference"

    print("KERNEL_OK")
</pallas_src>

<mosaic_0001>
module attributes {stable_mosaic.version = 11 : i64} {
  func.func @kernel(%arg0: i32, %arg1: memref<8x32xf32, #tpu.memory_space<vmem>>, %arg2: memref<8x32xf32, #tpu.memory_space<vmem>>, %arg3: memref<8x32xf32, #tpu.memory_space<vmem>>, %arg4: memref<32x32xf32, #tpu.memory_space<vmem>>, %arg5: memref<1x32xf32, #tpu.memory_space<vmem>>, %arg6: memref<32x32xf32, #tpu.memory_space<vmem>>, %arg7: memref<1x32xf32, #tpu.memory_space<vmem>>, %arg8: memref<32x32xf32, #tpu.memory_space<vmem>>, %arg9: memref<1x32xf32, #tpu.memory_space<vmem>>, %arg10: memref<32x32xf32, #tpu.memory_space<vmem>>, %arg11: memref<1x32xf32, #tpu.memory_space<vmem>>, %arg12: memref<32x32xf32, #tpu.memory_space<vmem>>, %arg13: memref<1x32xf32, #tpu.memory_space<vmem>>, %arg14: memref<1x32xf32, #tpu.memory_space<vmem>>, %arg15: memref<1x32xf32, #tpu.memory_space<vmem>>, %arg16: memref<32x32xf32, #tpu.memory_space<vmem>>, %arg17: memref<1x32xf32, #tpu.memory_space<vmem>>, %arg18: memref<32x128xf32, #tpu.memory_space<vmem>>, %arg19: memref<1x128xf32, #tpu.memory_space<vmem>>, %arg20: memref<8x128xf32, #tpu.memory_space<vmem>>) attributes {dimension_semantics = [#tpu.dimension_semantics<parallel>], iteration_bounds = array<i64: 2>, scalar_prefetch = 0 : i64, scratch_operands = 0 : i64, tpu.core_type = #tpu.core_type<tc>, window_params = [{transform_indices = @transform_0, window_bounds = array<i64: 8, 32>}, {transform_indices = @transform_1, window_bounds = array<i64: 8, 32>}, {transform_indices = @transform_2, window_bounds = array<i64: 8, 32>}, {pipeline_mode = #tpu.pipeline_mode<synchronous>, transform_indices = @transform_3, window_bounds = array<i64: 32, 32>}, {pipeline_mode = #tpu.pipeline_mode<synchronous>, transform_indices = @transform_4, window_bounds = array<i64: 1, 32>}, {pipeline_mode = #tpu.pipeline_mode<synchronous>, transform_indices = @transform_5, window_bounds = array<i64: 32, 32>}, {pipeline_mode = #tpu.pipeline_mode<synchronous>, transform_indices = @transform_6, window_bounds = array<i64: 1, 32>}, {pipeline_mode = #tpu.pipeline_mode<synchronous>, transform_indices = @transform_7, window_bounds = array<i64: 32, 32>}, {pipeline_mode = #tpu.pipeline_mode<synchronous>, transform_indices = @transform_8, window_bounds = array<i64: 1, 32>}, {pipeline_mode = #tpu.pipeline_mode<synchronous>, transform_indices = @transform_9, window_bounds = array<i64: 32, 32>}, {pipeline_mode = #tpu.pipeline_mode<synchronous>, transform_indices = @transform_10, window_bounds = array<i64: 1, 32>}, {pipeline_mode = #tpu.pipeline_mode<synchronous>, transform_indices = @transform_11, window_bounds = array<i64: 32, 32>}, {pipeline_mode = #tpu.pipeline_mode<synchronous>, transform_indices = @transform_12, window_bounds = array<i64: 1, 32>}, {pipeline_mode = #tpu.pipeline_mode<synchronous>, transform_indices = @transform_13, window_bounds = array<i64: 1, 32>}, {pipeline_mode = #tpu.pipeline_mode<synchronous>, transform_indices = @transform_14, window_bounds = array<i64: 1, 32>}, {pipeline_mode = #tpu.pipeline_mode<synchronous>, transform_indices = @transform_15, window_bounds = array<i64: 32, 32>}, {pipeline_mode = #tpu.pipeline_mode<synchronous>, transform_indices = @transform_16, window_bounds = array<i64: 1, 32>}, {pipeline_mode = #tpu.pipeline_mode<synchronous>, transform_indices = @transform_17, window_bounds = array<i64: 32, 128>}, {pipeline_mode = #tpu.pipeline_mode<synchronous>, transform_indices = @transform_18, window_bounds = array<i64: 1, 128>}, {transform_indices = @transform_19, window_bounds = array<i64: 8, 128>}]} {
    %c0 = arith.constant 0 : index
    %c0_0 = arith.constant 0 : index
    %0 = vector.load %arg1[%c0, %c0_0] : memref<8x32xf32, #tpu.memory_space<vmem>>, vector<8x32xf32>
    %c0_1 = arith.constant 0 : index
    %c0_2 = arith.constant 0 : index
    %1 = vector.load %arg2[%c0_1, %c0_2] : memref<8x32xf32, #tpu.memory_space<vmem>>, vector<8x32xf32>
    %c0_3 = arith.constant 0 : index
    %c0_4 = arith.constant 0 : index
    %2 = vector.load %arg3[%c0_3, %c0_4] : memref<8x32xf32, #tpu.memory_space<vmem>>, vector<8x32xf32>
    %c0_5 = arith.constant 0 : index
    %c0_6 = arith.constant 0 : index
    %3 = vector.load %arg4[%c0_5, %c0_6] : memref<32x32xf32, #tpu.memory_space<vmem>>, vector<32x32xf32>
    %cst = arith.constant dense<0.000000e+00> : vector<8x32xf32>
    %4 = tpu.matmul %0, %3, %cst {dimension_numbers = #tpu.dot_dimension_numbers<[1], [0], [0], [1], [0, 0, 1, 1], [], []>} : vector<8x32xf32>, vector<32x32xf32>, vector<8x32xf32> -> vector<8x32xf32>
    %c0_7 = arith.constant 0 : index
    %c0_8 = arith.constant 0 : index
    %5 = vector.load %arg5[%c0_7, %c0_8] : memref<1x32xf32, #tpu.memory_space<vmem>>, vector<1x32xf32>
    %6 = vector.broadcast %5 : vector<1x32xf32> to vector<8x32xf32>
    %7 = arith.addf %4, %6 : vector<8x32xf32>
    %c0_9 = arith.constant 0 : index
    %c0_10 = arith.constant 0 : index
    %8 = vector.load %arg6[%c0_9, %c0_10] : memref<32x32xf32, #tpu.memory_space<vmem>>, vector<32x32xf32>
    %cst_11 = arith.constant dense<0.000000e+00> : vector<8x32xf32>
    %9 = tpu.matmul %1, %8, %cst_11 {dimension_numbers = #tpu.dot_dimension_numbers<[1], [0], [0], [1], [0, 0, 1, 1], [], []>} : vector<8x32xf32>, vector<32x32xf32>, vector<8x32xf32> -> vector<8x32xf32>
    %c0_12 = arith.constant 0 : index
    %c0_13 = arith.constant 0 : index
    %10 = vector.load %arg7[%c0_12, %c0_13] : memref<1x32xf32, #tpu.memory_space<vmem>>, vector<1x32xf32>
    %11 = vector.broadcast %10 : vector<1x32xf32> to vector<8x32xf32>
    %12 = arith.addf %9, %11 : vector<8x32xf32>
    %c0_14 = arith.constant 0 : index
    %c0_15 = arith.constant 0 : index
    %13 = vector.load %arg8[%c0_14, %c0_15] : memref<32x32xf32, #tpu.memory_space<vmem>>, vector<32x32xf32>
    %cst_16 = arith.constant dense<0.000000e+00> : vector<8x32xf32>
    %14 = tpu.matmul %2, %13, %cst_16 {dimension_numbers = #tpu.dot_dimension_numbers<[1], [0], [0], [1], [0, 0, 1, 1], [], []>} : vector<8x32xf32>, vector<32x32xf32>, vector<8x32xf32> -> vector<8x32xf32>
    %c0_17 = arith.constant 0 : index
    %c0_18 = arith.constant 0 : index
    %15 = vector.load %arg9[%c0_17, %c0_18] : memref<1x32xf32, #tpu.memory_space<vmem>>, vector<1x32xf32>
    %16 = vector.broadcast %15 : vector<1x32xf32> to vector<8x32xf32>
    %17 = arith.addf %14, %16 : vector<8x32xf32>
    %18 = vector.extract_strided_slice %7 {offsets = [0, 0], sizes = [8, 8], strides = [1, 1]} : vector<8x32xf32> to vector<8x8xf32>
    %19 = vector.shape_cast %18 : vector<8x8xf32> to vector<1x8x8xf32>
    %20 = vector.extract_strided_slice %12 {offsets = [0, 0], sizes = [8, 8], strides = [1, 1]} : vector<8x32xf32> to vector<8x8xf32>
    %21 = vector.shape_cast %20 : vector<8x8xf32> to vector<1x8x8xf32>
    %22 = vector.extract_strided_slice %17 {offsets = [0, 0], sizes = [8, 8], strides = [1, 1]} : vector<8x32xf32> to vector<8x8xf32>
    %23 = vector.shape_cast %22 : vector<8x8xf32> to vector<1x8x8xf32>
    "tpu.trace_start"() <{level = 10 : i32, message = "bqd,bkd->bqk"}> : () -> ()
    %cst_19 = arith.constant dense<0.000000e+00> : vector<1x8x8xf32>
    %24 = tpu.matmul %19, %21, %cst_19 {dimension_numbers = #tpu.dot_dimension_numbers<[2], [2], [1], [1], [0, 0, 0, 1, 1, 1], [0], [0]>} : vector<1x8x8xf32>, vector<1x8x8xf32>, vector<1x8x8xf32> -> vector<1x8x8xf32>
    "tpu.trace_stop"() : () -> ()
    %cst_20 = arith.constant dense<0xFF800000> : vector<1x8xf32>
    %25 = vector.multi_reduction <maximumf>, %24, %cst_20 [2] : vector<1x8x8xf32> to vector<1x8xf32>
    %26 = vector.shape_cast %25 : vector<1x8xf32> to vector<1x8x1xf32>
    %27 = vector.broadcast %26 : vector<1x8x1xf32> to vector<1x8x8xf32>
    %28 = arith.subf %24, %27 : vector<1x8x8xf32>
    %29 = math.exp %28 : vector<1x8x8xf32>
    %cst_21 = arith.constant dense<0.000000e+00> : vector<1x8xf32>
    %30 = vector.multi_reduction <add>, %29, %cst_21 [2] : vector<1x8x8xf32> to vector<1x8xf32>
    %31 = vector.shape_cast %30 : vector<1x8xf32> to vector<1x8x1xf32>
    %32 = tpu.reciprocal %31 : vector<1x8x1xf32> -> vector<1x8x1xf32>
    %33 = vector.broadcast %32 : vector<1x8x1xf32> to vector<1x8x8xf32>
    %34 = arith.mulf %29, %33 : vector<1x8x8xf32>
    "tpu.trace_start"() <{level = 10 : i32, message = "bqk,bkd->bqd"}> : () -> ()
    %cst_22 = arith.constant dense<0.000000e+00> : vector<1x8x8xf32>
    %35 = tpu.matmul %34, %23, %cst_22 {dimension_numbers = #tpu.dot_dimension_numbers<[2], [1], [1], [2], [0, 0, 0, 1, 1, 2], [0], [0]>} : vector<1x8x8xf32>, vector<1x8x8xf32>, vector<1x8x8xf32> -> vector<1x8x8xf32>
    "tpu.trace_stop"() : () -> ()
    %36 = vector.shape_cast %35 : vector<1x8x8xf32> to vector<8x8xf32>
    %37 = vector.extract_strided_slice %7 {offsets = [0, 8], sizes = [8, 8], strides = [1, 1]} : vector<8x32xf32> to vector<8x8xf32>
    %38 = vector.shape_cast %37 : vector<8x8xf32> to vector<1x8x8xf32>
    %39 = vector.extract_strided_slice %12 {offsets = [0, 8], sizes = [8, 8], strides = [1, 1]} : vector<8x32xf32> to vector<8x8xf32>
    %40 = vector.shape_cast %39 : vector<8x8xf32> to vector<1x8x8xf32>
    %41 = vector.extract_strided_slice %17 {offsets = [0, 8], sizes = [8, 8], strides = [1, 1]} : vector<8x32xf32> to vector<8x8xf32>
    %42 = vector.shape_cast %41 : vector<8x8xf32> to vector<1x8x8xf32>
    "tpu.trace_start"() <{level = 10 : i32, message = "bqd,bkd->bqk"}> : () -> ()
    %cst_23 = arith.constant dense<0.000000e+00> : vector<1x8x8xf32>
    %43 = tpu.matmul %38, %40, %cst_23 {dimension_numbers = #tpu.dot_dimension_numbers<[2], [2], [1], [1], [0, 0, 0, 1, 1, 1], [0], [0]>} : vector<1x8x8xf32>, vector<1x8x8xf32>, vector<1x8x8xf32> -> vector<1x8x8xf32>
    "tpu.trace_stop"() : () -> ()
    %cst_24 = arith.constant dense<0xFF800000> : vector<1x8xf32>
    %44 = vector.multi_reduction <maximumf>, %43, %cst_24 [2] : vector<1x8x8xf32> to vector<1x8xf32>
    %45 = vector.shape_cast %44 : vector<1x8xf32> to vector<1x8x1xf32>
    %46 = vector.broadcast %45 : vector<1x8x1xf32> to vector<1x8x8xf32>
    %47 = arith.subf %43, %46 : vector<1x8x8xf32>
    %48 = math.exp %47 : vector<1x8x8xf32>
    %cst_25 = arith.constant dense<0.000000e+00> : vector<1x8xf32>
    %49 = vector.multi_reduction <add>, %48, %cst_25 [2] : vector<1x8x8xf32> to vector<1x8xf32>
    %50 = vector.shape_cast %49 : vector<1x8xf32> to vector<1x8x1xf32>
    %51 = tpu.reciprocal %50 : vector<1x8x1xf32> -> vector<1x8x1xf32>
    %52 = vector.broadcast %51 : vector<1x8x1xf32> to vector<1x8x8xf32>
    %53 = arith.mulf %48, %52 : vector<1x8x8xf32>
    "tpu.trace_start"() <{level = 10 : i32, message = "bqk,bkd->bqd"}> : () -> ()
    %cst_26 = arith.constant dense<0.000000e+00> : vector<1x8x8xf32>
    %54 = tpu.matmul %53, %42, %cst_26 {dimension_numbers = #tpu.dot_dimension_numbers<[2], [1], [1], [2], [0, 0, 0, 1, 1, 2], [0], [0]>} : vector<1x8x8xf32>, vector<1x8x8xf32>, vector<1x8x8xf32> -> vector<1x8x8xf32>
    "tpu.trace_stop"() : () -> ()
    %55 = vector.shape_cast %54 : vector<1x8x8xf32> to vector<8x8xf32>
    %56 = vector.extract_strided_slice %7 {offsets = [0, 16], sizes = [8, 8], strides = [1, 1]} : vector<8x32xf32> to vector<8x8xf32>
    %57 = vector.shape_cast %56 : vector<8x8xf32> to vector<1x8x8xf32>
    %58 = vector.extract_strided_slice %12 {offsets = [0, 16], sizes = [8, 8], strides = [1, 1]} : vector<8x32xf32> to vector<8x8xf32>
    %59 = vector.shape_cast %58 : vector<8x8xf32> to vector<1x8x8xf32>
    %60 = vector.extract_strided_slice %17 {offsets = [0, 16], sizes = [8, 8], strides = [1, 1]} : vector<8x32xf32> to vector<8x8xf32>
    %61 = vector.shape_cast %60 : vector<8x8xf32> to vector<1x8x8xf32>
    "tpu.trace_start"() <{level = 10 : i32, message = "bqd,bkd->bqk"}> : () -> ()
    %cst_27 = arith.constant dense<0.000000e+00> : vector<1x8x8xf32>
    %62 = tpu.matmul %57, %59, %cst_27 {dimension_numbers = #tpu.dot_dimension_numbers<[2], [2], [1], [1], [0, 0, 0, 1, 1, 1], [0], [0]>} : vector<1x8x8xf32>, vector<1x8x8xf32>, vector<1x8x8xf32> -> vector<1x8x8xf32>
    "tpu.trace_stop"() : () -> ()
    %cst_28 = arith.constant dense<0xFF800000> : vector<1x8xf32>
    %63 = vector.multi_reduction <maximumf>, %62, %cst_28 [2] : vector<1x8x8xf32> to vector<1x8xf32>
    %64 = vector.shape_cast %63 : vector<1x8xf32> to vector<1x8x1xf32>
    %65 = vector.broadcast %64 : vector<1x8x1xf32> to vector<1x8x8xf32>
    %66 = arith.subf %62, %65 : vector<1x8x8xf32>
    %67 = math.exp %66 : vector<1x8x8xf32>
    %cst_29 = arith.constant dense<0.000000e+00> : vector<1x8xf32>
    %68 = vector.multi_reduction <add>, %67, %cst_29 [2] : vector<1x8x8xf32> to vector<1x8xf32>
    %69 = vector.shape_cast %68 : vector<1x8xf32> to vector<1x8x1xf32>
    %70 = tpu.reciprocal %69 : vector<1x8x1xf32> -> vector<1x8x1xf32>
    %71 = vector.broadcast %70 : vector<1x8x1xf32> to vector<1x8x8xf32>
    %72 = arith.mulf %67, %71 : vector<1x8x8xf32>
    "tpu.trace_start"() <{level = 10 : i32, message = "bqk,bkd->bqd"}> : () -> ()
    %cst_30 = arith.constant dense<0.000000e+00> : vector<1x8x8xf32>
    %73 = tpu.matmul %72, %61, %cst_30 {dimension_numbers = #tpu.dot_dimension_numbers<[2], [1], [1], [2], [0, 0, 0, 1, 1, 2], [0], [0]>} : vector<1x8x8xf32>, vector<1x8x8xf32>, vector<1x8x8xf32> -> vector<1x8x8xf32>
    "tpu.trace_stop"() : () -> ()
    %74 = vector.shape_cast %73 : vector<1x8x8xf32> to vector<8x8xf32>
    %75 = vector.extract_strided_slice %7 {offsets = [0, 24], sizes = [8, 8], strides = [1, 1]} : vector<8x32xf32> to vector<8x8xf32>
    %76 = vector.shape_cast %75 : vector<8x8xf32> to vector<1x8x8xf32>
    %77 = vector.extract_strided_slice %12 {offsets = [0, 24], sizes = [8, 8], strides = [1, 1]} : vector<8x32xf32> to vector<8x8xf32>
    %78 = vector.shape_cast %77 : vector<8x8xf32> to vector<1x8x8xf32>
    %79 = vector.extract_strided_slice %17 {offsets = [0, 24], sizes = [8, 8], strides = [1, 1]} : vector<8x32xf32> to vector<8x8xf32>
    %80 = vector.shape_cast %79 : vector<8x8xf32> to vector<1x8x8xf32>
    "tpu.trace_start"() <{level = 10 : i32, message = "bqd,bkd->bqk"}> : () -> ()
    %cst_31 = arith.constant dense<0.000000e+00> : vector<1x8x8xf32>
    %81 = tpu.matmul %76, %78, %cst_31 {dimension_numbers = #tpu.dot_dimension_numbers<[2], [2], [1], [1], [0, 0, 0, 1, 1, 1], [0], [0]>} : vector<1x8x8xf32>, vector<1x8x8xf32>, vector<1x8x8xf32> -> vector<1x8x8xf32>
    "tpu.trace_stop"() : () -> ()
    %cst_32 = arith.constant dense<0xFF800000> : vector<1x8xf32>
    %82 = vector.multi_reduction <maximumf>, %81, %cst_32 [2] : vector<1x8x8xf32> to vector<1x8xf32>
    %83 = vector.shape_cast %82 : vector<1x8xf32> to vector<1x8x1xf32>
    %84 = vector.broadcast %83 : vector<1x8x1xf32> to vector<1x8x8xf32>
    %85 = arith.subf %81, %84 : vector<1x8x8xf32>
    %86 = math.exp %85 : vector<1x8x8xf32>
    %cst_33 = arith.constant dense<0.000000e+00> : vector<1x8xf32>
    %87 = vector.multi_reduction <add>, %86, %cst_33 [2] : vector<1x8x8xf32> to vector<1x8xf32>
    %88 = vector.shape_cast %87 : vector<1x8xf32> to vector<1x8x1xf32>
    %89 = tpu.reciprocal %88 : vector<1x8x1xf32> -> vector<1x8x1xf32>
    %90 = vector.broadcast %89 : vector<1x8x1xf32> to vector<1x8x8xf32>
    %91 = arith.mulf %86, %90 : vector<1x8x8xf32>
    "tpu.trace_start"() <{level = 10 : i32, message = "bqk,bkd->bqd"}> : () -> ()
    %cst_34 = arith.constant dense<0.000000e+00> : vector<1x8x8xf32>
    %92 = tpu.matmul %91, %80, %cst_34 {dimension_numbers = #tpu.dot_dimension_numbers<[2], [1], [1], [2], [0, 0, 0, 1, 1, 2], [0], [0]>} : vector<1x8x8xf32>, vector<1x8x8xf32>, vector<1x8x8xf32> -> vector<1x8x8xf32>
    "tpu.trace_stop"() : () -> ()
    %93 = vector.shape_cast %92 : vector<1x8x8xf32> to vector<8x8xf32>
    %94 = tpu.concatenate %36, %55, %74, %93 in 1 : vector<8x8xf32>, vector<8x8xf32>, vector<8x8xf32>, vector<8x8xf32> -> vector<8x32xf32>
    %c0_35 = arith.constant 0 : index
    %c0_36 = arith.constant 0 : index
    %95 = vector.load %arg10[%c0_35, %c0_36] : memref<32x32xf32, #tpu.memory_space<vmem>>, vector<32x32xf32>
    %cst_37 = arith.constant dense<0.000000e+00> : vector<8x32xf32>
    %96 = tpu.matmul %94, %95, %cst_37 {dimension_numbers = #tpu.dot_dimension_numbers<[1], [0], [0], [1], [0, 0, 1, 1], [], []>} : vector<8x32xf32>, vector<32x32xf32>, vector<8x32xf32> -> vector<8x32xf32>
    %c0_38 = arith.constant 0 : index
    %c0_39 = arith.constant 0 : index
    %97 = vector.load %arg11[%c0_38, %c0_39] : memref<1x32xf32, #tpu.memory_space<vmem>>, vector<1x32xf32>
    %98 = vector.broadcast %97 : vector<1x32xf32> to vector<8x32xf32>
    %99 = arith.addf %96, %98 : vector<8x32xf32>
    %c0_40 = arith.constant 0 : index
    %c0_41 = arith.constant 0 : index
    %100 = vector.load %arg12[%c0_40, %c0_41] : memref<32x32xf32, #tpu.memory_space<vmem>>, vector<32x32xf32>
    %cst_42 = arith.constant dense<0.000000e+00> : vector<8x32xf32>
    %101 = tpu.matmul %99, %100, %cst_42 {dimension_numbers = #tpu.dot_dimension_numbers<[1], [0], [0], [1], [0, 0, 1, 1], [], []>} : vector<8x32xf32>, vector<32x32xf32>, vector<8x32xf32> -> vector<8x32xf32>
    %c0_43 = arith.constant 0 : index
    %c0_44 = arith.constant 0 : index
    %102 = vector.load %arg13[%c0_43, %c0_44] : memref<1x32xf32, #tpu.memory_space<vmem>>, vector<1x32xf32>
    %103 = vector.broadcast %102 : vector<1x32xf32> to vector<8x32xf32>
    %104 = arith.addf %101, %103 : vector<8x32xf32>
    %cst_45 = arith.constant dense<0.000000e+00> : vector<8xf32>
    %105 = vector.multi_reduction <add>, %104, %cst_45 [1] : vector<8x32xf32> to vector<8xf32>
    %106 = vector.shape_cast %105 : vector<8xf32> to vector<8x1xf32>
    %cst_46 = arith.constant 3.200000e+01 : f32
    %107 = vector.broadcast %cst_46 : f32 to vector<8x1xf32>
    %108 = arith.divf %106, %107 : vector<8x1xf32>
    %109 = vector.broadcast %108 : vector<8x1xf32> to vector<8x32xf32>
    %110 = arith.subf %104, %109 : vector<8x32xf32>
    %111 = arith.mulf %110, %110 : vector<8x32xf32>
    %cst_47 = arith.constant dense<0.000000e+00> : vector<8xf32>
    %112 = vector.multi_reduction <add>, %111, %cst_47 [1] : vector<8x32xf32> to vector<8xf32>
    %113 = vector.shape_cast %112 : vector<8xf32> to vector<8x1xf32>
    %cst_48 = arith.constant 3.200000e+01 : f32
    %114 = vector.broadcast %cst_48 : f32 to vector<8x1xf32>
    %115 = arith.divf %113, %114 : vector<8x1xf32>
    %116 = vector.broadcast %108 : vector<8x1xf32> to vector<8x32xf32>
    %117 = arith.subf %104, %116 : vector<8x32xf32>
    %cst_49 = arith.constant 9.99999974E-6 : f32
    %118 = vector.broadcast %cst_49 : f32 to vector<8x1xf32>
    %119 = arith.addf %115, %118 : vector<8x1xf32>
    %120 = math.rsqrt %119 : vector<8x1xf32>
    %121 = vector.broadcast %120 : vector<8x1xf32> to vector<8x32xf32>
    %122 = arith.mulf %117, %121 : vector<8x32xf32>
    %c0_50 = arith.constant 0 : index
    %c0_51 = arith.constant 0 : index
    %123 = vector.load %arg14[%c0_50, %c0_51] : memref<1x32xf32, #tpu.memory_space<vmem>>, vector<1x32xf32>
    %124 = vector.broadcast %123 : vector<1x32xf32> to vector<8x32xf32>
    %125 = arith.mulf %122, %124 : vector<8x32xf32>
    %c0_52 = arith.constant 0 : index
    %c0_53 = arith.constant 0 : index
    %126 = vector.load %arg15[%c0_52, %c0_53] : memref<1x32xf32, #tpu.memory_space<vmem>>, vector<1x32xf32>
    %127 = vector.broadcast %126 : vector<1x32xf32> to vector<8x32xf32>
    %128 = arith.addf %125, %127 : vector<8x32xf32>
    %c0_54 = arith.constant 0 : index
    %c0_55 = arith.constant 0 : index
    %129 = vector.load %arg16[%c0_54, %c0_55] : memref<32x32xf32, #tpu.memory_space<vmem>>, vector<32x32xf32>
    %cst_56 = arith.constant dense<0.000000e+00> : vector<8x32xf32>
    %130 = tpu.matmul %128, %129, %cst_56 {dimension_numbers = #tpu.dot_dimension_numbers<[1], [0], [0], [1], [0, 0, 1, 1], [], []>} : vector<8x32xf32>, vector<32x32xf32>, vector<8x32xf32> -> vector<8x32xf32>
    %c0_57 = arith.constant 0 : index
    %c0_58 = arith.constant 0 : index
    %131 = vector.load %arg17[%c0_57, %c0_58] : memref<1x32xf32, #tpu.memory_space<vmem>>, vector<1x32xf32>
    %132 = vector.broadcast %131 : vector<1x32xf32> to vector<8x32xf32>
    %133 = arith.addf %130, %132 : vector<8x32xf32>
    %cst_59 = arith.constant 0.000000e+00 : f32
    %134 = vector.broadcast %cst_59 : f32 to vector<8x32xf32>
    %135 = arith.maximumf %133, %134 : vector<8x32xf32>
    %c0_60 = arith.constant 0 : index
    %c0_61 = arith.constant 0 : index
    %136 = vector.load %arg18[%c0_60, %c0_61] : memref<32x128xf32, #tpu.memory_space<vmem>>, vector<32x128xf32>
    %cst_62 = arith.constant dense<0.000000e+00> : vector<8x128xf32>
    %137 = tpu.matmul %135, %136, %cst_62 {dimension_numbers = #tpu.dot_dimension_numbers<[1], [0], [0], [1], [0, 0, 1, 1], [], []>} : vector<8x32xf32>, vector<32x128xf32>, vector<8x128xf32> -> vector<8x128xf32>
    %c0_63 = arith.constant 0 : index
    %c0_64 = arith.constant 0 : index
    %138 = vector.load %arg19[%c0_63, %c0_64] : memref<1x128xf32, #tpu.memory_space<vmem>>, vector<1x128xf32>
    %139 = vector.broadcast %138 : vector<1x128xf32> to vector<8x128xf32>
    %140 = arith.addf %137, %139 : vector<8x128xf32>
    %c0_65 = arith.constant 0 : index
    %c0_66 = arith.constant 0 : index
    %141 = vector.load %arg20[%c0_65, %c0_66] : memref<8x128xf32, #tpu.memory_space<vmem>>, vector<8x128xf32>
    tpu.vector_store %arg20[%c0_65, %c0_66], %140 {strides = array<i32>} : memref<8x128xf32, #tpu.memory_space<vmem>>, vector<8x128xf32>,
    return
  }
  func.func @transform_0(%arg0: i32) -> (i32, i32) {
    %c0_i32 = arith.constant 0 : i32
    %c0_i32_0 = arith.constant 0 : i32
    return %arg0, %c0_i32 : i32, i32
  }
  func.func @transform_1(%arg0: i32) -> (i32, i32) {
    %c0_i32 = arith.constant 0 : i32
    %c0_i32_0 = arith.constant 0 : i32
    return %arg0, %c0_i32 : i32, i32
  }
  func.func @transform_2(%arg0: i32) -> (i32, i32) {
    %c0_i32 = arith.constant 0 : i32
    %c0_i32_0 = arith.constant 0 : i32
    return %arg0, %c0_i32 : i32, i32
  }
  func.func @transform_3(%arg0: i32) -> (i32, i32) {
    %c0_i32 = arith.constant 0 : i32
    %c0_i32_0 = arith.constant 0 : i32
    %c0_i32_1 = arith.constant 0 : i32
    return %c0_i32, %c0_i32_0 : i32, i32
  }
  func.func @transform_4(%arg0: i32) -> (i32, i32) {
    %c0_i32 = arith.constant 0 : i32
    %c0_i32_0 = arith.constant 0 : i32
    %c0_i32_1 = arith.constant 0 : i32
    return %c0_i32, %c0_i32_0 : i32, i32
  }
  func.func @transform_5(%arg0: i32) -> (i32, i32) {
    %c0_i32 = arith.constant 0 : i32
    %c0_i32_0 = arith.constant 0 : i32
    %c0_i32_1 = arith.constant 0 : i32
    return %c0_i32, %c0_i32_0 : i32, i32
  }
  func.func @transform_6(%arg0: i32) -> (i32, i32) {
    %c0_i32 = arith.constant 0 : i32
    %c0_i32_0 = arith.constant 0 : i32
    %c0_i32_1 = arith.constant 0 : i32
    return %c0_i32, %c0_i32_0 : i32, i32
  }
  func.func @transform_7(%arg0: i32) -> (i32, i32) {
    %c0_i32 = arith.constant 0 : i32
    %c0_i32_0 = arith.constant 0 : i32
    %c0_i32_1 = arith.constant 0 : i32
    return %c0_i32, %c0_i32_0 : i32, i32
  }
  func.func @transform_8(%arg0: i32) -> (i32, i32) {
    %c0_i32 = arith.constant 0 : i32
    %c0_i32_0 = arith.constant 0 : i32
    %c0_i32_1 = arith.constant 0 : i32
    return %c0_i32, %c0_i32_0 : i32, i32
  }
  func.func @transform_9(%arg0: i32) -> (i32, i32) {
    %c0_i32 = arith.constant 0 : i32
    %c0_i32_0 = arith.constant 0 : i32
    %c0_i32_1 = arith.constant 0 : i32
    return %c0_i32, %c0_i32_0 : i32, i32
  }
  func.func @transform_10(%arg0: i32) -> (i32, i32) {
    %c0_i32 = arith.constant 0 : i32
    %c0_i32_0 = arith.constant 0 : i32
    %c0_i32_1 = arith.constant 0 : i32
    return %c0_i32, %c0_i32_0 : i32, i32
  }
  func.func @transform_11(%arg0: i32) -> (i32, i32) {
    %c0_i32 = arith.constant 0 : i32
    %c0_i32_0 = arith.constant 0 : i32
    %c0_i32_1 = arith.constant 0 : i32
    return %c0_i32, %c0_i32_0 : i32, i32
  }
  func.func @transform_12(%arg0: i32) -> (i32, i32) {
    %c0_i32 = arith.constant 0 : i32
    %c0_i32_0 = arith.constant 0 : i32
    %c0_i32_1 = arith.constant 0 : i32
    return %c0_i32, %c0_i32_0 : i32, i32
  }
  func.func @transform_13(%arg0: i32) -> (i32, i32) {
    %c0_i32 = arith.constant 0 : i32
    %c0_i32_0 = arith.constant 0 : i32
    %c0_i32_1 = arith.constant 0 : i32
    return %c0_i32, %c0_i32_0 : i32, i32
  }
  func.func @transform_14(%arg0: i32) -> (i32, i32) {
    %c0_i32 = arith.constant 0 : i32
    %c0_i32_0 = arith.constant 0 : i32
    %c0_i32_1 = arith.constant 0 : i32
    return %c0_i32, %c0_i32_0 : i32, i32
  }
  func.func @transform_15(%arg0: i32) -> (i32, i32) {
    %c0_i32 = arith.constant 0 : i32
    %c0_i32_0 = arith.constant 0 : i32
    %c0_i32_1 = arith.constant 0 : i32
    return %c0_i32, %c0_i32_0 : i32, i32
  }
  func.func @transform_16(%arg0: i32) -> (i32, i32) {
    %c0_i32 = arith.constant 0 : i32
    %c0_i32_0 = arith.constant 0 : i32
    %c0_i32_1 = arith.constant 0 : i32
    return %c0_i32, %c0_i32_0 : i32, i32
  }
  func.func @transform_17(%arg0: i32) -> (i32, i32) {
    %c0_i32 = arith.constant 0 : i32
    %c0_i32_0 = arith.constant 0 : i32
    %c0_i32_1 = arith.constant 0 : i32
    return %c0_i32, %c0_i32_0 : i32, i32
  }
  func.func @transform_18(%arg0: i32) -> (i32, i32) {
    %c0_i32 = arith.constant 0 : i32
    %c0_i32_0 = arith.constant 0 : i32
    %c0_i32_1 = arith.constant 0 : i32
    return %c0_i32, %c0_i32_0 : i32, i32
  }
  func.func @transform_19(%arg0: i32) -> (i32, i32) {
    %c0_i32 = arith.constant 0 : i32
    %c0_i32_0 = arith.constant 0 : i32
    return %arg0, %c0_i32 : i32, i32
  }
}

module attributes {stable_mosaic.version = 11 : i64} {
  func.func @kernel(%arg0: i32, %arg1: memref<8x32xf32, #tpu.memory_space<vmem>>, %arg2: memref<8x32xf32, #tpu.memory_space<vmem>>, %arg3: memref<8x32xf32, #tpu.memory_space<vmem>>, %arg4: memref<32x32xf32, #tpu.memory_space<vmem>>, %arg5: memref<1x32xf32, #tpu.memory_space<vmem>>, %arg6: memref<32x32xf32, #tpu.memory_space<vmem>>, %arg7: memref<1x32xf32, #tpu.memory_space<vmem>>, %arg8: memref<32x32xf32, #tpu.memory_space<vmem>>, %arg9: memref<1x32xf32, #tpu.memory_space<vmem>>, %arg10: memref<32x32xf32, #tpu.memory_space<vmem>>, %arg11: memref<1x32xf32, #tpu.memory_space<vmem>>, %arg12: memref<32x32xf32, #tpu.memory_space<vmem>>, %arg13: memref<1x32xf32, #tpu.memory_space<vmem>>, %arg14: memref<1x32xf32, #tpu.memory_space<vmem>>, %arg15: memref<1x32xf32, #tpu.memory_space<vmem>>, %arg16: memref<32x32xf32, #tpu.memory_space<vmem>>, %arg17: memref<1x32xf32, #tpu.memory_space<vmem>>, %arg18: memref<32x128xf32, #tpu.memory_space<vmem>>, %arg19: memref<1x128xf32, #tpu.memory_space<vmem>>, %arg20: memref<8x128xf32, #tpu.memory_space<vmem>>) attributes {dimension_semantics = [#tpu.dimension_semantics<parallel>], iteration_bounds = array<i64: 2>, scalar_prefetch = 0 : i64, scratch_operands = 0 : i64, tpu.core_type = #tpu.core_type<tc>, window_params = [{transform_indices = @transform_0, window_bounds = array<i64: 8, 32>}, {transform_indices = @transform_1, window_bounds = array<i64: 8, 32>}, {transform_indices = @transform_2, window_bounds = array<i64: 8, 32>}, {pipeline_mode = #tpu.pipeline_mode<synchronous>, transform_indices = @transform_3, window_bounds = array<i64: 32, 32>}, {pipeline_mode = #tpu.pipeline_mode<synchronous>, transform_indices = @transform_4, window_bounds = array<i64: 1, 32>}, {pipeline_mode = #tpu.pipeline_mode<synchronous>, transform_indices = @transform_5, window_bounds = array<i64: 32, 32>}, {pipeline_mode = #tpu.pipeline_mode<synchronous>, transform_indices = @transform_6, window_bounds = array<i64: 1, 32>}, {pipeline_mode = #tpu.pipeline_mode<synchronous>, transform_indices = @transform_7, window_bounds = array<i64: 32, 32>}, {pipeline_mode = #tpu.pipeline_mode<synchronous>, transform_indices = @transform_8, window_bounds = array<i64: 1, 32>}, {pipeline_mode = #tpu.pipeline_mode<synchronous>, transform_indices = @transform_9, window_bounds = array<i64: 32, 32>}, {pipeline_mode = #tpu.pipeline_mode<synchronous>, transform_indices = @transform_10, window_bounds = array<i64: 1, 32>}, {pipeline_mode = #tpu.pipeline_mode<synchronous>, transform_indices = @transform_11, window_bounds = array<i64: 32, 32>}, {pipeline_mode = #tpu.pipeline_mode<synchronous>, transform_indices = @transform_12, window_bounds = array<i64: 1, 32>}, {pipeline_mode = #tpu.pipeline_mode<synchronous>, transform_indices = @transform_13, window_bounds = array<i64: 1, 32>}, {pipeline_mode = #tpu.pipeline_mode<synchronous>, transform_indices = @transform_14, window_bounds = array<i64: 1, 32>}, {pipeline_mode = #tpu.pipeline_mode<synchronous>, transform_indices = @transform_15, window_bounds = array<i64: 32, 32>}, {pipeline_mode = #tpu.pipeline_mode<synchronous>, transform_indices = @transform_16, window_bounds = array<i64: 1, 32>}, {pipeline_mode = #tpu.pipeline_mode<synchronous>, transform_indices = @transform_17, window_bounds = array<i64: 32, 128>}, {pipeline_mode = #tpu.pipeline_mode<synchronous>, transform_indices = @transform_18, window_bounds = array<i64: 1, 128>}, {transform_indices = @transform_19, window_bounds = array<i64: 8, 128>}]} {
    %c0 = arith.constant 0 : index
    %c0_0 = arith.constant 0 : index
    %0 = vector.load %arg1[%c0, %c0_0] : memref<8x32xf32, #tpu.memory_space<vmem>>, vector<8x32xf32>
    %c0_1 = arith.constant 0 : index
    %c0_2 = arith.constant 0 : index
    %1 = vector.load %arg2[%c0_1, %c0_2] : memref<8x32xf32, #tpu.memory_space<vmem>>, vector<8x32xf32>
    %c0_3 = arith.constant 0 : index
    %c0_4 = arith.constant 0 : index
    %2 = vector.load %arg3[%c0_3, %c0_4] : memref<8x32xf32, #tpu.memory_space<vmem>>, vector<8x32xf32>
    %c0_5 = arith.constant 0 : index
    %c0_6 = arith.constant 0 : index
    %3 = vector.load %arg4[%c0_5, %c0_6] : memref<32x32xf32, #tpu.memory_space<vmem>>, vector<32x32xf32>
    %cst = arith.constant dense<0.000000e+00> : vector<8x32xf32>
    %4 = tpu.matmul %0, %3, %cst {dimension_numbers = #tpu.dot_dimension_numbers<[1], [0], [0], [1], [0, 0, 1, 1], [], []>} : vector<8x32xf32>, vector<32x32xf32>, vector<8x32xf32> -> vector<8x32xf32>
    %c0_7 = arith.constant 0 : index
    %c0_8 = arith.constant 0 : index
    %5 = vector.load %arg5[%c0_7, %c0_8] : memref<1x32xf32, #tpu.memory_space<vmem>>, vector<1x32xf32>
    %6 = vector.broadcast %5 : vector<1x32xf32> to vector<8x32xf32>
    %7 = arith.addf %4, %6 : vector<8x32xf32>
    %c0_9 = arith.constant 0 : index
    %c0_10 = arith.constant 0 : index
    %8 = vector.load %arg6[%c0_9, %c0_10] : memref<32x32xf32, #tpu.memory_space<vmem>>, vector<32x32xf32>
    %cst_11 = arith.constant dense<0.000000e+00> : vector<8x32xf32>
    %9 = tpu.matmul %1, %8, %cst_11 {dimension_numbers = #tpu.dot_dimension_numbers<[1], [0], [0], [1], [0, 0, 1, 1], [], []>} : vector<8x32xf32>, vector<32x32xf32>, vector<8x32xf32> -> vector<8x32xf32>
    %c0_12 = arith.constant 0 : index
    %c0_13 = arith.constant 0 : index
    %10 = vector.load %arg7[%c0_12, %c0_13] : memref<1x32xf32, #tpu.memory_space<vmem>>, vector<1x32xf32>
    %11 = vector.broadcast %10 : vector<1x32xf32> to vector<8x32xf32>
    %12 = arith.addf %9, %11 : vector<8x32xf32>
    %c0_14 = arith.constant 0 : index
    %c0_15 = arith.constant 0 : index
    %13 = vector.load %arg8[%c0_14, %c0_15] : memref<32x32xf32, #tpu.memory_space<vmem>>, vector<32x32xf32>
    %cst_16 = arith.constant dense<0.000000e+00> : vector<8x32xf32>
    %14 = tpu.matmul %2, %13, %cst_16 {dimension_numbers = #tpu.dot_dimension_numbers<[1], [0], [0], [1], [0, 0, 1, 1], [], []>} : vector<8x32xf32>, vector<32x32xf32>, vector<8x32xf32> -> vector<8x32xf32>
    %c0_17 = arith.constant 0 : index
    %c0_18 = arith.constant 0 : index
    %15 = vector.load %arg9[%c0_17, %c0_18] : memref<1x32xf32, #tpu.memory_space<vmem>>, vector<1x32xf32>
    %16 = vector.broadcast %15 : vector<1x32xf32> to vector<8x32xf32>
    %17 = arith.addf %14, %16 : vector<8x32xf32>
    %18 = vector.extract_strided_slice %7 {offsets = [0, 0], sizes = [8, 8], strides = [1, 1]} : vector<8x32xf32> to vector<8x8xf32>
    %19 = vector.shape_cast %18 : vector<8x8xf32> to vector<1x8x8xf32>
    %20 = vector.extract_strided_slice %12 {offsets = [0, 0], sizes = [8, 8], strides = [1, 1]} : vector<8x32xf32> to vector<8x8xf32>
    %21 = vector.shape_cast %20 : vector<8x8xf32> to vector<1x8x8xf32>
    %22 = vector.extract_strided_slice %17 {offsets = [0, 0], sizes = [8, 8], strides = [1, 1]} : vector<8x32xf32> to vector<8x8xf32>
    %23 = vector.shape_cast %22 : vector<8x8xf32> to vector<1x8x8xf32>
    "tpu.trace_start"() <{level = 10 : i32, message = "bqd,bkd->bqk"}> : () -> ()
    %cst_19 = arith.constant dense<0.000000e+00> : vector<1x8x8xf32>
    %24 = tpu.matmul %19, %21, %cst_19 {dimension_numbers = #tpu.dot_dimension_numbers<[2], [2], [1], [1], [0, 0, 0, 1, 1, 1], [0], [0]>} : vector<1x8x8xf32>, vector<1x8x8xf32>, vector<1x8x8xf32> -> vector<1x8x8xf32>
    "tpu.trace_stop"() : () -> ()
    %cst_20 = arith.constant dense<0xFF800000> : vector<1x8xf32>
    %25 = vector.multi_reduction <maximumf>, %24, %cst_20 [2] : vector<1x8x8xf32> to vector<1x8xf32>
    %26 = vector.shape_cast %25 : vector<1x8xf32> to vector<1x8x1xf32>
    %27 = vector.broadcast %26 : vector<1x8x1xf32> to vector<1x8x8xf32>
    %28 = arith.subf %24, %27 : vector<1x8x8xf32>
    %29 = math.exp %28 : vector<1x8x8xf32>
    %cst_21 = arith.constant dense<0.000000e+00> : vector<1x8xf32>
    %30 = vector.multi_reduction <add>, %29, %cst_21 [2] : vector<1x8x8xf32> to vector<1x8xf32>
    %31 = vector.shape_cast %30 : vector<1x8xf32> to vector<1x8x1xf32>
    %32 = tpu.reciprocal %31 : vector<1x8x1xf32> -> vector<1x8x1xf32>
    %33 = vector.broadcast %32 : vector<1x8x1xf32> to vector<1x8x8xf32>
    %34 = arith.mulf %29, %33 : vector<1x8x8xf32>
    "tpu.trace_start"() <{level = 10 : i32, message = "bqk,bkd->bqd"}> : () -> ()
    %cst_22 = arith.constant dense<0.000000e+00> : vector<1x8x8xf32>
    %35 = tpu.matmul %34, %23, %cst_22 {dimension_numbers = #tpu.dot_dimension_numbers<[2], [1], [1], [2], [0, 0, 0, 1, 1, 2], [0], [0]>} : vector<1x8x8xf32>, vector<1x8x8xf32>, vector<1x8x8xf32> -> vector<1x8x8xf32>
    "tpu.trace_stop"() : () -> ()
    %36 = vector.shape_cast %35 : vector<1x8x8xf32> to vector<8x8xf32>
    %37 = vector.extract_strided_slice %7 {offsets = [0, 8], sizes = [8, 8], strides = [1, 1]} : vector<8x32xf32> to vector<8x8xf32>
    %38 = vector.shape_cast %37 : vector<8x8xf32> to vector<1x8x8xf32>
    %39 = vector.extract_strided_slice %12 {offsets = [0, 8], sizes = [8, 8], strides = [1, 1]} : vector<8x32xf32> to vector<8x8xf32>
    %40 = vector.shape_cast %39 : vector<8x8xf32> to vector<1x8x8xf32>
    %41 = vector.extract_strided_slice %17 {offsets = [0, 8], sizes = [8, 8], strides = [1, 1]} : vector<8x32xf32> to vector<8x8xf32>
    %42 = vector.shape_cast %41 : vector<8x8xf32> to vector<1x8x8xf32>
    "tpu.trace_start"() <{level = 10 : i32, message = "bqd,bkd->bqk"}> : () -> ()
    %cst_23 = arith.constant dense<0.000000e+00> : vector<1x8x8xf32>
    %43 = tpu.matmul %38, %40, %cst_23 {dimension_numbers = #tpu.dot_dimension_numbers<[2], [2], [1], [1], [0, 0, 0, 1, 1, 1], [0], [0]>} : vector<1x8x8xf32>, vector<1x8x8xf32>, vector<1x8x8xf32> -> vector<1x8x8xf32>
    "tpu.trace_stop"() : () -> ()
    %cst_24 = arith.constant dense<0xFF800000> : vector<1x8xf32>
    %44 = vector.multi_reduction <maximumf>, %43, %cst_24 [2] : vector<1x8x8xf32> to vector<1x8xf32>
    %45 = vector.shape_cast %44 : vector<1x8xf32> to vector<1x8x1xf32>
    %46 = vector.broadcast %45 : vector<1x8x1xf32> to vector<1x8x8xf32>
    %47 = arith.subf %43, %46 : vector<1x8x8xf32>
    %48 = math.exp %47 : vector<1x8x8xf32>
    %cst_25 = arith.constant dense<0.000000e+00> : vector<1x8xf32>
    %49 = vector.multi_reduction <add>, %48, %cst_25 [2] : vector<1x8x8xf32> to vector<1x8xf32>
    %50 = vector.shape_cast %49 : vector<1x8xf32> to vector<1x8x1xf32>
    %51 = tpu.reciprocal %50 : vector<1x8x1xf32> -> vector<1x8x1xf32>
    %52 = vector.broadcast %51 : vector<1x8x1xf32> to vector<1x8x8xf32>
    %53 = arith.mulf %48, %52 : vector<1x8x8xf32>
    "tpu.trace_start"() <{level = 10 : i32, message = "bqk,bkd->bqd"}> : () -> ()
    %cst_26 = arith.constant dense<0.000000e+00> : vector<1x8x8xf32>
    %54 = tpu.matmul %53, %42, %cst_26 {dimension_numbers = #tpu.dot_dimension_numbers<[2], [1], [1], [2], [0, 0, 0, 1, 1, 2], [0], [0]>} : vector<1x8x8xf32>, vector<1x8x8xf32>, vector<1x8x8xf32> -> vector<1x8x8xf32>
    "tpu.trace_stop"() : () -> ()
    %55 = vector.shape_cast %54 : vector<1x8x8xf32> to vector<8x8xf32>
    %56 = vector.extract_strided_slice %7 {offsets = [0, 16], sizes = [8, 8], strides = [1, 1]} : vector<8x32xf32> to vector<8x8xf32>
    %57 = vector.shape_cast %56 : vector<8x8xf32> to vector<1x8x8xf32>
    %58 = vector.extract_strided_slice %12 {offsets = [0, 16], sizes = [8, 8], strides = [1, 1]} : vector<8x32xf32> to vector<8x8xf32>
    %59 = vector.shape_cast %58 : vector<8x8xf32> to vector<1x8x8xf32>
    %60 = vector.extract_strided_slice %17 {offsets = [0, 16], sizes = [8, 8], strides = [1, 1]} : vector<8x32xf32> to vector<8x8xf32>
    %61 = vector.shape_cast %60 : vector<8x8xf32> to vector<1x8x8xf32>
    "tpu.trace_start"() <{level = 10 : i32, message = "bqd,bkd->bqk"}> : () -> ()
    %cst_27 = arith.constant dense<0.000000e+00> : vector<1x8x8xf32>
    %62 = tpu.matmul %57, %59, %cst_27 {dimension_numbers = #tpu.dot_dimension_numbers<[2], [2], [1], [1], [0, 0, 0, 1, 1, 1], [0], [0]>} : vector<1x8x8xf32>, vector<1x8x8xf32>, vector<1x8x8xf32> -> vector<1x8x8xf32>
    "tpu.trace_stop"() : () -> ()
    %cst_28 = arith.constant dense<0xFF800000> : vector<1x8xf32>
    %63 = vector.multi_reduction <maximumf>, %62, %cst_28 [2] : vector<1x8x8xf32> to vector<1x8xf32>
    %64 = vector.shape_cast %63 : vector<1x8xf32> to vector<1x8x1xf32>
    %65 = vector.broadcast %64 : vector<1x8x1xf32> to vector<1x8x8xf32>
    %66 = arith.subf %62, %65 : vector<1x8x8xf32>
    %67 = math.exp %66 : vector<1x8x8xf32>
    %cst_29 = arith.constant dense<0.000000e+00> : vector<1x8xf32>
    %68 = vector.multi_reduction <add>, %67, %cst_29 [2] : vector<1x8x8xf32> to vector<1x8xf32>
    %69 = vector.shape_cast %68 : vector<1x8xf32> to vector<1x8x1xf32>
    %70 = tpu.reciprocal %69 : vector<1x8x1xf32> -> vector<1x8x1xf32>
    %71 = vector.broadcast %70 : vector<1x8x1xf32> to vector<1x8x8xf32>
    %72 = arith.mulf %67, %71 : vector<1x8x8xf32>
    "tpu.trace_start"() <{level = 10 : i32, message = "bqk,bkd->bqd"}> : () -> ()
    %cst_30 = arith.constant dense<0.000000e+00> : vector<1x8x8xf32>
    %73 = tpu.matmul %72, %61, %cst_30 {dimension_numbers = #tpu.dot_dimension_numbers<[2], [1], [1], [2], [0, 0, 0, 1, 1, 2], [0], [0]>} : vector<1x8x8xf32>, vector<1x8x8xf32>, vector<1x8x8xf32> -> vector<1x8x8xf32>
    "tpu.trace_stop"() : () -> ()
    %74 = vector.shape_cast %73 : vector<1x8x8xf32> to vector<8x8xf32>
    %75 = vector.extract_strided_slice %7 {offsets = [0, 24], sizes = [8, 8], strides = [1, 1]} : vector<8x32xf32> to vector<8x8xf32>
    %76 = vector.shape_cast %75 : vector<8x8xf32> to vector<1x8x8xf32>
    %77 = vector.extract_strided_slice %12 {offsets = [0, 24], sizes = [8, 8], strides = [1, 1]} : vector<8x32xf32> to vector<8x8xf32>
    %78 = vector.shape_cast %77 : vector<8x8xf32> to vector<1x8x8xf32>
    %79 = vector.extract_strided_slice %17 {offsets = [0, 24], sizes = [8, 8], strides = [1, 1]} : vector<8x32xf32> to vector<8x8xf32>
    %80 = vector.shape_cast %79 : vector<8x8xf32> to vector<1x8x8xf32>
    "tpu.trace_start"() <{level = 10 : i32, message = "bqd,bkd->bqk"}> : () -> ()
    %cst_31 = arith.constant dense<0.000000e+00> : vector<1x8x8xf32>
    %81 = tpu.matmul %76, %78, %cst_31 {dimension_numbers = #tpu.dot_dimension_numbers<[2], [2], [1], [1], [0, 0, 0, 1, 1, 1], [0], [0]>} : vector<1x8x8xf32>, vector<1x8x8xf32>, vector<1x8x8xf32> -> vector<1x8x8xf32>
    "tpu.trace_stop"() : () -> ()
    %cst_32 = arith.constant dense<0xFF800000> : vector<1x8xf32>
    %82 = vector.multi_reduction <maximumf>, %81, %cst_32 [2] : vector<1x8x8xf32> to vector<1x8xf32>
    %83 = vector.shape_cast %82 : vector<1x8xf32> to vector<1x8x1xf32>
    %84 = vector.broadcast %83 : vector<1x8x1xf32> to vector<1x8x8xf32>
    %85 = arith.subf %81, %84 : vector<1x8x8xf32>
    %86 = math.exp %85 : vector<1x8x8xf32>
    %cst_33 = arith.constant dense<0.000000e+00> : vector<1x8xf32>
    %87 = vector.multi_reduction <add>, %86, %cst_33 [2] : vector<1x8x8xf32> to vector<1x8xf32>
    %88 = vector.shape_cast %87 : vector<1x8xf32> to vector<1x8x1xf32>
    %89 = tpu.reciprocal %88 : vector<1x8x1xf32> -> vector<1x8x1xf32>
    %90 = vector.broadcast %89 : vector<1x8x1xf32> to vector<1x8x8xf32>
    %91 = arith.mulf %86, %90 : vector<1x8x8xf32>
    "tpu.trace_start"() <{level = 10 : i32, message = "bqk,bkd->bqd"}> : () -> ()
    %cst_34 = arith.constant dense<0.000000e+00> : vector<1x8x8xf32>
    %92 = tpu.matmul %91, %80, %cst_34 {dimension_numbers = #tpu.dot_dimension_numbers<[2], [1], [1], [2], [0, 0, 0, 1, 1, 2], [0], [0]>} : vector<1x8x8xf32>, vector<1x8x8xf32>, vector<1x8x8xf32> -> vector<1x8x8xf32>
    "tpu.trace_stop"() : () -> ()
    %93 = vector.shape_cast %92 : vector<1x8x8xf32> to vector<8x8xf32>
    %94 = tpu.concatenate %36, %55, %74, %93 in 1 : vector<8x8xf32>, vector<8x8xf32>, vector<8x8xf32>, vector<8x8xf32> -> vector<8x32xf32>
    %c0_35 = arith.constant 0 : index
    %c0_36 = arith.constant 0 : index
    %95 = vector.load %arg10[%c0_35, %c0_36] : memref<32x32xf32, #tpu.memory_space<vmem>>, vector<32x32xf32>
    %cst_37 = arith.constant dense<0.000000e+00> : vector<8x32xf32>
    %96 = tpu.matmul %94, %95, %cst_37 {dimension_numbers = #tpu.dot_dimension_numbers<[1], [0], [0], [1], [0, 0, 1, 1], [], []>} : vector<8x32xf32>, vector<32x32xf32>, vector<8x32xf32> -> vector<8x32xf32>
    %c0_38 = arith.constant 0 : index
    %c0_39 = arith.constant 0 : index
    %97 = vector.load %arg11[%c0_38, %c0_39] : memref<1x32xf32, #tpu.memory_space<vmem>>, vector<1x32xf32>
    %98 = vector.broadcast %97 : vector<1x32xf32> to vector<8x32xf32>
    %99 = arith.addf %96, %98 : vector<8x32xf32>
    %c0_40 = arith.constant 0 : index
    %c0_41 = arith.constant 0 : index
    %100 = vector.load %arg12[%c0_40, %c0_41] : memref<32x32xf32, #tpu.memory_space<vmem>>, vector<32x32xf32>
    %cst_42 = arith.constant dense<0.000000e+00> : vector<8x32xf32>
    %101 = tpu.matmul %99, %100, %cst_42 {dimension_numbers = #tpu.dot_dimension_numbers<[1], [0], [0], [1], [0, 0, 1, 1], [], []>} : vector<8x32xf32>, vector<32x32xf32>, vector<8x32xf32> -> vector<8x32xf32>
    %c0_43 = arith.constant 0 : index
    %c0_44 = arith.constant 0 : index
    %102 = vector.load %arg13[%c0_43, %c0_44] : memref<1x32xf32, #tpu.memory_space<vmem>>, vector<1x32xf32>
    %103 = vector.broadcast %102 : vector<1x32xf32> to vector<8x32xf32>
    %104 = arith.addf %101, %103 : vector<8x32xf32>
    %cst_45 = arith.constant dense<0.000000e+00> : vector<8xf32>
    %105 = vector.multi_reduction <add>, %104, %cst_45 [1] : vector<8x32xf32> to vector<8xf32>
    %106 = vector.shape_cast %105 : vector<8xf32> to vector<8x1xf32>
    %cst_46 = arith.constant 3.200000e+01 : f32
    %107 = vector.broadcast %cst_46 : f32 to vector<8x1xf32>
    %108 = arith.divf %106, %107 : vector<8x1xf32>
    %109 = vector.broadcast %108 : vector<8x1xf32> to vector<8x32xf32>
    %110 = arith.subf %104, %109 : vector<8x32xf32>
    %111 = arith.mulf %110, %110 : vector<8x32xf32>
    %cst_47 = arith.constant dense<0.000000e+00> : vector<8xf32>
    %112 = vector.multi_reduction <add>, %111, %cst_47 [1] : vector<8x32xf32> to vector<8xf32>
    %113 = vector.shape_cast %112 : vector<8xf32> to vector<8x1xf32>
    %cst_48 = arith.constant 3.200000e+01 : f32
    %114 = vector.broadcast %cst_48 : f32 to vector<8x1xf32>
    %115 = arith.divf %113, %114 : vector<8x1xf32>
    %116 = vector.broadcast %108 : vector<8x1xf32> to vector<8x32xf32>
    %117 = arith.subf %104, %116 : vector<8x32xf32>
    %cst_49 = arith.constant 9.99999974E-6 : f32
    %118 = vector.broadcast %cst_49 : f32 to vector<8x1xf32>
    %119 = arith.addf %115, %118 : vector<8x1xf32>
    %120 = math.rsqrt %119 : vector<8x1xf32>
    %121 = vector.broadcast %120 : vector<8x1xf32> to vector<8x32xf32>
    %122 = arith.mulf %117, %121 : vector<8x32xf32>
    %c0_50 = arith.constant 0 : index
    %c0_51 = arith.constant 0 : index
    %123 = vector.load %arg14[%c0_50, %c0_51] : memref<1x32xf32, #tpu.memory_space<vmem>>, vector<1x32xf32>
    %124 = vector.broadcast %123 : vector<1x32xf32> to vector<8x32xf32>
    %125 = arith.mulf %122, %124 : vector<8x32xf32>
    %c0_52 = arith.constant 0 : index
    %c0_53 = arith.constant 0 : index
    %126 = vector.load %arg15[%c0_52, %c0_53] : memref<1x32xf32, #tpu.memory_space<vmem>>, vector<1x32xf32>
    %127 = vector.broadcast %126 : vector<1x32xf32> to vector<8x32xf32>
    %128 = arith.addf %125, %127 : vector<8x32xf32>
    %c0_54 = arith.constant 0 : index
    %c0_55 = arith.constant 0 : index
    %129 = vector.load %arg16[%c0_54, %c0_55] : memref<32x32xf32, #tpu.memory_space<vmem>>, vector<32x32xf32>
    %cst_56 = arith.constant dense<0.000000e+00> : vector<8x32xf32>
    %130 = tpu.matmul %128, %129, %cst_56 {dimension_numbers = #tpu.dot_dimension_numbers<[1], [0], [0], [1], [0, 0, 1, 1], [], []>} : vector<8x32xf32>, vector<32x32xf32>, vector<8x32xf32> -> vector<8x32xf32>
    %c0_57 = arith.constant 0 : index
    %c0_58 = arith.constant 0 : index
    %131 = vector.load %arg17[%c0_57, %c0_58] : memref<1x32xf32, #tpu.memory_space<vmem>>, vector<1x32xf32>
    %132 = vector.broadcast %131 : vector<1x32xf32> to vector<8x32xf32>
    %133 = arith.addf %130, %132 : vector<8x32xf32>
    %cst_59 = arith.constant 0.000000e+00 : f32
    %134 = vector.broadcast %cst_59 : f32 to vector<8x32xf32>
    %135 = arith.maximumf %133, %134 : vector<8x32xf32>
    %c0_60 = arith.constant 0 : index
    %c0_61 = arith.constant 0 : index
    %136 = vector.load %arg18[%c0_60, %c0_61] : memref<32x128xf32, #tpu.memory_space<vmem>>, vector<32x128xf32>
    %cst_62 = arith.constant dense<0.000000e+00> : vector<8x128xf32>
    %137 = tpu.matmul %135, %136, %cst_62 {dimension_numbers = #tpu.dot_dimension_numbers<[1], [0], [0], [1], [0, 0, 1, 1], [], []>} : vector<8x32xf32>, vector<32x128xf32>, vector<8x128xf32> -> vector<8x128xf32>
    %c0_63 = arith.constant 0 : index
    %c0_64 = arith.constant 0 : index
    %138 = vector.load %arg19[%c0_63, %c0_64] : memref<1x128xf32, #tpu.memory_space<vmem>>, vector<1x128xf32>
    %139 = vector.broadcast %138 : vector<1x128xf32> to vector<8x128xf32>
    %140 = arith.addf %137, %139 : vector<8x128xf32>
    %c0_65 = arith.constant 0 : index
    %c0_66 = arith.constant 0 : index
    %141 = vector.load %arg20[%c0_65, %c0_66] : memref<8x128xf32, #tpu.memory_space<vmem>>, vector<8x128xf32>
    tpu.vector_store %arg20[%c0_65, %c0_66], %140 {strides = array<i32>} : memref<8x128xf32, #tpu.memory_space<vmem>>, vector<8x128xf32>,
    return
  }
  func.func @transform_0(%arg0: i32) -> (i32, i32) {
    %c0_i32 = arith.constant 0 : i32
    %c0_i32_0 = arith.constant 0 : i32
    return %arg0, %c0_i32 : i32, i32
  }
  func.func @transform_1(%arg0: i32) -> (i32, i32) {
    %c0_i32 = arith.constant 0 : i32
    %c0_i32_0 = arith.constant 0 : i32
    return %arg0, %c0_i32 : i32, i32
  }
  func.func @transform_2(%arg0: i32) -> (i32, i32) {
    %c0_i32 = arith.constant 0 : i32
    %c0_i32_0 = arith.constant 0 : i32
    return %arg0, %c0_i32 : i32, i32
  }
  func.func @transform_3(%arg0: i32) -> (i32, i32) {
    %c0_i32 = arith.constant 0 : i32
    %c0_i32_0 = arith.constant 0 : i32
    %c0_i32_1 = arith.constant 0 : i32
    return %c0_i32, %c0_i32_0 : i32, i32
  }
  func.func @transform_4(%arg0: i32) -> (i32, i32) {
    %c0_i32 = arith.constant 0 : i32
    %c0_i32_0 = arith.constant 0 : i32
    %c0_i32_1 = arith.constant 0 : i32
    return %c0_i32, %c0_i32_0 : i32, i32
  }
  func.func @transform_5(%arg0: i32) -> (i32, i32) {
    %c0_i32 = arith.constant 0 : i32
    %c0_i32_0 = arith.constant 0 : i32
    %c0_i32_1 = arith.constant 0 : i32
    return %c0_i32, %c0_i32_0 : i32, i32
  }
  func.func @transform_6(%arg0: i32) -> (i32, i32) {
    %c0_i32 = arith.constant 0 : i32
    %c0_i32_0 = arith.constant 0 : i32
    %c0_i32_1 = arith.constant 0 : i32
    return %c0_i32, %c0_i32_0 : i32, i32
  }
  func.func @transform_7(%arg0: i32) -> (i32, i32) {
    %c0_i32 = arith.constant 0 : i32
    %c0_i32_0 = arith.constant 0 : i32
    %c0_i32_1 = arith.constant 0 : i32
    return %c0_i32, %c0_i32_0 : i32, i32
  }
  func.func @transform_8(%arg0: i32) -> (i32, i32) {
    %c0_i32 = arith.constant 0 : i32
    %c0_i32_0 = arith.constant 0 : i32
    %c0_i32_1 = arith.constant 0 : i32
    return %c0_i32, %c0_i32_0 : i32, i32
  }
  func.func @transform_9(%arg0: i32) -> (i32, i32) {
    %c0_i32 = arith.constant 0 : i32
    %c0_i32_0 = arith.constant 0 : i32
    %c0_i32_1 = arith.constant 0 : i32
    return %c0_i32, %c0_i32_0 : i32, i32
  }
  func.func @transform_10(%arg0: i32) -> (i32, i32) {
    %c0_i32 = arith.constant 0 : i32
    %c0_i32_0 = arith.constant 0 : i32
    %c0_i32_1 = arith.constant 0 : i32
    return %c0_i32, %c0_i32_0 : i32, i32
  }
  func.func @transform_11(%arg0: i32) -> (i32, i32) {
    %c0_i32 = arith.constant 0 : i32
    %c0_i32_0 = arith.constant 0 : i32
    %c0_i32_1 = arith.constant 0 : i32
    return %c0_i32, %c0_i32_0 : i32, i32
  }
  func.func @transform_12(%arg0: i32) -> (i32, i32) {
    %c0_i32 = arith.constant 0 : i32
    %c0_i32_0 = arith.constant 0 : i32
    %c0_i32_1 = arith.constant 0 : i32
    return %c0_i32, %c0_i32_0 : i32, i32
  }
  func.func @transform_13(%arg0: i32) -> (i32, i32) {
    %c0_i32 = arith.constant 0 : i32
    %c0_i32_0 = arith.constant 0 : i32
    %c0_i32_1 = arith.constant 0 : i32
    return %c0_i32, %c0_i32_0 : i32, i32
  }
  func.func @transform_14(%arg0: i32) -> (i32, i32) {
    %c0_i32 = arith.constant 0 : i32
    %c0_i32_0 = arith.constant 0 : i32
    %c0_i32_1 = arith.constant 0 : i32
    return %c0_i32, %c0_i32_0 : i32, i32
  }
  func.func @transform_15(%arg0: i32) -> (i32, i32) {
    %c0_i32 = arith.constant 0 : i32
    %c0_i32_0 = arith.constant 0 : i32
    %c0_i32_1 = arith.constant 0 : i32
    return %c0_i32, %c0_i32_0 : i32, i32
  }
  func.func @transform_16(%arg0: i32) -> (i32, i32) {
    %c0_i32 = arith.constant 0 : i32
    %c0_i32_0 = arith.constant 0 : i32
    %c0_i32_1 = arith.constant 0 : i32
    return %c0_i32, %c0_i32_0 : i32, i32
  }
  func.func @transform_17(%arg0: i32) -> (i32, i32) {
    %c0_i32 = arith.constant 0 : i32
    %c0_i32_0 = arith.constant 0 : i32
    %c0_i32_1 = arith.constant 0 : i32
    return %c0_i32, %c0_i32_0 : i32, i32
  }
  func.func @transform_18(%arg0: i32) -> (i32, i32) {
    %c0_i32 = arith.constant 0 : i32
    %c0_i32_0 = arith.constant 0 : i32
    %c0_i32_1 = arith.constant 0 : i32
    return %c0_i32, %c0_i32_0 : i32, i32
  }
  func.func @transform_19(%arg0: i32) -> (i32, i32) {
    %c0_i32 = arith.constant 0 : i32
    %c0_i32_0 = arith.constant 0 : i32
    return %arg0, %c0_i32 : i32, i32
  }
}

</mosaic_0001>

<llo_original>
// kernel: tpu_custom_call.1
$region0: #{tpu_custom_call.1}
  #allocation0 [shape = 'u32[]', space=smem, size = 0x4, offset = 0x4, fixed_abs, tag = 'smem constant byte address 0x4 - core index']
  #allocation1 [shape = 'u32[144,128]{1,0:T(1,128)}', space=vmem, size = 0x12000, scoped, tag = 'internal scratch']
  %s0 = inlined_call_operand.hbm [shape: f32[16,32], index: 0, kind: input, shape index: {}]
  %s1 = inlined_call_operand.hbm [shape: f32[16,32], index: 1, kind: input, shape index: {}]
  %s2 = inlined_call_operand.hbm [shape: f32[16,32], index: 2, kind: input, shape index: {}]
  %s3 = inlined_call_operand.hbm [shape: f32[32,32], index: 3, kind: input, shape index: {}]
  %s4 = inlined_call_operand.hbm [shape: f32[1,32], index: 4, kind: input, shape index: {}]
  %s5 = inlined_call_operand.hbm [shape: f32[32,32], index: 5, kind: input, shape index: {}]
  %s6 = inlined_call_operand.hbm [shape: f32[1,32], index: 6, kind: input, shape index: {}]
  %s7 = inlined_call_operand.hbm [shape: f32[32,32], index: 7, kind: input, shape index: {}]
  %s8 = inlined_call_operand.hbm [shape: f32[1,32], index: 8, kind: input, shape index: {}]
  %s9 = inlined_call_operand.vmem [shape: f32[32,32], index: 9, kind: input, shape index: {}]
  %s10 = inlined_call_operand.hbm [shape: f32[1,32], index: 10, kind: input, shape index: {}]
  %s11 = inlined_call_operand.hbm [shape: f32[32,32], index: 11, kind: input, shape index: {}]
  %s12 = inlined_call_operand.hbm [shape: f32[1,32], index: 12, kind: input, shape index: {}]
  %s13 = inlined_call_operand.hbm [shape: f32[1,32], index: 13, kind: input, shape index: {}]
  %s14 = inlined_call_operand.hbm [shape: f32[1,32], index: 14, kind: input, shape index: {}]
  %s15 = inlined_call_operand.hbm [shape: f32[32,32], index: 15, kind: input, shape index: {}]
  %s16 = inlined_call_operand.hbm [shape: f32[1,32], index: 16, kind: input, shape index: {}]
  %s17 = inlined_call_operand.vmem [shape: f32[32,128], index: 17, kind: input, shape index: {}]
  %s18 = inlined_call_operand.vmem [shape: f32[1,128], index: 18, kind: input, shape index: {}]
  %s19 = inlined_call_operand.hbm [shape: f32[16,128], index: 19, kind: output, shape index: {}]
  %s20 = sld [smem:[#allocation0]]
  $region173: #{tpu_custom_call.1} parent=0
    _
  %s22 = ssub.s32 1, %s20
  %s23 = scalar_select 0, %s22, %s20
  $region1: #{tpu_custom_call.1} parent=0
    #allocation2 [shape = 'u8[8192]{0}', space=vmem, size = 0x2000, scoped, tag = 'input window, operand 0']
    #allocation3 [shape = 's32[2]{0}', space=sflag, size = 0x8, scoped, tag = 'scoped memory for tpu_custom_call.1']
    #allocation4 [shape = 's32[2]{0}', space=sflag, size = 0x8, scoped, tag = 'scoped memory for tpu_custom_call.1']
    #allocation5 [shape = 'u8[8192]{0}', space=vmem, size = 0x2000, scoped, tag = 'input window, operand 1']
    #allocation6 [shape = 's32[2]{0}', space=sflag, size = 0x8, scoped, tag = 'scoped memory for tpu_custom_call.1']
    #allocation7 [shape = 'u8[8192]{0}', space=vmem, size = 0x2000, scoped, tag = 'input window, operand 2']
    #allocation8 [shape = 'u8[16384]{0}', space=vmem, size = 0x4000, scoped, tag = 'input window, operand 3, single buffered']
    #allocation9 [shape = 's32[1]{0}', space=sflag, size = 0x4, scoped, tag = 'scoped memory for tpu_custom_call.1']
    #allocation10 [shape = 'u8[512]{0}', space=vmem, size = 0x400, scoped, tag = 'input window, operand 4, single buffered']
    #allocation11 [shape = 'u8[16384]{0}', space=vmem, size = 0x4000, scoped, tag = 'input window, operand 5, single buffered']
    #allocation12 [shape = 's32[1]{0}', space=sflag, size = 0x4, scoped, tag = 'scoped memory for tpu_custom_call.1']
    #allocation13 [shape = 'u8[512]{0}', space=vmem, size = 0x400, scoped, tag = 'input window, operand 6, single buffered']
    #allocation14 [shape = 'u8[16384]{0}', space=vmem, size = 0x4000, scoped, tag = 'input window, operand 7, single buffered']
    #allocation15 [shape = 's32[1]{0}', space=sflag, size = 0x4, scoped, tag = 'scoped memory for tpu_custom_call.1']
    #allocation16 [shape = 'u8[512]{0}', space=vmem, size = 0x400, scoped, tag = 'input window, operand 8, single buffered']
    #allocation17 [shape = 'u8[512]{0}', space=vmem, size = 0x400, scoped, tag = 'input window, operand 10, single buffered']
    #allocation18 [shape = 's32[1]{0}', space=sflag, size = 0x4, scoped, tag = 'scoped memory for tpu_custom_call.1']
    #allocation19 [shape = 'u8[16384]{0}', space=vmem, size = 0x4000, scoped, tag = 'input window, operand 11, single buffered']
    #allocation20 [shape = 'u8[512]{0}', space=vmem, size = 0x400, scoped, tag = 'input window, operand 12, single buffered']
    #allocation21 [shape = 's32[1]{0}', space=sflag, size = 0x4, scoped, tag = 'scoped memory for tpu_custom_call.1']
    #allocation22 [shape = 'u8[512]{0}', space=vmem, size = 0x400, scoped, tag = 'input window, operand 13, single buffered']
    #allocation23 [shape = 'u8[512]{0}', space=vmem, size = 0x400, scoped, tag = 'input window, operand 14, single buffered']
    #allocation24 [shape = 's32[1]{0}', space=sflag, size = 0x4, scoped, tag = 'scoped memory for tpu_custom_call.1']
    #allocation25 [shape = 'u8[16384]{0}', space=vmem, size = 0x4000, scoped, tag = 'input window, operand 15, single buffered']
    #allocation26 [shape = 'u8[512]{0}', space=vmem, size = 0x400, scoped, tag = 'input window, operand 16, single buffered']
    #allocation27 [shape = 's32[1]{0}', space=sflag, size = 0x4, scoped, tag = 'scoped memory for tpu_custom_call.1']
    #allocation28 [shape = 'u8[8192]{0}', space=vmem, size = 0x2000, scoped, tag = 'output window, operand 0']
    %24 = vsyncpa [#allocation3], 0
    %s25 = scalar_lea.sflag [#allocation3], 1
    %26 = vsyncpa %s25, 0
    %27 = vsyncpa [#allocation6], 0
    %s28 = scalar_lea.sflag [#allocation6], 1
    %29 = vsyncpa %s28, 0
    %30 = vsyncpa [#allocation9], 0
    %31 = vsyncpa [#allocation12], 0
    %32 = vsyncpa [#allocation15], 0
    %33 = vsyncpa [#allocation18], 0
    %34 = vsyncpa [#allocation21], 0
    %35 = vsyncpa [#allocation24], 0
    %36 = vsyncpa [#allocation27], 0
    %37 = vsyncpa [#allocation4], 0
    %s38 = scalar_lea.sflag [#allocation4], 1
    %39 = vsyncpa %s38, 0
    loop: start=0, step=1, limit=4
    $region2: #{tpu_custom_call.1} parent=1 // loop_pre_header
      _
    $region3: #{tpu_custom_call.1} parent=1 // loop_header
      %s41 = sphi 0, %s45
      %p42 = scmp.ge.s32.totalorder %s41, 4
      %s51 = sphi 0, %s53
      %s54 = sphi 0, %s51
      %s55 = sphi 0, %s54
      %s71 = sphi 0, %s55
      %s77 = sphi 0, %s79
      %s80 = sphi 0, %s77
      %s81 = sphi 0, %s80
      %s97 = sphi 0, %s81
      %s103 = sphi 0, %s105
      %s106 = sphi 0, %s103
      %s107 = sphi 0, %s106
      %s123 = sphi 0, %s107
      %s127 = sphi 0, %s127
      %s129 = sphi 0, %s127
      %s130 = sphi 0, %s129
      %s144 = sphi 0, %s130
      %s148 = sphi 0, %s148
      %s150 = sphi 0, %s148
      %s151 = sphi 0, %s150
      %s165 = sphi 0, %s151
      %s169 = sphi 0, %s169
      %s171 = sphi 0, %s169
      %s172 = sphi 0, %s171
      %s186 = sphi 0, %s172
      %s190 = sphi 0, %s190
      %s192 = sphi 0, %s190
      %s193 = sphi 0, %s192
      %s207 = sphi 0, %s193
      %s211 = sphi 0, %s211
      %s213 = sphi 0, %s211
      %s214 = sphi 0, %s213
      %s228 = sphi 0, %s214
      %s232 = sphi 0, %s232
      %s234 = sphi 0, %s232
      %s235 = sphi 0, %s234
      %s249 = sphi 0, %s235
      %s253 = sphi 0, %s253
      %s255 = sphi 0, %s253
      %s256 = sphi 0, %s255
      %s270 = sphi 0, %s256
      %s274 = sphi 0, %s274
      %s276 = sphi 0, %s274
      %s277 = sphi 0, %s276
      %s291 = sphi 0, %s277
      %s295 = sphi 0, %s295
      %s297 = sphi 0, %s295
      %s298 = sphi 0, %s297
      %s312 = sphi 0, %s298
      %s316 = sphi 0, %s316
      %s318 = sphi 0, %s316
      %s319 = sphi 0, %s318
      %s333 = sphi 0, %s319
      %s337 = sphi 0, %s337
      %s339 = sphi 0, %s337
      %s340 = sphi 0, %s339
      %s354 = sphi 0, %s340
      %s358 = sphi 0, %s358
      %s360 = sphi 0, %s358
      %s361 = sphi 0, %s360
      %s375 = sphi 0, %s361
      %s379 = sphi 0, %s379
      %s381 = sphi 0, %s379
      %s382 = sphi 0, %s381
      %s396 = sphi 0, %s382
      %s400 = sphi 0, %s400
      %s402 = sphi 0, %s400
      %s403 = sphi 0, %s402
      %s417 = sphi 0, %s403
      %s421 = sphi 0, %s421
      %s423 = sphi 0, %s421
      %s424 = sphi 0, %s423
      %s438 = sphi 0, %s424
      %s442 = sphi 0, %s442
      %s444 = sphi 0, %s442
      %s445 = sphi 0, %s444
      %s459 = sphi 0, %s445
      %s465 = sphi 0, %s467
      %s468 = sphi 0, %s465
      %s469 = sphi 0, %s468
      %s485 = sphi 0, %s469
    $region4: #{tpu_custom_call.1} parent=1 // loop_header_branch
      %44 = sbr.rel (%p42) target = $region8
    $region5: #{tpu_custom_call.1} parent=1 // loop_body
      %s46 = ssub.s32 %s41, 1
      %s47 = ssub.s32 %s41, 2
      %s48 = sadd.s32 %s41, 1
      %s49 = ssub.s32 %s41, %s48
      %p50 = scmp.eq.s32.totalorder %s49, 0
      %s52 = sadd.s32 %s51, 1
      %s53 = scalar_select %p50, %s51, %s52
      %p56 = pneg %p50
      %p57 = scmp.eq.s32.totalorder %s41, 1
      %p58 = por %p56, %p57
      %p59 = scmp.ne.s32.totalorder %s51, %s54
      %p60 = scmp.eq.s32.totalorder %s41, 0
      %p61 = por %p59, %p60
      %p62 = scmp.ne.s32.totalorder %s51, %s54
      %p63 = scmp.eq.s32.totalorder %s46, 1
      %p64 = por %p62, %p63
      %p65 = scmp.ne.s32.totalorder %s54, %s55
      %p66 = scmp.eq.s32.totalorder %s46, 0
      %p67 = por %p65, %p66
      %p68 = scmp.ne.s32.totalorder %s54, %s55
      %p69 = scmp.eq.s32.totalorder %s47, 1
      %p70 = por %p68, %p69
      %p72 = scmp.ne.s32.totalorder %s55, %s71
      %p73 = scmp.eq.s32.totalorder %s47, 0
      %p74 = por %p72, %p73
      %s75 = ssub.s32 %s41, %s48
      %p76 = scmp.eq.s32.totalorder %s75, 0
      %s78 = sadd.s32 %s77, 1
      %s79 = scalar_select %p76, %s77, %s78
      %p82 = pneg %p76
      %p83 = scmp.eq.s32.totalorder %s41, 1
      %p84 = por %p82, %p83
      %p85 = scmp.ne.s32.totalorder %s77, %s80
      %p86 = scmp.eq.s32.totalorder %s41, 0
      %p87 = por %p85, %p86
      %p88 = scmp.ne.s32.totalorder %s77, %s80
      %p89 = scmp.eq.s32.totalorder %s46, 1
      %p90 = por %p88, %p89
      %p91 = scmp.ne.s32.totalorder %s80, %s81
      %p92 = scmp.eq.s32.totalorder %s46, 0
      %p93 = por %p91, %p92
      %p94 = scmp.ne.s32.totalorder %s80, %s81
      %p95 = scmp.eq.s32.totalorder %s47, 1
      %p96 = por %p94, %p95
      %p98 = scmp.ne.s32.totalorder %s81, %s97
      %p99 = scmp.eq.s32.totalorder %s47, 0
      %p100 = por %p98, %p99
      %s101 = ssub.s32 %s41, %s48
      %p102 = scmp.eq.s32.totalorder %s101, 0
      %s104 = sadd.s32 %s103, 1
      %s105 = scalar_select %p102, %s103, %s104
      %p108 = pneg %p102
      %p109 = scmp.eq.s32.totalorder %s41, 1
      %p110 = por %p108, %p109
      %p111 = scmp.ne.s32.totalorder %s103, %s106
      %p112 = scmp.eq.s32.totalorder %s41, 0
      %p113 = por %p111, %p112
      %p114 = scmp.ne.s32.totalorder %s103, %s106
      %p115 = scmp.eq.s32.totalorder %s46, 1
      %p116 = por %p114, %p115
      %p117 = scmp.ne.s32.totalorder %s106, %s107
      %p118 = scmp.eq.s32.totalorder %s46, 0
      %p119 = por %p117, %p118
      %p120 = scmp.ne.s32.totalorder %s106, %s107
      %p121 = scmp.eq.s32.totalorder %s47, 1
      %p122 = por %p120, %p121
      %p124 = scmp.ne.s32.totalorder %s107, %s123
      %p125 = scmp.eq.s32.totalorder %s47, 0
      %p126 = por %p124, %p125
      %s128 = sadd.s32 %s127, 1
      %p131 = scmp.eq.s32.totalorder %s41, 1
      %p132 = scmp.ne.s32.totalorder %s127, %s129
      %p133 = scmp.eq.s32.totalorder %s41, 0
      %p134 = por %p132, %p133
      %p135 = scmp.ne.s32.totalorder %s127, %s129
      %p136 = scmp.eq.s32.totalorder %s46, 1
      %p137 = por %p135, %p136
      %p138 = scmp.ne.s32.totalorder %s129, %s130
      %p139 = scmp.eq.s32.totalorder %s46, 0
      %p140 = por %p138, %p139
      %p141 = scmp.ne.s32.totalorder %s129, %s130
      %p142 = scmp.eq.s32.totalorder %s47, 1
      %p143 = por %p141, %p142
      %p145 = scmp.ne.s32.totalorder %s130, %s144
      %p146 = scmp.eq.s32.totalorder %s47, 0
      %p147 = por %p145, %p146
      %s149 = sadd.s32 %s148, 1
      %p152 = scmp.eq.s32.totalorder %s41, 1
      %p153 = scmp.ne.s32.totalorder %s148, %s150
      %p154 = scmp.eq.s32.totalorder %s41, 0
      %p155 = por %p153, %p154
      %p156 = scmp.ne.s32.totalorder %s148, %s150
      %p157 = scmp.eq.s32.totalorder %s46, 1
      %p158 = por %p156, %p157
      %p159 = scmp.ne.s32.totalorder %s150, %s151
      %p160 = scmp.eq.s32.totalorder %s46, 0
      %p161 = por %p159, %p160
      %p162 = scmp.ne.s32.totalorder %s150, %s151
      %p163 = scmp.eq.s32.totalorder %s47, 1
      %p164 = por %p162, %p163
      %p166 = scmp.ne.s32.totalorder %s151, %s165
      %p167 = scmp.eq.s32.totalorder %s47, 0
      %p168 = por %p166, %p167
      %s170 = sadd.s32 %s169, 1
      %p173 = scmp.eq.s32.totalorder %s41, 1
      %p174 = scmp.ne.s32.totalorder %s169, %s171
      %p175 = scmp.eq.s32.totalorder %s41, 0
      %p176 = por %p174, %p175
      %p177 = scmp.ne.s32.totalorder %s169, %s171
      %p178 = scmp.eq.s32.totalorder %s46, 1
      %p179 = por %p177, %p178
      %p180 = scmp.ne.s32.totalorder %s171, %s172
      %p181 = scmp.eq.s32.totalorder %s46, 0
      %p182 = por %p180, %p181
      %p183 = scmp.ne.s32.totalorder %s171, %s172
      %p184 = scmp.eq.s32.totalorder %s47, 1
      %p185 = por %p183, %p184
      %p187 = scmp.ne.s32.totalorder %s172, %s186
      %p188 = scmp.eq.s32.totalorder %s47, 0
      %p189 = por %p187, %p188
      %s191 = sadd.s32 %s190, 1
      %p194 = scmp.eq.s32.totalorder %s41, 1
      %p195 = scmp.ne.s32.totalorder %s190, %s192
      %p196 = scmp.eq.s32.totalorder %s41, 0
      %p197 = por %p195, %p196
      %p198 = scmp.ne.s32.totalorder %s190, %s192
      %p199 = scmp.eq.s32.totalorder %s46, 1
      %p200 = por %p198, %p199
      %p201 = scmp.ne.s32.totalorder %s192, %s193
      %p202 = scmp.eq.s32.totalorder %s46, 0
      %p203 = por %p201, %p202
      %p204 = scmp.ne.s32.totalorder %s192, %s193
      %p205 = scmp.eq.s32.totalorder %s47, 1
      %p206 = por %p204, %p205
      %p208 = scmp.ne.s32.totalorder %s193, %s207
      %p209 = scmp.eq.s32.totalorder %s47, 0
      %p210 = por %p208, %p209
      %s212 = sadd.s32 %s211, 1
      %p215 = scmp.eq.s32.totalorder %s41, 1
      %p216 = scmp.ne.s32.totalorder %s211, %s213
      %p217 = scmp.eq.s32.totalorder %s41, 0
      %p218 = por %p216, %p217
      %p219 = scmp.ne.s32.totalorder %s211, %s213
      %p220 = scmp.eq.s32.totalorder %s46, 1
      %p221 = por %p219, %p220
      %p222 = scmp.ne.s32.totalorder %s213, %s214
      %p223 = scmp.eq.s32.totalorder %s46, 0
      %p224 = por %p222, %p223
      %p225 = scmp.ne.s32.totalorder %s213, %s214
      %p226 = scmp.eq.s32.totalorder %s47, 1
      %p227 = por %p225, %p226
      %p229 = scmp.ne.s32.totalorder %s214, %s228
      %p230 = scmp.eq.s32.totalorder %s47, 0
      %p231 = por %p229, %p230
      %s233 = sadd.s32 %s232, 1
      %p236 = scmp.eq.s32.totalorder %s41, 1
      %p237 = scmp.ne.s32.totalorder %s232, %s234
      %p238 = scmp.eq.s32.totalorder %s41, 0
      %p239 = por %p237, %p238
      %p240 = scmp.ne.s32.totalorder %s232, %s234
      %p241 = scmp.eq.s32.totalorder %s46, 1
      %p242 = por %p240, %p241
      %p243 = scmp.ne.s32.totalorder %s234, %s235
      %p244 = scmp.eq.s32.totalorder %s46, 0
      %p245 = por %p243, %p244
      %p246 = scmp.ne.s32.totalorder %s234, %s235
      %p247 = scmp.eq.s32.totalorder %s47, 1
      %p248 = por %p246, %p247
      %p250 = scmp.ne.s32.totalorder %s235, %s249
      %p251 = scmp.eq.s32.totalorder %s47, 0
      %p252 = por %p250, %p251
      %s254 = sadd.s32 %s253, 1
      %p257 = scmp.eq.s32.totalorder %s41, 1
      %p258 = scmp.ne.s32.totalorder %s253, %s255
      %p259 = scmp.eq.s32.totalorder %s41, 0
      %p260 = por %p258, %p259
      %p261 = scmp.ne.s32.totalorder %s253, %s255
      %p262 = scmp.eq.s32.totalorder %s46, 1
      %p263 = por %p261, %p262
      %p264 = scmp.ne.s32.totalorder %s255, %s256
      %p265 = scmp.eq.s32.totalorder %s46, 0
      %p266 = por %p264, %p265
      %p267 = scmp.ne.s32.totalorder %s255, %s256
      %p268 = scmp.eq.s32.totalorder %s47, 1
      %p269 = por %p267, %p268
      %p271 = scmp.ne.s32.totalorder %s256, %s270
      %p272 = scmp.eq.s32.totalorder %s47, 0
      %p273 = por %p271, %p272
      %s275 = sadd.s32 %s274, 1
      %p278 = scmp.eq.s32.totalorder %s41, 1
      %p279 = scmp.ne.s32.totalorder %s274, %s276
      %p280 = scmp.eq.s32.totalorder %s41, 0
      %p281 = por %p279, %p280
      %p282 = scmp.ne.s32.totalorder %s274, %s276
      %p283 = scmp.eq.s32.totalorder %s46, 1
      %p284 = por %p282, %p283
      %p285 = scmp.ne.s32.totalorder %s276, %s277
      %p286 = scmp.eq.s32.totalorder %s46, 0
      %p287 = por %p285, %p286
      %p288 = scmp.ne.s32.totalorder %s276, %s277
      %p289 = scmp.eq.s32.totalorder %s47, 1
      %p290 = por %p288, %p289
      %p292 = scmp.ne.s32.totalorder %s277, %s291
      %p293 = scmp.eq.s32.totalorder %s47, 0
      %p294 = por %p292, %p293
      %s296 = sadd.s32 %s295, 1
      %p299 = scmp.eq.s32.totalorder %s41, 1
      %p300 = scmp.ne.s32.totalorder %s295, %s297
      %p301 = scmp.eq.s32.totalorder %s41, 0
      %p302 = por %p300, %p301
      %p303 = scmp.ne.s32.totalorder %s295, %s297
      %p304 = scmp.eq.s32.totalorder %s46, 1
      %p305 = por %p303, %p304
      %p306 = scmp.ne.s32.totalorder %s297, %s298
      %p307 = scmp.eq.s32.totalorder %s46, 0
      %p308 = por %p306, %p307
      %p309 = scmp.ne.s32.totalorder %s297, %s298
      %p310 = scmp.eq.s32.totalorder %s47, 1
      %p311 = por %p309, %p310
      %p313 = scmp.ne.s32.totalorder %s298, %s312
      %p314 = scmp.eq.s32.totalorder %s47, 0
      %p315 = por %p313, %p314
      %s317 = sadd.s32 %s316, 1
      %p320 = scmp.eq.s32.totalorder %s41, 1
      %p321 = scmp.ne.s32.totalorder %s316, %s318
      %p322 = scmp.eq.s32.totalorder %s41, 0
      %p323 = por %p321, %p322
      %p324 = scmp.ne.s32.totalorder %s316, %s318
      %p325 = scmp.eq.s32.totalorder %s46, 1
      %p326 = por %p324, %p325
      %p327 = scmp.ne.s32.totalorder %s318, %s319
      %p328 = scmp.eq.s32.totalorder %s46, 0
      %p329 = por %p327, %p328
      %p330 = scmp.ne.s32.totalorder %s318, %s319
      %p331 = scmp.eq.s32.totalorder %s47, 1
      %p332 = por %p330, %p331
      %p334 = scmp.ne.s32.totalorder %s319, %s333
      %p335 = scmp.eq.s32.totalorder %s47, 0
      %p336 = por %p334, %p335
      %s338 = sadd.s32 %s337, 1
      %p341 = scmp.eq.s32.totalorder %s41, 1
      %p342 = scmp.ne.s32.totalorder %s337, %s339
      %p343 = scmp.eq.s32.totalorder %s41, 0
      %p344 = por %p342, %p343
      %p345 = scmp.ne.s32.totalorder %s337, %s339
      %p346 = scmp.eq.s32.totalorder %s46, 1
      %p347 = por %p345, %p346
      %p348 = scmp.ne.s32.totalorder %s339, %s340
      %p349 = scmp.eq.s32.totalorder %s46, 0
      %p350 = por %p348, %p349
      %p351 = scmp.ne.s32.totalorder %s339, %s340
      %p352 = scmp.eq.s32.totalorder %s47, 1
      %p353 = por %p351, %p352
      %p355 = scmp.ne.s32.totalorder %s340, %s354
      %p356 = scmp.eq.s32.totalorder %s47, 0
      %p357 = por %p355, %p356
      %s359 = sadd.s32 %s358, 1
      %p362 = scmp.eq.s32.totalorder %s41, 1
      %p363 = scmp.ne.s32.totalorder %s358, %s360
      %p364 = scmp.eq.s32.totalorder %s41, 0
      %p365 = por %p363, %p364
      %p366 = scmp.ne.s32.totalorder %s358, %s360
      %p367 = scmp.eq.s32.totalorder %s46, 1
      %p368 = por %p366, %p367
      %p369 = scmp.ne.s32.totalorder %s360, %s361
      %p370 = scmp.eq.s32.totalorder %s46, 0
      %p371 = por %p369, %p370
      %p372 = scmp.ne.s32.totalorder %s360, %s361
      %p373 = scmp.eq.s32.totalorder %s47, 1
      %p374 = por %p372, %p373
      %p376 = scmp.ne.s32.totalorder %s361, %s375
      %p377 = scmp.eq.s32.totalorder %s47, 0
      %p378 = por %p376, %p377
      %s380 = sadd.s32 %s379, 1
      %p383 = scmp.eq.s32.totalorder %s41, 1
      %p384 = scmp.ne.s32.totalorder %s379, %s381
      %p385 = scmp.eq.s32.totalorder %s41, 0
      %p386 = por %p384, %p385
      %p387 = scmp.ne.s32.totalorder %s379, %s381
      %p388 = scmp.eq.s32.totalorder %s46, 1
      %p389 = por %p387, %p388
      %p390 = scmp.ne.s32.totalorder %s381, %s382
      %p391 = scmp.eq.s32.totalorder %s46, 0
      %p392 = por %p390, %p391
      %p393 = scmp.ne.s32.totalorder %s381, %s382
      %p394 = scmp.eq.s32.totalorder %s47, 1
      %p395 = por %p393, %p394
      %p397 = scmp.ne.s32.totalorder %s382, %s396
      %p398 = scmp.eq.s32.totalorder %s47, 0
      %p399 = por %p397, %p398
      %s401 = sadd.s32 %s400, 1
      %p404 = scmp.eq.s32.totalorder %s41, 1
      %p405 = scmp.ne.s32.totalorder %s400, %s402
      %p406 = scmp.eq.s32.totalorder %s41, 0
      %p407 = por %p405, %p406
      %p408 = scmp.ne.s32.totalorder %s400, %s402
      %p409 = scmp.eq.s32.totalorder %s46, 1
      %p410 = por %p408, %p409
      %p411 = scmp.ne.s32.totalorder %s402, %s403
      %p412 = scmp.eq.s32.totalorder %s46, 0
      %p413 = por %p411, %p412
      %p414 = scmp.ne.s32.totalorder %s402, %s403
      %p415 = scmp.eq.s32.totalorder %s47, 1
      %p416 = por %p414, %p415
      %p418 = scmp.ne.s32.totalorder %s403, %s417
      %p419 = scmp.eq.s32.totalorder %s47, 0
      %p420 = por %p418, %p419
      %s422 = sadd.s32 %s421, 1
      %p425 = scmp.eq.s32.totalorder %s41, 1
      %p426 = scmp.ne.s32.totalorder %s421, %s423
      %p427 = scmp.eq.s32.totalorder %s41, 0
      %p428 = por %p426, %p427
      %p429 = scmp.ne.s32.totalorder %s421, %s423
      %p430 = scmp.eq.s32.totalorder %s46, 1
      %p431 = por %p429, %p430
      %p432 = scmp.ne.s32.totalorder %s423, %s424
      %p433 = scmp.eq.s32.totalorder %s46, 0
      %p434 = por %p432, %p433
      %p435 = scmp.ne.s32.totalorder %s423, %s424
      %p436 = scmp.eq.s32.totalorder %s47, 1
      %p437 = por %p435, %p436
      %p439 = scmp.ne.s32.totalorder %s424, %s438
      %p440 = scmp.eq.s32.totalorder %s47, 0
      %p441 = por %p439, %p440
      %s443 = sadd.s32 %s442, 1
      %p446 = scmp.eq.s32.totalorder %s41, 1
      %p447 = scmp.ne.s32.totalorder %s442, %s444
      %p448 = scmp.eq.s32.totalorder %s41, 0
      %p449 = por %p447, %p448
      %p450 = scmp.ne.s32.totalorder %s442, %s444
      %p451 = scmp.eq.s32.totalorder %s46, 1
      %p452 = por %p450, %p451
      %p453 = scmp.ne.s32.totalorder %s444, %s445
      %p454 = scmp.eq.s32.totalorder %s46, 0
      %p455 = por %p453, %p454
      %p456 = scmp.ne.s32.totalorder %s444, %s445
      %p457 = scmp.eq.s32.totalorder %s47, 1
      %p458 = por %p456, %p457
      %p460 = scmp.ne.s32.totalorder %s445, %s459
      %p461 = scmp.eq.s32.totalorder %s47, 0
      %p462 = por %p460, %p461
      %s463 = ssub.s32 %s41, %s48
      %p464 = scmp.eq.s32.totalorder %s463, 0
      %s466 = sadd.s32 %s465, 1
      %s467 = scalar_select %p464, %s465, %s466
      %p470 = pneg %p464
      %p471 = scmp.eq.s32.totalorder %s41, 1
      %p472 = por %p470, %p471
      %p473 = scmp.ne.s32.totalorder %s465, %s468
      %p474 = scmp.eq.s32.totalorder %s41, 0
      %p475 = por %p473, %p474
      %p476 = scmp.ne.s32.totalorder %s465, %s468
      %p477 = scmp.eq.s32.totalorder %s46, 1
      %p478 = por %p476, %p477
      %p479 = scmp.ne.s32.totalorder %s468, %s469
      %p480 = scmp.eq.s32.totalorder %s46, 0
      %p481 = por %p479, %p480
      %p482 = scmp.ne.s32.totalorder %s468, %s469
      %p483 = scmp.eq.s32.totalorder %s47, 1
      %p484 = por %p482, %p483
      %p486 = scmp.ne.s32.totalorder %s469, %s485
      %p487 = scmp.eq.s32.totalorder %s47, 0
      %p488 = por %p486, %p487
      %p489 = scmp.le.s32.totalorder 1, %s41
      %p490 = scmp.lt.s32.totalorder %s41, 3
      %p491 = pnand %p489, %p490
      %p492 = pneg %p491
      // Predicated region
      $region9: #{tpu_custom_call.1} parent=5 // pred_check
        _
      $region10: #{tpu_custom_call.1} parent=5 // pred_check_branch
        %494 = sbr.rel (%p491) target = $region12
      $region11: #{tpu_custom_call.1} parent=5 // pred_region
        %s495 = ssub.s32 %s41, 1
        // Predicated region
        $region13: #{tpu_custom_call.1} parent=11 // pred_check
          %p496 = pneg %p140
        $region14: #{tpu_custom_call.1} parent=11 // pred_check_branch
          %498 = sbr.rel (%p496) target = $region16
        $region15: #{tpu_custom_call.1} parent=11 // pred_region
          %s500 = ssub.s32 512, 512
          %501 = vsyncadd [#allocation9], %s500
          %s502 = sshll.u32 [#allocation8], 4
          %s503 = int_to_ptr.vmem [resolvable:$true] %s502
          %508 = dma.hbm_to_vmem [thread:$0]  %s3, 512, %s503, [#allocation9], 128, 128, 8
        $region16: #{tpu_custom_call.1} parent=11 // pred_fallthru
          _
        // Predicated region
        $region17: #{tpu_custom_call.1} parent=11 // pred_check
          %p509 = pneg %p161
        $region18: #{tpu_custom_call.1} parent=11 // pred_check_branch
          %511 = sbr.rel (%p509) target = $region20
        $region19: #{tpu_custom_call.1} parent=11 // pred_region
          %s513 = ssub.s32 16, 16
          %514 = vsyncadd [#allocation9], %s513
          %s516 = sshll.u32 [#allocation10], 4
          %s517 = int_to_ptr.vmem [resolvable:$true] %s516
          %519 = dma.hbm_to_vmem [thread:$0]  %s4, 16, %s517, [#allocation9]
        $region20: #{tpu_custom_call.1} parent=11 // pred_fallthru
          _
        // Predicated region
        $region21: #{tpu_custom_call.1} parent=11 // pred_check
          %p520 = pneg %p182
        $region22: #{tpu_custom_call.1} parent=11 // pred_check_branch
          %522 = sbr.rel (%p520) target = $region24
        $region23: #{tpu_custom_call.1} parent=11 // pred_region
          %s524 = ssub.s32 512, 512
          %525 = vsyncadd [#allocation12], %s524
          %s526 = sshll.u32 [#allocation11], 4
          %s527 = int_to_ptr.vmem [resolvable:$true] %s526
          %532 = dma.hbm_to_vmem [thread:$0]  %s5, 512, %s527, [#allocation12], 128, 128, 8
        $region24: #{tpu_custom_call.1} parent=11 // pred_fallthru
          _
        // Predicated region
        $region25: #{tpu_custom_call.1} parent=11 // pred_check
          %p533 = pneg %p203
        $region26: #{tpu_custom_call.1} parent=11 // pred_check_branch
          %535 = sbr.rel (%p533) target = $region28
        $region27: #{tpu_custom_call.1} parent=11 // pred_region
          %s537 = ssub.s32 16, 16
          %538 = vsyncadd [#allocation12], %s537
          %s540 = sshll.u32 [#allocation13], 4
          %s541 = int_to_ptr.vmem [resolvable:$true] %s540
          %543 = dma.hbm_to_vmem [thread:$0]  %s6, 16, %s541, [#allocation12]
        $region28: #{tpu_custom_call.1} parent=11 // pred_fallthru
          _
        // Predicated region
        $region29: #{tpu_custom_call.1} parent=11 // pred_check
          %p544 = pneg %p224
        $region30: #{tpu_custom_call.1} parent=11 // pred_check_branch
          %546 = sbr.rel (%p544) target = $region32
        $region31: #{tpu_custom_call.1} parent=11 // pred_region
          %s548 = ssub.s32 512, 512
          %549 = vsyncadd [#allocation15], %s548
          %s550 = sshll.u32 [#allocation14], 4
          %s551 = int_to_ptr.vmem [resolvable:$true] %s550
          %556 = dma.hbm_to_vmem [thread:$0]  %s7, 512, %s551, [#allocation15], 128, 128, 8
        $region32: #{tpu_custom_call.1} parent=11 // pred_fallthru
          _
        // Predicated region
        $region33: #{tpu_custom_call.1} parent=11 // pred_check
          %p557 = pneg %p245
        $region34: #{tpu_custom_call.1} parent=11 // pred_check_branch
          %559 = sbr.rel (%p557) target = $region36
        $region35: #{tpu_custom_call.1} parent=11 // pred_region
          %s561 = ssub.s32 16, 16
          %562 = vsyncadd [#allocation15], %s561
          %s564 = sshll.u32 [#allocation16], 4
          %s565 = int_to_ptr.vmem [resolvable:$true] %s564
          %567 = dma.hbm_to_vmem [thread:$0]  %s8, 16, %s565, [#allocation15]
        $region36: #{tpu_custom_call.1} parent=11 // pred_fallthru
          _
        // Predicated region
        $region37: #{tpu_custom_call.1} parent=11 // pred_check
          %p568 = pneg %p266
        $region38: #{tpu_custom_call.1} parent=11 // pred_check_branch
          %570 = sbr.rel (%p568) target = $region40
        $region39: #{tpu_custom_call.1} parent=11 // pred_region
          _
        $region40: #{tpu_custom_call.1} parent=11 // pred_fallthru
          _
        // Predicated region
        $region41: #{tpu_custom_call.1} parent=11 // pred_check
          %p571 = pneg %p287
        $region42: #{tpu_custom_call.1} parent=11 // pred_check_branch
          %573 = sbr.rel (%p571) target = $region44
        $region43: #{tpu_custom_call.1} parent=11 // pred_region
          %s575 = ssub.s32 16, 16
          %576 = vsyncadd [#allocation18], %s575
          %s578 = sshll.u32 [#allocation17], 4
          %s579 = int_to_ptr.vmem [resolvable:$true] %s578
          %581 = dma.hbm_to_vmem [thread:$0]  %s10, 16, %s579, [#allocation18]
        $region44: #{tpu_custom_call.1} parent=11 // pred_fallthru
          _
        // Predicated region
        $region45: #{tpu_custom_call.1} parent=11 // pred_check
          %p582 = pneg %p308
        $region46: #{tpu_custom_call.1} parent=11 // pred_check_branch
          %584 = sbr.rel (%p582) target = $region48
        $region47: #{tpu_custom_call.1} parent=11 // pred_region
          %s586 = ssub.s32 512, 512
          %587 = vsyncadd [#allocation18], %s586
          %s588 = sshll.u32 [#allocation19], 4
          %s589 = int_to_ptr.vmem [resolvable:$true] %s588
          %594 = dma.hbm_to_vmem [thread:$0]  %s11, 512, %s589, [#allocation18], 128, 128, 8
        $region48: #{tpu_custom_call.1} parent=11 // pred_fallthru
          _
        // Predicated region
        $region49: #{tpu_custom_call.1} parent=11 // pred_check
          %p595 = pneg %p329
        $region50: #{tpu_custom_call.1} parent=11 // pred_check_branch
          %597 = sbr.rel (%p595) target = $region52
        $region51: #{tpu_custom_call.1} parent=11 // pred_region
          %s599 = ssub.s32 16, 16
          %600 = vsyncadd [#allocation21], %s599
          %s602 = sshll.u32 [#allocation20], 4
          %s603 = int_to_ptr.vmem [resolvable:$true] %s602
          %605 = dma.hbm_to_vmem [thread:$0]  %s12, 16, %s603, [#allocation21]
        $region52: #{tpu_custom_call.1} parent=11 // pred_fallthru
          _
        // Predicated region
        $region53: #{tpu_custom_call.1} parent=11 // pred_check
          %p606 = pneg %p350
        $region54: #{tpu_custom_call.1} parent=11 // pred_check_branch
          %608 = sbr.rel (%p606) target = $region56
        $region55: #{tpu_custom_call.1} parent=11 // pred_region
          %s610 = ssub.s32 16, 16
          %611 = vsyncadd [#allocation21], %s610
          %s613 = sshll.u32 [#allocation22], 4
          %s614 = int_to_ptr.vmem [resolvable:$true] %s613
          %616 = dma.hbm_to_vmem [thread:$0]  %s13, 16, %s614, [#allocation21]
        $region56: #{tpu_custom_call.1} parent=11 // pred_fallthru
          _
        // Predicated region
        $region57: #{tpu_custom_call.1} parent=11 // pred_check
          %p617 = pneg %p371
        $region58: #{tpu_custom_call.1} parent=11 // pred_check_branch
          %619 = sbr.rel (%p617) target = $region60
        $region59: #{tpu_custom_call.1} parent=11 // pred_region
          %s621 = ssub.s32 16, 16
          %622 = vsyncadd [#allocation24], %s621
          %s624 = sshll.u32 [#allocation23], 4
          %s625 = int_to_ptr.vmem [resolvable:$true] %s624
          %627 = dma.hbm_to_vmem [thread:$0]  %s14, 16, %s625, [#allocation24]
        $region60: #{tpu_custom_call.1} parent=11 // pred_fallthru
          _
        // Predicated region
        $region61: #{tpu_custom_call.1} parent=11 // pred_check
          %p628 = pneg %p392
        $region62: #{tpu_custom_call.1} parent=11 // pred_check_branch
          %630 = sbr.rel (%p628) target = $region64
        $region63: #{tpu_custom_call.1} parent=11 // pred_region
          %s632 = ssub.s32 512, 512
          %633 = vsyncadd [#allocation24], %s632
          %s634 = sshll.u32 [#allocation25], 4
          %s635 = int_to_ptr.vmem [resolvable:$true] %s634
          %640 = dma.hbm_to_vmem [thread:$0]  %s15, 512, %s635, [#allocation24], 128, 128, 8
        $region64: #{tpu_custom_call.1} parent=11 // pred_fallthru
          _
        // Predicated region
        $region65: #{tpu_custom_call.1} parent=11 // pred_check
          %p641 = pneg %p413
        $region66: #{tpu_custom_call.1} parent=11 // pred_check_branch
          %643 = sbr.rel (%p641) target = $region68
        $region67: #{tpu_custom_call.1} parent=11 // pred_region
          %s645 = ssub.s32 16, 16
          %646 = vsyncadd [#allocation27], %s645
          %s648 = sshll.u32 [#allocation26], 4
          %s649 = int_to_ptr.vmem [resolvable:$true] %s648
          %651 = dma.hbm_to_vmem [thread:$0]  %s16, 16, %s649, [#allocation27]
        $region68: #{tpu_custom_call.1} parent=11 // pred_fallthru
          _
        // Predicated region
        $region69: #{tpu_custom_call.1} parent=11 // pred_check
          %p652 = pneg %p434
        $region70: #{tpu_custom_call.1} parent=11 // pred_check_branch
          %654 = sbr.rel (%p652) target = $region72
        $region71: #{tpu_custom_call.1} parent=11 // pred_region
          _
        $region72: #{tpu_custom_call.1} parent=11 // pred_fallthru
          _
        // Predicated region
        $region73: #{tpu_custom_call.1} parent=11 // pred_check
          %p655 = pneg %p455
        $region74: #{tpu_custom_call.1} parent=11 // pred_check_branch
          %657 = sbr.rel (%p655) target = $region76
        $region75: #{tpu_custom_call.1} parent=11 // pred_region
          _
        $region76: #{tpu_custom_call.1} parent=11 // pred_fallthru
          _
      $region12: #{tpu_custom_call.1} parent=5 // pred_fallthru
        _
      %p658 = scmp.lt.s32.totalorder %s41, 2
      // Predicated region
      $region77: #{tpu_custom_call.1} parent=5 // pred_check
        %p659 = pneg %p658
      $region78: #{tpu_custom_call.1} parent=5 // pred_check_branch
        %661 = sbr.rel (%p659) target = $region80
      $region79: #{tpu_custom_call.1} parent=5 // pred_region
        // Predicated region
        $region81: #{tpu_custom_call.1} parent=79 // pred_check
          %p662 = pneg %p61
        $region82: #{tpu_custom_call.1} parent=79 // pred_check_branch
          %664 = sbr.rel (%p662) target = $region84
        $region83: #{tpu_custom_call.1} parent=79 // pred_region
          %s665 = sand.u32 %s51, 1
          %s666 = scalar_lea.sflag [#allocation3], %s665
          %s667 = sand.u32 %s51, 1
          %s668 = smul.addr %s667, 8
          %s669 = scalar_lea.vmem [#allocation2], %s668
          %s671 = ssub.s32 128, 128
          %672 = vsyncadd %s666, %s671
          %s673 = smul.addr %s41, 128
          %s674 = scalar_lea.hbm %s0, %s673
          %s676 = sshll.u32 %s669, 4
          %s677 = int_to_ptr.vmem [resolvable:$true] %s676
          %679 = dma.hbm_to_vmem [thread:$0]  %s674, 128, %s677, %s666
        $region84: #{tpu_custom_call.1} parent=79 // pred_fallthru
          _
        // Predicated region
        $region85: #{tpu_custom_call.1} parent=79 // pred_check
          %p680 = pneg %p87
        $region86: #{tpu_custom_call.1} parent=79 // pred_check_branch
          %682 = sbr.rel (%p680) target = $region88
        $region87: #{tpu_custom_call.1} parent=79 // pred_region
          %s683 = sand.u32 %s41, 1
          %s684 = scalar_lea.sflag [#allocation6], %s683
          %s685 = sand.u32 %s77, 1
          %s686 = smul.addr %s685, 8
          %s687 = scalar_lea.vmem [#allocation5], %s686
          %s689 = ssub.s32 128, 128
          %690 = vsyncadd %s684, %s689
          %s691 = smul.addr %s41, 128
          %s692 = scalar_lea.hbm %s1, %s691
          %s694 = sshll.u32 %s687, 4
          %s695 = int_to_ptr.vmem [resolvable:$true] %s694
          %697 = dma.hbm_to_vmem [thread:$0]  %s692, 128, %s695, %s684
        $region88: #{tpu_custom_call.1} parent=79 // pred_fallthru
          _
        // Predicated region
        $region89: #{tpu_custom_call.1} parent=79 // pred_check
          %p698 = pneg %p113
        $region90: #{tpu_custom_call.1} parent=79 // pred_check_branch
          %700 = sbr.rel (%p698) target = $region92
        $region91: #{tpu_custom_call.1} parent=79 // pred_region
          %s701 = sand.u32 %s41, 1
          %s702 = scalar_lea.sflag [#allocation6], %s701
          %s703 = sand.u32 %s103, 1
          %s704 = smul.addr %s703, 8
          %s705 = scalar_lea.vmem [#allocation7], %s704
          %s707 = ssub.s32 128, 128
          %708 = vsyncadd %s702, %s707
          %s709 = smul.addr %s41, 128
          %s710 = scalar_lea.hbm %s2, %s709
          %s712 = sshll.u32 %s705, 4
          %s713 = int_to_ptr.vmem [resolvable:$true] %s712
          %715 = dma.hbm_to_vmem [thread:$0]  %s710, 128, %s713, %s702
        $region92: #{tpu_custom_call.1} parent=79 // pred_fallthru
          _
      $region80: #{tpu_custom_call.1} parent=5 // pred_fallthru
        _
      %p716 = scmp.le.s32.totalorder 1, %s41
      %p717 = scmp.lt.s32.totalorder %s41, 3
      %p718 = pnand %p716, %p717
      %p719 = pneg %p718
      // Predicated region
      $region93: #{tpu_custom_call.1} parent=5 // pred_check
        _
      $region94: #{tpu_custom_call.1} parent=5 // pred_check_branch
        %721 = sbr.rel (%p718) target = $region96
      $region95: #{tpu_custom_call.1} parent=5 // pred_region
        %s722 = ssub.s32 %s41, 1
        %s723 = sand.u32 %s54, 1
        %s724 = scalar_lea.sflag [#allocation3], %s723
        %s725 = sand.u32 %s54, 1
        %s726 = smul.addr %s725, 8
        %s727 = scalar_lea.vmem [#allocation2], %s726
        // Predicated region
        $region97: #{tpu_custom_call.1} parent=95 // pred_check
          %p728 = pneg %p67
        $region98: #{tpu_custom_call.1} parent=95 // pred_check_branch
          %730 = sbr.rel (%p728) target = $region100
        $region99: #{tpu_custom_call.1} parent=95 // pred_region
          %731 = dma.done %s724, 128
        $region100: #{tpu_custom_call.1} parent=95 // pred_fallthru
          _
        %s732 = sand.u32 %s46, 1
        %s733 = scalar_lea.sflag [#allocation6], %s732
        %s734 = sand.u32 %s80, 1
        %s735 = smul.addr %s734, 8
        %s736 = scalar_lea.vmem [#allocation5], %s735
        // Predicated region
        $region101: #{tpu_custom_call.1} parent=95 // pred_check
          %p737 = pneg %p93
        $region102: #{tpu_custom_call.1} parent=95 // pred_check_branch
          %739 = sbr.rel (%p737) target = $region104
        $region103: #{tpu_custom_call.1} parent=95 // pred_region
          %740 = dma.done %s733, 128
        $region104: #{tpu_custom_call.1} parent=95 // pred_fallthru
          _
        %s741 = sand.u32 %s46, 1
        %s742 = scalar_lea.sflag [#allocation6], %s741
        %s743 = sand.u32 %s106, 1
        %s744 = smul.addr %s743, 8
        %s745 = scalar_lea.vmem [#allocation7], %s744
        // Predicated region
        $region105: #{tpu_custom_call.1} parent=95 // pred_check
          %p746 = pneg %p119
        $region106: #{tpu_custom_call.1} parent=95 // pred_check_branch
          %748 = sbr.rel (%p746) target = $region108
        $region107: #{tpu_custom_call.1} parent=95 // pred_region
          %749 = dma.done %s742, 128
        $region108: #{tpu_custom_call.1} parent=95 // pred_fallthru
          _
        // Predicated region
        $region109: #{tpu_custom_call.1} parent=95 // pred_check
          %p750 = pneg %p140
        $region110: #{tpu_custom_call.1} parent=95 // pred_check_branch
          %752 = sbr.rel (%p750) target = $region112
        $region111: #{tpu_custom_call.1} parent=95 // pred_region
          %753 = dma.done [#allocation9], 512
        $region112: #{tpu_custom_call.1} parent=95 // pred_fallthru
          _
        // Predicated region
        $region113: #{tpu_custom_call.1} parent=95 // pred_check
          %p754 = pneg %p161
        $region114: #{tpu_custom_call.1} parent=95 // pred_check_branch
          %756 = sbr.rel (%p754) target = $region116
        $region115: #{tpu_custom_call.1} parent=95 // pred_region
          %757 = dma.done [#allocation9], 16
        $region116: #{tpu_custom_call.1} parent=95 // pred_fallthru
          _
        // Predicated region
        $region117: #{tpu_custom_call.1} parent=95 // pred_check
          %p758 = pneg %p182
        $region118: #{tpu_custom_call.1} parent=95 // pred_check_branch
          %760 = sbr.rel (%p758) target = $region120
        $region119: #{tpu_custom_call.1} parent=95 // pred_region
          %761 = dma.done [#allocation12], 512
        $region120: #{tpu_custom_call.1} parent=95 // pred_fallthru
          _
        // Predicated region
        $region121: #{tpu_custom_call.1} parent=95 // pred_check
          %p762 = pneg %p203
        $region122: #{tpu_custom_call.1} parent=95 // pred_check_branch
          %764 = sbr.rel (%p762) target = $region124
        $region123: #{tpu_custom_call.1} parent=95 // pred_region
          %765 = dma.done [#allocation12], 16
        $region124: #{tpu_custom_call.1} parent=95 // pred_fallthru
          _
        // Predicated region
        $region125: #{tpu_custom_call.1} parent=95 // pred_check
          %p766 = pneg %p224
        $region126: #{tpu_custom_call.1} parent=95 // pred_check_branch
          %768 = sbr.rel (%p766) target = $region128
        $region127: #{tpu_custom_call.1} parent=95 // pred_region
          %769 = dma.done [#allocation15], 512
        $region128: #{tpu_custom_call.1} parent=95 // pred_fallthru
          _
        // Predicated region
        $region129: #{tpu_custom_call.1} parent=95 // pred_check
          %p770 = pneg %p245
        $region130: #{tpu_custom_call.1} parent=95 // pred_check_branch
          %772 = sbr.rel (%p770) target = $region132
        $region131: #{tpu_custom_call.1} parent=95 // pred_region
          %773 = dma.done [#allocation15], 16
        $region132: #{tpu_custom_call.1} parent=95 // pred_fallthru
          _
        // Predicated region
        $region133: #{tpu_custom_call.1} parent=95 // pred_check
          %p774 = pneg %p287
        $region134: #{tpu_custom_call.1} parent=95 // pred_check_branch
          %776 = sbr.rel (%p774) target = $region136
        $region135: #{tpu_custom_call.1} parent=95 // pred_region
          %777 = dma.done [#allocation18], 16
        $region136: #{tpu_custom_call.1} parent=95 // pred_fallthru
          _
        // Predicated region
        $region137: #{tpu_custom_call.1} parent=95 // pred_check
          %p778 = pneg %p308
        $region138: #{tpu_custom_call.1} parent=95 // pred_check_branch
          %780 = sbr.rel (%p778) target = $region140
        $region139: #{tpu_custom_call.1} parent=95 // pred_region
          %781 = dma.done [#allocation18], 512
        $region140: #{tpu_custom_call.1} parent=95 // pred_fallthru
          _
        // Predicated region
        $region141: #{tpu_custom_call.1} parent=95 // pred_check
          %p782 = pneg %p329
        $region142: #{tpu_custom_call.1} parent=95 // pred_check_branch
          %784 = sbr.rel (%p782) target = $region144
        $region143: #{tpu_custom_call.1} parent=95 // pred_region
          %785 = dma.done [#allocation21], 16
        $region144: #{tpu_custom_call.1} parent=95 // pred_fallthru
          _
        // Predicated region
        $region145: #{tpu_custom_call.1} parent=95 // pred_check
          %p786 = pneg %p350
        $region146: #{tpu_custom_call.1} parent=95 // pred_check_branch
          %788 = sbr.rel (%p786) target = $region148
        $region147: #{tpu_custom_call.1} parent=95 // pred_region
          %789 = dma.done [#allocation21], 16
        $region148: #{tpu_custom_call.1} parent=95 // pred_fallthru
          _
        // Predicated region
        $region149: #{tpu_custom_call.1} parent=95 // pred_check
          %p790 = pneg %p371
        $region150: #{tpu_custom_call.1} parent=95 // pred_check_branch
          %792 = sbr.rel (%p790) target = $region152
        $region151: #{tpu_custom_call.1} parent=95 // pred_region
          %793 = dma.done [#allocation24], 16
        $region152: #{tpu_custom_call.1} parent=95 // pred_fallthru
          _
        // Predicated region
        $region153: #{tpu_custom_call.1} parent=95 // pred_check
          %p794 = pneg %p392
        $region154: #{tpu_custom_call.1} parent=95 // pred_check_branch
          %796 = sbr.rel (%p794) target = $region156
        $region155: #{tpu_custom_call.1} parent=95 // pred_region
          %797 = dma.done [#allocation24], 512
        $region156: #{tpu_custom_call.1} parent=95 // pred_fallthru
          _
        // Predicated region
        $region157: #{tpu_custom_call.1} parent=95 // pred_check
          %p798 = pneg %p413
        $region158: #{tpu_custom_call.1} parent=95 // pred_check_branch
          %800 = sbr.rel (%p798) target = $region160
        $region159: #{tpu_custom_call.1} parent=95 // pred_region
          %801 = dma.done [#allocation27], 16
        $region160: #{tpu_custom_call.1} parent=95 // pred_fallthru
          _
        %s802 = sand.u32 %s54, 1
        %s803 = scalar_lea.sflag [#allocation3], %s802
        %s804 = sand.u32 %s54, 1
        %s805 = smul.addr %s804, 8
        %s806 = scalar_lea.vmem [#allocation2], %s805
        %p807 = pneg %p67
        %p808 = pneg %p64
        %s809 = sand.u32 %s46, 1
        %s810 = scalar_lea.sflag [#allocation6], %s809
        %s811 = sand.u32 %s80, 1
        %s812 = smul.addr %s811, 8
        %s813 = scalar_lea.vmem [#allocation5], %s812
        %p814 = pneg %p93
        %p815 = pneg %p90
        %s816 = sand.u32 %s46, 1
        %s817 = scalar_lea.sflag [#allocation6], %s816
        %s818 = sand.u32 %s106, 1
        %s819 = smul.addr %s818, 8
        %s820 = scalar_lea.vmem [#allocation7], %s819
        %p821 = pneg %p119
        %p822 = pneg %p116
        %p823 = pneg %p140
        %p824 = pneg %p137
        %p825 = pneg %p161
        %p826 = pneg %p158
        %p827 = pneg %p182
        %p828 = pneg %p179
        %p829 = pneg %p203
        %p830 = pneg %p200
        %p831 = pneg %p224
        %p832 = pneg %p221
        %p833 = pneg %p245
        %p834 = pneg %p242
        %p835 = pneg %p266
        %p836 = pneg %p263
        %p837 = pneg %p287
        %p838 = pneg %p284
        %p839 = pneg %p308
        %p840 = pneg %p305
        %p841 = pneg %p329
        %p842 = pneg %p326
        %p843 = pneg %p350
        %p844 = pneg %p347
        %p845 = pneg %p371
        %p846 = pneg %p368
        %p847 = pneg %p392
        %p848 = pneg %p389
        %p849 = pneg %p413
        %p850 = pneg %p410
        %p851 = pneg %p434
        %p852 = pneg %p431
        %p853 = pneg %p455
        %p854 = pneg %p452
        %p855 = pneg %p481
        %p856 = pneg %p478
        %s857 = sand.u32 %s468, 1
        %s858 = scalar_lea.sflag [#allocation4], %s857
        %s859 = sand.u32 %s468, 1
        %s860 = smul.addr %s859, 8
        %s861 = scalar_lea.vmem [#allocation28], %s860
        %v862 = vld [vmem:[%s727] sm:$0xff]
        %v863 = vld [vmem:[%s736] sm:$0xff]
        %v864 = vld [vmem:[%s745] sm:$0xff]
        %v865 = vld [vmem:[#allocation8] sm:$0xff]
        %v866 = vld [vmem:[#allocation8 + $0x8] sm:$0xff]
        %v867 = vld [vmem:[#allocation8 + $0x10] sm:$0xff]
        %v868 = vld [vmem:[#allocation8 + $0x18] sm:$0xff]
        %v869 = vld [vmem:[#allocation10] sm:$0x1]
        %v871 = vlaneseq
        %v872 = vshrl.u32 %v871, 7
        %v873 = vsub.s32 0, %v872
        %v874 = vrot.slane %v869, %v873
        %vm876 = vcmask 261120
        %v878 = vsel %vm876, %v862, 0
        %880 = vmatprep.subr.mxu0 0.0
        %881 = vmatpush1.msra.mxu0 %v865
        %882 = vmatprep.subr.mxu0 0.0
        %883 = vmatpush1.msra.mxu0 %v866
        %884 = vmatprep.subr.mxu0 0.0
        %885 = vmatpush1.msra.mxu0 %v867
        %886 = vmatprep.subr.mxu0 0.0
        %887 = vmatpush1.msra.mxu0 %v868
        %888 = vmatprep.subr.mxu0 0.0
        %889 = vmatpush1.msra.mxu0 0.0
        %890 = vmatprep.subr.mxu0 0.0
        %891 = vmatpush1.msra.mxu0 0.0
        %892 = vmatprep.subr.mxu0 0.0
        %893 = vmatpush1.msra.mxu0 0.0
        %894 = vmatprep.subr.mxu0 0.0
        %895 = vmatpush1.msra.mxu0 0.0
        %896 = vmatprep.subr.mxu0 0.0
        %897 = vmatpush1.msra.mxu0 0.0
        %898 = vmatprep.subr.mxu0 0.0
        %899 = vmatpush1.msra.mxu0 0.0
        %900 = vmatprep.subr.mxu0 0.0
        %901 = vmatpush1.msra.mxu0 0.0
        %902 = vmatprep.subr.mxu0 0.0
        %903 = vmatpush1.msra.mxu0 0.0
        %904 = vmatprep.subr.mxu0 0.0
        %905 = vmatpush1.msra.mxu0 0.0
        %906 = vmatprep.subr.mxu0 0.0
        %907 = vmatpush1.msra.mxu0 0.0
        %908 = vmatprep.subr.mxu0 0.0
        %909 = vmatpush1.msra.mxu0 0.0
        %910 = vmatprep.subr.mxu0 0.0
        %911 = vmatpush1.msra.mxu0 0.0
        %912 = vmatprep.subr.mxu0 0.0
        %913 = vmatpush1.msra.mxu0 0.0
        %914 = vmatprep.subr.mxu0 0.0
        %915 = vmatpush1.msra.mxu0 0.0
        %916 = vmatprep.subr.mxu0 0.0
        %917 = vmatpush1.msra.mxu0 0.0
        %918 = vmatprep.subr.mxu0 0.0
        %919 = vmatpush1.msra.mxu0 0.0
        %920 = vmatprep.subr.mxu0 0.0
        %921 = vmatpush1.msra.mxu0 0.0
        %922 = vmatprep.subr.mxu0 0.0
        %923 = vmatpush1.msra.mxu0 0.0
        %924 = vmatprep.subr.mxu0 0.0
        %925 = vmatpush1.msra.mxu0 0.0
        %926 = vmatprep.subr.mxu0 0.0
        %927 = vmatpush1.msra.mxu0 0.0
        %928 = vmatprep.subr.mxu0 0.0
        %929 = vmatpush1.msra.mxu0 0.0
        %930 = vmatprep.subr.mxu0 0.0
        %931 = vmatpush1.msra.mxu0 0.0
        %932 = vmatprep.subr.mxu0 0.0
        %933 = vmatpush1.msra.mxu0 0.0
        %934 = vmatprep.subr.mxu0 0.0
        %935 = vmatpush1.msra.mxu0 0.0
        %936 = vmatprep.subr.mxu0 0.0
        %937 = vmatpush1.msra.mxu0 0.0
        %938 = vmatprep.subr.mxu0 0.0
        %939 = vmatpush1.msra.mxu0 0.0
        %940 = vmatprep.subr.mxu0 0.0
        %941 = vmatpush1.msra.mxu0 0.0
        %942 = vmatprep.subr.mxu0 0.0
        %943 = vmatpush1.msra.mxu0 0.0
        %944 = vmatprep.mubr.f32.mxu0 0.0
        %945 = vmatmul.mubr.f32.gmra.mrb[0].mxu0 %v878
        %v946 = vpop.f32.mrb[0].mxu0
        %v947 = vadd.f32 %v874, %v946
        %v948 = vpop.f32.mrb[0].mxu0
        %949 = vdwg.mxu0
        %v950 = vld [vmem:[#allocation11] sm:$0xff]
        %v951 = vld [vmem:[#allocation11 + $0x8] sm:$0xff]
        %v952 = vld [vmem:[#allocation11 + $0x10] sm:$0xff]
        %v953 = vld [vmem:[#allocation11 + $0x18] sm:$0xff]
        %v954 = vld [vmem:[#allocation13] sm:$0x1]
        %v956 = vlaneseq
        %v957 = vshrl.u32 %v956, 7
        %v958 = vsub.s32 0, %v957
        %v959 = vrot.slane %v954, %v958
        %v962 = vsel %vm876, %v863, 0
        %964 = vmatprep.subr.mxu0 0.0
        %965 = vmatpush1.msra.mxu0 %v950
        %966 = vmatprep.subr.mxu0 0.0
        %967 = vmatpush1.msra.mxu0 %v951
        %968 = vmatprep.subr.mxu0 0.0
        %969 = vmatpush1.msra.mxu0 %v952
        %970 = vmatprep.subr.mxu0 0.0
        %971 = vmatpush1.msra.mxu0 %v953
        %972 = vmatprep.subr.mxu0 0.0
        %973 = vmatpush1.msra.mxu0 0.0
        %974 = vmatprep.subr.mxu0 0.0
        %975 = vmatpush1.msra.mxu0 0.0
        %976 = vmatprep.subr.mxu0 0.0
        %977 = vmatpush1.msra.mxu0 0.0
        %978 = vmatprep.subr.mxu0 0.0
        %979 = vmatpush1.msra.mxu0 0.0
        %980 = vmatprep.subr.mxu0 0.0
        %981 = vmatpush1.msra.mxu0 0.0
        %982 = vmatprep.subr.mxu0 0.0
        %983 = vmatpush1.msra.mxu0 0.0
        %984 = vmatprep.subr.mxu0 0.0
        %985 = vmatpush1.msra.mxu0 0.0
        %986 = vmatprep.subr.mxu0 0.0
        %987 = vmatpush1.msra.mxu0 0.0
        %988 = vmatprep.subr.mxu0 0.0
        %989 = vmatpush1.msra.mxu0 0.0
        %990 = vmatprep.subr.mxu0 0.0
        %991 = vmatpush1.msra.mxu0 0.0
        %992 = vmatprep.subr.mxu0 0.0
        %993 = vmatpush1.msra.mxu0 0.0
        %994 = vmatprep.subr.mxu0 0.0
        %995 = vmatpush1.msra.mxu0 0.0
        %996 = vmatprep.subr.mxu0 0.0
        %997 = vmatpush1.msra.mxu0 0.0
        %998 = vmatprep.subr.mxu0 0.0
        %999 = vmatpush1.msra.mxu0 0.0
        %1000 = vmatprep.subr.mxu0 0.0
        %1001 = vmatpush1.msra.mxu0 0.0
        %1002 = vmatprep.subr.mxu0 0.0
        %1003 = vmatpush1.msra.mxu0 0.0
        %1004 = vmatprep.subr.mxu0 0.0
        %1005 = vmatpush1.msra.mxu0 0.0
        %1006 = vmatprep.subr.mxu0 0.0
        %1007 = vmatpush1.msra.mxu0 0.0
        %1008 = vmatprep.subr.mxu0 0.0
        %1009 = vmatpush1.msra.mxu0 0.0
        %1010 = vmatprep.subr.mxu0 0.0
        %1011 = vmatpush1.msra.mxu0 0.0
        %1012 = vmatprep.subr.mxu0 0.0
        %1013 = vmatpush1.msra.mxu0 0.0
        %1014 = vmatprep.subr.mxu0 0.0
        %1015 = vmatpush1.msra.mxu0 0.0
        %1016 = vmatprep.subr.mxu0 0.0
        %1017 = vmatpush1.msra.mxu0 0.0
        %1018 = vmatprep.subr.mxu0 0.0
        %1019 = vmatpush1.msra.mxu0 0.0
        %1020 = vmatprep.subr.mxu0 0.0
        %1021 = vmatpush1.msra.mxu0 0.0
        %1022 = vmatprep.subr.mxu0 0.0
        %1023 = vmatpush1.msra.mxu0 0.0
        %1024 = vmatprep.subr.mxu0 0.0
        %1025 = vmatpush1.msra.mxu0 0.0
        %1026 = vmatprep.subr.mxu0 0.0
        %1027 = vmatpush1.msra.mxu0 0.0
        %1028 = vmatprep.mubr.f32.mxu0 0.0
        %1029 = vmatmul.mubr.f32.gmra.mrb[0].mxu0 %v962
        %v1030 = vpop.f32.mrb[0].mxu0
        %v1031 = vadd.f32 %v959, %v1030
        %v1032 = vpop.f32.mrb[0].mxu0
        %1033 = vdwg.mxu0
        %v1034 = vld [vmem:[#allocation14] sm:$0xff]
        %v1035 = vld [vmem:[#allocation14 + $0x8] sm:$0xff]
        %v1036 = vld [vmem:[#allocation14 + $0x10] sm:$0xff]
        %v1037 = vld [vmem:[#allocation14 + $0x18] sm:$0xff]
        %v1038 = vld [vmem:[#allocation16] sm:$0x1]
        %v1040 = vlaneseq
        %v1041 = vshrl.u32 %v1040, 7
        %v1042 = vsub.s32 0, %v1041
        %v1043 = vrot.slane %v1038, %v1042
        %v1046 = vsel %vm876, %v864, 0
        %1048 = vmatprep.subr.mxu0 0.0
        %1049 = vmatpush1.msra.mxu0 %v1034
        %1050 = vmatprep.subr.mxu0 0.0
        %1051 = vmatpush1.msra.mxu0 %v1035
        %1052 = vmatprep.subr.mxu0 0.0
        %1053 = vmatpush1.msra.mxu0 %v1036
        %1054 = vmatprep.subr.mxu0 0.0
        %1055 = vmatpush1.msra.mxu0 %v1037
        %1056 = vmatprep.subr.mxu0 0.0
        %1057 = vmatpush1.msra.mxu0 0.0
        %1058 = vmatprep.subr.mxu0 0.0
        %1059 = vmatpush1.msra.mxu0 0.0
        %1060 = vmatprep.subr.mxu0 0.0
        %1061 = vmatpush1.msra.mxu0 0.0
        %1062 = vmatprep.subr.mxu0 0.0
        %1063 = vmatpush1.msra.mxu0 0.0
        %1064 = vmatprep.subr.mxu0 0.0
        %1065 = vmatpush1.msra.mxu0 0.0
        %1066 = vmatprep.subr.mxu0 0.0
        %1067 = vmatpush1.msra.mxu0 0.0
        %1068 = vmatprep.subr.mxu0 0.0
        %1069 = vmatpush1.msra.mxu0 0.0
        %1070 = vmatprep.subr.mxu0 0.0
        %1071 = vmatpush1.msra.mxu0 0.0
        %1072 = vmatprep.subr.mxu0 0.0
        %1073 = vmatpush1.msra.mxu0 0.0
        %1074 = vmatprep.subr.mxu0 0.0
        %1075 = vmatpush1.msra.mxu0 0.0
        %1076 = vmatprep.subr.mxu0 0.0
        %1077 = vmatpush1.msra.mxu0 0.0
        %1078 = vmatprep.subr.mxu0 0.0
        %1079 = vmatpush1.msra.mxu0 0.0
        %1080 = vmatprep.subr.mxu0 0.0
        %1081 = vmatpush1.msra.mxu0 0.0
        %1082 = vmatprep.subr.mxu0 0.0
        %1083 = vmatpush1.msra.mxu0 0.0
        %1084 = vmatprep.subr.mxu0 0.0
        %1085 = vmatpush1.msra.mxu0 0.0
        %1086 = vmatprep.subr.mxu0 0.0
        %1087 = vmatpush1.msra.mxu0 0.0
        %1088 = vmatprep.subr.mxu0 0.0
        %1089 = vmatpush1.msra.mxu0 0.0
        %1090 = vmatprep.subr.mxu0 0.0
        %1091 = vmatpush1.msra.mxu0 0.0
        %1092 = vmatprep.subr.mxu0 0.0
        %1093 = vmatpush1.msra.mxu0 0.0
        %1094 = vmatprep.subr.mxu0 0.0
        %1095 = vmatpush1.msra.mxu0 0.0
        %1096 = vmatprep.subr.mxu0 0.0
        %1097 = vmatpush1.msra.mxu0 0.0
        %1098 = vmatprep.subr.mxu0 0.0
        %1099 = vmatpush1.msra.mxu0 0.0
        %1100 = vmatprep.subr.mxu0 0.0
        %1101 = vmatpush1.msra.mxu0 0.0
        %1102 = vmatprep.subr.mxu0 0.0
        %1103 = vmatpush1.msra.mxu0 0.0
        %1104 = vmatprep.subr.mxu0 0.0
        %1105 = vmatpush1.msra.mxu0 0.0
        %1106 = vmatprep.subr.mxu0 0.0
        %1107 = vmatpush1.msra.mxu0 0.0
        %1108 = vmatprep.subr.mxu0 0.0
        %1109 = vmatpush1.msra.mxu0 0.0
        %1110 = vmatprep.subr.mxu0 0.0
        %1111 = vmatpush1.msra.mxu0 0.0
        %1112 = vmatprep.mubr.f32.mxu0 0.0
        %1113 = vmatmul.mubr.f32.gmra.mrb[0].mxu0 %v1046
        %v1114 = vpop.f32.mrb[0].mxu0
        %v1115 = vadd.f32 %v1043, %v1114
        %v1116 = vpop.f32.mrb[0].mxu0
        %1117 = vdwg.mxu0
        %vm1118 = vcmask 64512
        %v1120 = vsel %vm1118, %v947, 0
        %v1123 = vsel %vm1118, %v1031, 0
        %1125 = vmatprep.subr.mxu0 0.0
        %1126 = vmatpush1.xpose.msra.mxu0 %v1123
        %1127 = vmatprep.subr.mxu0 0.0
        %1128 = vmatpush1.xpose.msra.mxu0 0.0
        %1129 = vmatprep.subr.mxu0 0.0
        %1130 = vmatpush1.xpose.msra.mxu0 0.0
        %1131 = vmatprep.subr.mxu0 0.0
        %1132 = vmatpush1.xpose.msra.mxu0 0.0
        %1133 = vmatprep.subr.mxu0 0.0
        %1134 = vmatpush1.xpose.msra.mxu0 0.0
        %1135 = vmatprep.subr.mxu0 0.0
        %1136 = vmatpush1.xpose.msra.mxu0 0.0
        %1137 = vmatprep.subr.mxu0 0.0
        %1138 = vmatpush1.xpose.msra.mxu0 0.0
        %1139 = vmatprep.subr.mxu0 0.0
        %1140 = vmatpush1.xpose.msra.mxu0 0.0
        %1141 = vmatprep.subr.mxu0 0.0
        %1142 = vmatpush1.xpose.msra.mxu0 0.0
        %1143 = vmatprep.subr.mxu0 0.0
        %1144 = vmatpush1.xpose.msra.mxu0 0.0
        %1145 = vmatprep.subr.mxu0 0.0
        %1146 = vmatpush1.xpose.msra.mxu0 0.0
        %1147 = vmatprep.subr.mxu0 0.0
        %1148 = vmatpush1.xpose.msra.mxu0 0.0
        %1149 = vmatprep.subr.mxu0 0.0
        %1150 = vmatpush1.xpose.msra.mxu0 0.0
        %1151 = vmatprep.subr.mxu0 0.0
        %1152 = vmatpush1.xpose.msra.mxu0 0.0
        %1153 = vmatprep.subr.mxu0 0.0
        %1154 = vmatpush1.xpose.msra.mxu0 0.0
        %1155 = vmatprep.subr.mxu0 0.0
        %1156 = vmatpush1.xpose.msra.mxu0 0.0
        %1157 = vmatprep.subr.mxu0 0.0
        %1158 = vmatpush1.xpose.msra.mxu0 0.0
        %1159 = vmatprep.subr.mxu0 0.0
        %1160 = vmatpush1.xpose.msra.mxu0 0.0
        %1161 = vmatprep.subr.mxu0 0.0
        %1162 = vmatpush1.xpose.msra.mxu0 0.0
        %1163 = vmatprep.subr.mxu0 0.0
        %1164 = vmatpush1.xpose.msra.mxu0 0.0
        %1165 = vmatprep.subr.mxu0 0.0
        %1166 = vmatpush1.xpose.msra.mxu0 0.0
        %1167 = vmatprep.subr.mxu0 0.0
        %1168 = vmatpush1.xpose.msra.mxu0 0.0
        %1169 = vmatprep.subr.mxu0 0.0
        %1170 = vmatpush1.xpose.msra.mxu0 0.0
        %1171 = vmatprep.subr.mxu0 0.0
        %1172 = vmatpush1.xpose.msra.mxu0 0.0
        %1173 = vmatprep.subr.mxu0 0.0
        %1174 = vmatpush1.xpose.msra.mxu0 0.0
        %1175 = vmatprep.subr.mxu0 0.0
        %1176 = vmatpush1.xpose.msra.mxu0 0.0
        %1177 = vmatprep.subr.mxu0 0.0
        %1178 = vmatpush1.xpose.msra.mxu0 0.0
        %1179 = vmatprep.subr.mxu0 0.0
        %1180 = vmatpush1.xpose.msra.mxu0 0.0
        %1181 = vmatprep.subr.mxu0 0.0
        %1182 = vmatpush1.xpose.msra.mxu0 0.0
        %1183 = vmatprep.subr.mxu0 0.0
        %1184 = vmatpush1.xpose.msra.mxu0 0.0
        %1185 = vmatprep.subr.mxu0 0.0
        %1186 = vmatpush1.xpose.msra.mxu0 0.0
        %1187 = vmatprep.subr.mxu0 0.0
        %1188 = vmatpush1.xpose.msra.mxu0 0.0
        %1189 = vmatprep.mubr.f32.mxu0 0.0
        %1190 = vmatmul.mubr.f32.gmra.mrb[0].mxu0 %v1120
        %v1191 = vpop.f32.mrb[0].mxu0
        %v1192 = vadd.f32 0.0, %v1191
        %v1193 = vpop.f32.mrb[0].mxu0
        %1194 = vdwg.mxu0
        %v1195 = vsel %vm1118, %v1192, -inf
        %1196 = vmax.xlane.f32.xlu0 %v1195
        %v1197 = vpop.xlane.xlu0 %1196
        %v1198 = vsub.f32 %v1192, %v1197
        %v1199 = vmul.f32 %v1198, 1.442695
        %v1200 = vpow.pop %v1199
        %v1201 = vsel %vm1118, %v1200, 0.0
        %1202 = vadd.xlane.f32.xlu0 %v1201
        %v1203 = vpop.xlane.xlu0 %1202
        %v1204 = vrcp.pop %v1203
        %v1205 = vmul.f32 %v1200, %v1204
        %v1207 = vsel %vm1118, %v1205, 0
        %1209 = vmatprep.subr.mxu0 0.0
        %1210 = vmatpush1.msra.mxu0 %v1115
        %1211 = vmatprep.subr.mxu0 0.0
        %1212 = vmatpush1.msra.mxu0 0.0
        %1213 = vmatprep.subr.mxu0 0.0
        %1214 = vmatpush1.msra.mxu0 0.0
        %1215 = vmatprep.subr.mxu0 0.0
        %1216 = vmatpush1.msra.mxu0 0.0
        %1217 = vmatprep.subr.mxu0 0.0
        %1218 = vmatpush1.msra.mxu0 0.0
        %1219 = vmatprep.subr.mxu0 0.0
        %1220 = vmatpush1.msra.mxu0 0.0
        %1221 = vmatprep.subr.mxu0 0.0
        %1222 = vmatpush1.msra.mxu0 0.0
        %1223 = vmatprep.subr.mxu0 0.0
        %1224 = vmatpush1.msra.mxu0 0.0
        %1225 = vmatprep.subr.mxu0 0.0
        %1226 = vmatpush1.msra.mxu0 0.0
        %1227 = vmatprep.subr.mxu0 0.0
        %1228 = vmatpush1.msra.mxu0 0.0
        %1229 = vmatprep.subr.mxu0 0.0
        %1230 = vmatpush1.msra.mxu0 0.0
        %1231 = vmatprep.subr.mxu0 0.0
        %1232 = vmatpush1.msra.mxu0 0.0
        %1233 = vmatprep.subr.mxu0 0.0
        %1234 = vmatpush1.msra.mxu0 0.0
        %1235 = vmatprep.subr.mxu0 0.0
        %1236 = vmatpush1.msra.mxu0 0.0
        %1237 = vmatprep.subr.mxu0 0.0
        %1238 = vmatpush1.msra.mxu0 0.0
        %1239 = vmatprep.subr.mxu0 0.0
        %1240 = vmatpush1.msra.mxu0 0.0
        %1241 = vmatprep.subr.mxu0 0.0
        %1242 = vmatpush1.msra.mxu0 0.0
        %1243 = vmatprep.subr.mxu0 0.0
        %1244 = vmatpush1.msra.mxu0 0.0
        %1245 = vmatprep.subr.mxu0 0.0
        %1246 = vmatpush1.msra.mxu0 0.0
        %1247 = vmatprep.subr.mxu0 0.0
        %1248 = vmatpush1.msra.mxu0 0.0
        %1249 = vmatprep.subr.mxu0 0.0
        %1250 = vmatpush1.msra.mxu0 0.0
        %1251 = vmatprep.subr.mxu0 0.0
        %1252 = vmatpush1.msra.mxu0 0.0
        %1253 = vmatprep.subr.mxu0 0.0
        %1254 = vmatpush1.msra.mxu0 0.0
        %1255 = vmatprep.subr.mxu0 0.0
        %1256 = vmatpush1.msra.mxu0 0.0
        %1257 = vmatprep.subr.mxu0 0.0
        %1258 = vmatpush1.msra.mxu0 0.0
        %1259 = vmatprep.subr.mxu0 0.0
        %1260 = vmatpush1.msra.mxu0 0.0
        %1261 = vmatprep.subr.mxu0 0.0
        %1262 = vmatpush1.msra.mxu0 0.0
        %1263 = vmatprep.subr.mxu0 0.0
        %1264 = vmatpush1.msra.mxu0 0.0
        %1265 = vmatprep.subr.mxu0 0.0
        %1266 = vmatpush1.msra.mxu0 0.0
        %1267 = vmatprep.subr.mxu0 0.0
        %1268 = vmatpush1.msra.mxu0 0.0
        %1269 = vmatprep.subr.mxu0 0.0
        %1270 = vmatpush1.msra.mxu0 0.0
        %1271 = vmatprep.subr.mxu0 0.0
        %1272 = vmatpush1.msra.mxu0 0.0
        %1273 = vmatprep.mubr.f32.mxu0 0.0
        %1274 = vmatmul.mubr.f32.gmra.mrb[0].mxu0 %v1207
        %v1275 = vpop.f32.mrb[0].mxu0
        %v1276 = vadd.f32 0.0, %v1275
        %v1277 = vpop.f32.mrb[0].mxu0
        %1278 = vdwg.mxu0
        %1279 = vrot.lane.b32.xlu0 %v947, 120
        %v1280 = vpop.permute.xlu0 %1279
        %1281 = vrot.lane.b32.xlu0 %v1031, 120
        %v1282 = vpop.permute.xlu0 %1281
        %v1283 = vsel %vm1118, %v1280, 0
        %v1285 = vsel %vm1118, %v1282, 0
        %1287 = vmatprep.subr.mxu0 0.0
        %1288 = vmatpush1.xpose.msra.mxu0 %v1285
        %1289 = vmatprep.subr.mxu0 0.0
        %1290 = vmatpush1.xpose.msra.mxu0 0.0
        %1291 = vmatprep.subr.mxu0 0.0
        %1292 = vmatpush1.xpose.msra.mxu0 0.0
        %1293 = vmatprep.subr.mxu0 0.0
        %1294 = vmatpush1.xpose.msra.mxu0 0.0
        %1295 = vmatprep.subr.mxu0 0.0
        %1296 = vmatpush1.xpose.msra.mxu0 0.0
        %1297 = vmatprep.subr.mxu0 0.0
        %1298 = vmatpush1.xpose.msra.mxu0 0.0
        %1299 = vmatprep.subr.mxu0 0.0
        %1300 = vmatpush1.xpose.msra.mxu0 0.0
        %1301 = vmatprep.subr.mxu0 0.0
        %1302 = vmatpush1.xpose.msra.mxu0 0.0
        %1303 = vmatprep.subr.mxu0 0.0
        %1304 = vmatpush1.xpose.msra.mxu0 0.0
        %1305 = vmatprep.subr.mxu0 0.0
        %1306 = vmatpush1.xpose.msra.mxu0 0.0
        %1307 = vmatprep.subr.mxu0 0.0
        %1308 = vmatpush1.xpose.msra.mxu0 0.0
        %1309 = vmatprep.subr.mxu0 0.0
        %1310 = vmatpush1.xpose.msra.mxu0 0.0
        %1311 = vmatprep.subr.mxu0 0.0
        %1312 = vmatpush1.xpose.msra.mxu0 0.0
        %1313 = vmatprep.subr.mxu0 0.0
        %1314 = vmatpush1.xpose.msra.mxu0 0.0
        %1315 = vmatprep.subr.mxu0 0.0
        %1316 = vmatpush1.xpose.msra.mxu0 0.0
        %1317 = vmatprep.subr.mxu0 0.0
        %1318 = vmatpush1.xpose.msra.mxu0 0.0
        %1319 = vmatprep.subr.mxu0 0.0
        %1320 = vmatpush1.xpose.msra.mxu0 0.0
        %1321 = vmatprep.subr.mxu0 0.0
        %1322 = vmatpush1.xpose.msra.mxu0 0.0
        %1323 = vmatprep.subr.mxu0 0.0
        %1324 = vmatpush1.xpose.msra.mxu0 0.0
        %1325 = vmatprep.subr.mxu0 0.0
        %1326 = vmatpush1.xpose.msra.mxu0 0.0
        %1327 = vmatprep.subr.mxu0 0.0
        %1328 = vmatpush1.xpose.msra.mxu0 0.0
        %1329 = vmatprep.subr.mxu0 0.0
        %1330 = vmatpush1.xpose.msra.mxu0 0.0
        %1331 = vmatprep.subr.mxu0 0.0
        %1332 = vmatpush1.xpose.msra.mxu0 0.0
        %1333 = vmatprep.subr.mxu0 0.0
        %1334 = vmatpush1.xpose.msra.mxu0 0.0
        %1335 = vmatprep.subr.mxu0 0.0
        %1336 = vmatpush1.xpose.msra.mxu0 0.0
        %1337 = vmatprep.subr.mxu0 0.0
        %1338 = vmatpush1.xpose.msra.mxu0 0.0
        %1339 = vmatprep.subr.mxu0 0.0
        %1340 = vmatpush1.xpose.msra.mxu0 0.0
        %1341 = vmatprep.subr.mxu0 0.0
        %1342 = vmatpush1.xpose.msra.mxu0 0.0
        %1343 = vmatprep.subr.mxu0 0.0
        %1344 = vmatpush1.xpose.msra.mxu0 0.0
        %1345 = vmatprep.subr.mxu0 0.0
        %1346 = vmatpush1.xpose.msra.mxu0 0.0
        %1347 = vmatprep.subr.mxu0 0.0
        %1348 = vmatpush1.xpose.msra.mxu0 0.0
        %1349 = vmatprep.subr.mxu0 0.0
        %1350 = vmatpush1.xpose.msra.mxu0 0.0
        %1351 = vmatprep.mubr.f32.mxu0 0.0
        %1352 = vmatmul.mubr.f32.gmra.mrb[0].mxu0 %v1283
        %v1353 = vpop.f32.mrb[0].mxu0
        %v1354 = vadd.f32 0.0, %v1353
        %v1355 = vpop.f32.mrb[0].mxu0
        %1356 = vdwg.mxu0
        %v1357 = vsel %vm1118, %v1354, -inf
        %1358 = vmax.xlane.f32.xlu0 %v1357
        %v1359 = vpop.xlane.xlu0 %1358
        %v1360 = vsub.f32 %v1354, %v1359
        %v1361 = vmul.f32 %v1360, 1.442695
        %v1362 = vpow.pop %v1361
        %v1363 = vsel %vm1118, %v1362, 0.0
        %1364 = vadd.xlane.f32.xlu0 %v1363
        %v1365 = vpop.xlane.xlu0 %1364
        %v1366 = vrcp.pop %v1365
        %v1367 = vmul.f32 %v1362, %v1366
        %1369 = vrot.lane.b32.xlu0 %v1115, 120
        %v1370 = vpop.permute.xlu0 %1369
        %v1373 = vsel %vm1118, %v1367, 0
        %1375 = vmatprep.subr.mxu0 0.0
        %1376 = vmatpush1.msra.mxu0 %v1370
        %1377 = vmatprep.subr.mxu0 0.0
        %1378 = vmatpush1.msra.mxu0 0.0
        %1379 = vmatprep.subr.mxu0 0.0
        %1380 = vmatpush1.msra.mxu0 0.0
        %1381 = vmatprep.subr.mxu0 0.0
        %1382 = vmatpush1.msra.mxu0 0.0
        %1383 = vmatprep.subr.mxu0 0.0
        %1384 = vmatpush1.msra.mxu0 0.0
        %1385 = vmatprep.subr.mxu0 0.0
        %1386 = vmatpush1.msra.mxu0 0.0
        %1387 = vmatprep.subr.mxu0 0.0
        %1388 = vmatpush1.msra.mxu0 0.0
        %1389 = vmatprep.subr.mxu0 0.0
        %1390 = vmatpush1.msra.mxu0 0.0
        %1391 = vmatprep.subr.mxu0 0.0
        %1392 = vmatpush1.msra.mxu0 0.0
        %1393 = vmatprep.subr.mxu0 0.0
        %1394 = vmatpush1.msra.mxu0 0.0
        %1395 = vmatprep.subr.mxu0 0.0
        %1396 = vmatpush1.msra.mxu0 0.0
        %1397 = vmatprep.subr.mxu0 0.0
        %1398 = vmatpush1.msra.mxu0 0.0
        %1399 = vmatprep.subr.mxu0 0.0
        %1400 = vmatpush1.msra.mxu0 0.0
        %1401 = vmatprep.subr.mxu0 0.0
        %1402 = vmatpush1.msra.mxu0 0.0
        %1403 = vmatprep.subr.mxu0 0.0
        %1404 = vmatpush1.msra.mxu0 0.0
        %1405 = vmatprep.subr.mxu0 0.0
        %1406 = vmatpush1.msra.mxu0 0.0
        %1407 = vmatprep.subr.mxu0 0.0
        %1408 = vmatpush1.msra.mxu0 0.0
        %1409 = vmatprep.subr.mxu0 0.0
        %1410 = vmatpush1.msra.mxu0 0.0
        %1411 = vmatprep.subr.mxu0 0.0
        %1412 = vmatpush1.msra.mxu0 0.0
        %1413 = vmatprep.subr.mxu0 0.0
        %1414 = vmatpush1.msra.mxu0 0.0
        %1415 = vmatprep.subr.mxu0 0.0
        %1416 = vmatpush1.msra.mxu0 0.0
        %1417 = vmatprep.subr.mxu0 0.0
        %1418 = vmatpush1.msra.mxu0 0.0
        %1419 = vmatprep.subr.mxu0 0.0
        %1420 = vmatpush1.msra.mxu0 0.0
        %1421 = vmatprep.subr.mxu0 0.0
        %1422 = vmatpush1.msra.mxu0 0.0
        %1423 = vmatprep.subr.mxu0 0.0
        %1424 = vmatpush1.msra.mxu0 0.0
        %1425 = vmatprep.subr.mxu0 0.0
        %1426 = vmatpush1.msra.mxu0 0.0
        %1427 = vmatprep.subr.mxu0 0.0
        %1428 = vmatpush1.msra.mxu0 0.0
        %1429 = vmatprep.subr.mxu0 0.0
        %1430 = vmatpush1.msra.mxu0 0.0
        %1431 = vmatprep.subr.mxu0 0.0
        %1432 = vmatpush1.msra.mxu0 0.0
        %1433 = vmatprep.subr.mxu0 0.0
        %1434 = vmatpush1.msra.mxu0 0.0
        %1435 = vmatprep.subr.mxu0 0.0
        %1436 = vmatpush1.msra.mxu0 0.0
        %1437 = vmatprep.subr.mxu0 0.0
        %1438 = vmatpush1.msra.mxu0 0.0
        %1439 = vmatprep.mubr.f32.mxu0 0.0
        %1440 = vmatmul.mubr.f32.gmra.mrb[0].mxu0 %v1373
        %v1441 = vpop.f32.mrb[0].mxu0
        %v1442 = vadd.f32 0.0, %v1441
        %v1443 = vpop.f32.mrb[0].mxu0
        %1444 = vdwg.mxu0
        %1445 = vrot.lane.b32.xlu0 %v947, 112
        %v1446 = vpop.permute.xlu0 %1445
        %1447 = vrot.lane.b32.xlu0 %v1031, 112
        %v1448 = vpop.permute.xlu0 %1447
        %v1449 = vsel %vm1118, %v1446, 0
        %v1451 = vsel %vm1118, %v1448, 0
        %1453 = vmatprep.subr.mxu0 0.0
        %1454 = vmatpush1.xpose.msra.mxu0 %v1451
        %1455 = vmatprep.subr.mxu0 0.0
        %1456 = vmatpush1.xpose.msra.mxu0 0.0
        %1457 = vmatprep.subr.mxu0 0.0
        %1458 = vmatpush1.xpose.msra.mxu0 0.0
        %1459 = vmatprep.subr.mxu0 0.0
        %1460 = vmatpush1.xpose.msra.mxu0 0.0
        %1461 = vmatprep.subr.mxu0 0.0
        %1462 = vmatpush1.xpose.msra.mxu0 0.0
        %1463 = vmatprep.subr.mxu0 0.0
        %1464 = vmatpush1.xpose.msra.mxu0 0.0
        %1465 = vmatprep.subr.mxu0 0.0
        %1466 = vmatpush1.xpose.msra.mxu0 0.0
        %1467 = vmatprep.subr.mxu0 0.0
        %1468 = vmatpush1.xpose.msra.mxu0 0.0
        %1469 = vmatprep.subr.mxu0 0.0
        %1470 = vmatpush1.xpose.msra.mxu0 0.0
        %1471 = vmatprep.subr.mxu0 0.0
        %1472 = vmatpush1.xpose.msra.mxu0 0.0
        %1473 = vmatprep.subr.mxu0 0.0
        %1474 = vmatpush1.xpose.msra.mxu0 0.0
        %1475 = vmatprep.subr.mxu0 0.0
        %1476 = vmatpush1.xpose.msra.mxu0 0.0
        %1477 = vmatprep.subr.mxu0 0.0
        %1478 = vmatpush1.xpose.msra.mxu0 0.0
        %1479 = vmatprep.subr.mxu0 0.0
        %1480 = vmatpush1.xpose.msra.mxu0 0.0
        %1481 = vmatprep.subr.mxu0 0.0
        %1482 = vmatpush1.xpose.msra.mxu0 0.0
        %1483 = vmatprep.subr.mxu0 0.0
        %1484 = vmatpush1.xpose.msra.mxu0 0.0
        %1485 = vmatprep.subr.mxu0 0.0
        %1486 = vmatpush1.xpose.msra.mxu0 0.0
        %1487 = vmatprep.subr.mxu0 0.0
        %1488 = vmatpush1.xpose.msra.mxu0 0.0
        %1489 = vmatprep.subr.mxu0 0.0
        %1490 = vmatpush1.xpose.msra.mxu0 0.0
        %1491 = vmatprep.subr.mxu0 0.0
        %1492 = vmatpush1.xpose.msra.mxu0 0.0
        %1493 = vmatprep.subr.mxu0 0.0
        %1494 = vmatpush1.xpose.msra.mxu0 0.0
        %1495 = vmatprep.subr.mxu0 0.0
        %1496 = vmatpush1.xpose.msra.mxu0 0.0
        %1497 = vmatprep.subr.mxu0 0.0
        %1498 = vmatpush1.xpose.msra.mxu0 0.0
        %1499 = vmatprep.subr.mxu0 0.0
        %1500 = vmatpush1.xpose.msra.mxu0 0.0
        %1501 = vmatprep.subr.mxu0 0.0
        %1502 = vmatpush1.xpose.msra.mxu0 0.0
        %1503 = vmatprep.subr.mxu0 0.0
        %1504 = vmatpush1.xpose.msra.mxu0 0.0
        %1505 = vmatprep.subr.mxu0 0.0
        %1506 = vmatpush1.xpose.msra.mxu0 0.0
        %1507 = vmatprep.subr.mxu0 0.0
        %1508 = vmatpush1.xpose.msra.mxu0 0.0
        %1509 = vmatprep.subr.mxu0 0.0
        %1510 = vmatpush1.xpose.msra.mxu0 0.0
        %1511 = vmatprep.subr.mxu0 0.0
        %1512 = vmatpush1.xpose.msra.mxu0 0.0
        %1513 = vmatprep.subr.mxu0 0.0
        %1514 = vmatpush1.xpose.msra.mxu0 0.0
        %1515 = vmatprep.subr.mxu0 0.0
        %1516 = vmatpush1.xpose.msra.mxu0 0.0
        %1517 = vmatprep.mubr.f32.mxu0 0.0
        %1518 = vmatmul.mubr.f32.gmra.mrb[0].mxu0 %v1449
        %v1519 = vpop.f32.mrb[0].mxu0
        %v1520 = vadd.f32 0.0, %v1519
        %v1521 = vpop.f32.mrb[0].mxu0
        %1522 = vdwg.mxu0
        %v1523 = vsel %vm1118, %v1520, -inf
        %1524 = vmax.xlane.f32.xlu0 %v1523
        %v1525 = vpop.xlane.xlu0 %1524
        %v1526 = vsub.f32 %v1520, %v1525
        %v1527 = vmul.f32 %v1526, 1.442695
        %v1528 = vpow.pop %v1527
        %v1529 = vsel %vm1118, %v1528, 0.0
        %1530 = vadd.xlane.f32.xlu0 %v1529
        %v1531 = vpop.xlane.xlu0 %1530
        %v1532 = vrcp.pop %v1531
        %v1533 = vmul.f32 %v1528, %v1532
        %1534 = vrot.lane.b32.xlu0 %v1115, 112
        %v1535 = vpop.permute.xlu0 %1534
        %v1538 = vsel %vm1118, %v1533, 0
        %1540 = vmatprep.subr.mxu0 0.0
        %1541 = vmatpush1.msra.mxu0 %v1535
        %1542 = vmatprep.subr.mxu0 0.0
        %1543 = vmatpush1.msra.mxu0 0.0
        %1544 = vmatprep.subr.mxu0 0.0
        %1545 = vmatpush1.msra.mxu0 0.0
        %1546 = vmatprep.subr.mxu0 0.0
        %1547 = vmatpush1.msra.mxu0 0.0
        %1548 = vmatprep.subr.mxu0 0.0
        %1549 = vmatpush1.msra.mxu0 0.0
        %1550 = vmatprep.subr.mxu0 0.0
        %1551 = vmatpush1.msra.mxu0 0.0
        %1552 = vmatprep.subr.mxu0 0.0
        %1553 = vmatpush1.msra.mxu0 0.0
        %1554 = vmatprep.subr.mxu0 0.0
        %1555 = vmatpush1.msra.mxu0 0.0
        %1556 = vmatprep.subr.mxu0 0.0
        %1557 = vmatpush1.msra.mxu0 0.0
        %1558 = vmatprep.subr.mxu0 0.0
        %1559 = vmatpush1.msra.mxu0 0.0
        %1560 = vmatprep.subr.mxu0 0.0
        %1561 = vmatpush1.msra.mxu0 0.0
        %1562 = vmatprep.subr.mxu0 0.0
        %1563 = vmatpush1.msra.mxu0 0.0
        %1564 = vmatprep.subr.mxu0 0.0
        %1565 = vmatpush1.msra.mxu0 0.0
        %1566 = vmatprep.subr.mxu0 0.0
        %1567 = vmatpush1.msra.mxu0 0.0
        %1568 = vmatprep.subr.mxu0 0.0
        %1569 = vmatpush1.msra.mxu0 0.0
        %1570 = vmatprep.subr.mxu0 0.0
        %1571 = vmatpush1.msra.mxu0 0.0
        %1572 = vmatprep.subr.mxu0 0.0
        %1573 = vmatpush1.msra.mxu0 0.0
        %1574 = vmatprep.subr.mxu0 0.0
        %1575 = vmatpush1.msra.mxu0 0.0
        %1576 = vmatprep.subr.mxu0 0.0
        %1577 = vmatpush1.msra.mxu0 0.0
        %1578 = vmatprep.subr.mxu0 0.0
        %1579 = vmatpush1.msra.mxu0 0.0
        %1580 = vmatprep.subr.mxu0 0.0
        %1581 = vmatpush1.msra.mxu0 0.0
        %1582 = vmatprep.subr.mxu0 0.0
        %1583 = vmatpush1.msra.mxu0 0.0
        %1584 = vmatprep.subr.mxu0 0.0
        %1585 = vmatpush1.msra.mxu0 0.0
        %1586 = vmatprep.subr.mxu0 0.0
        %1587 = vmatpush1.msra.mxu0 0.0
        %1588 = vmatprep.subr.mxu0 0.0
        %1589 = vmatpush1.msra.mxu0 0.0
        %1590 = vmatprep.subr.mxu0 0.0
        %1591 = vmatpush1.msra.mxu0 0.0
        %1592 = vmatprep.subr.mxu0 0.0
        %1593 = vmatpush1.msra.mxu0 0.0
        %1594 = vmatprep.subr.mxu0 0.0
        %1595 = vmatpush1.msra.mxu0 0.0
        %1596 = vmatprep.subr.mxu0 0.0
        %1597 = vmatpush1.msra.mxu0 0.0
        %1598 = vmatprep.subr.mxu0 0.0
        %1599 = vmatpush1.msra.mxu0 0.0
        %1600 = vmatprep.subr.mxu0 0.0
        %1601 = vmatpush1.msra.mxu0 0.0
        %1602 = vmatprep.subr.mxu0 0.0
        %1603 = vmatpush1.msra.mxu0 0.0
        %1604 = vmatprep.mubr.f32.mxu0 0.0
        %1605 = vmatmul.mubr.f32.gmra.mrb[0].mxu0 %v1538
        %v1606 = vpop.f32.mrb[0].mxu0
        %v1607 = vadd.f32 0.0, %v1606
        %v1608 = vpop.f32.mrb[0].mxu0
        %1609 = vdwg.mxu0
        %1610 = vrot.lane.b32.xlu0 %v947, 104
        %v1611 = vpop.permute.xlu0 %1610
        %1612 = vrot.lane.b32.xlu0 %v1031, 104
        %v1613 = vpop.permute.xlu0 %1612
        %v1614 = vsel %vm1118, %v1611, 0
        %v1616 = vsel %vm1118, %v1613, 0
        %1618 = vmatprep.subr.mxu0 0.0
        %1619 = vmatpush1.xpose.msra.mxu0 %v1616
        %1620 = vmatprep.subr.mxu0 0.0
        %1621 = vmatpush1.xpose.msra.mxu0 0.0
        %1622 = vmatprep.subr.mxu0 0.0
        %1623 = vmatpush1.xpose.msra.mxu0 0.0
        %1624 = vmatprep.subr.mxu0 0.0
        %1625 = vmatpush1.xpose.msra.mxu0 0.0
        %1626 = vmatprep.subr.mxu0 0.0
        %1627 = vmatpush1.xpose.msra.mxu0 0.0
        %1628 = vmatprep.subr.mxu0 0.0
        %1629 = vmatpush1.xpose.msra.mxu0 0.0
        %1630 = vmatprep.subr.mxu0 0.0
        %1631 = vmatpush1.xpose.msra.mxu0 0.0
        %1632 = vmatprep.subr.mxu0 0.0
        %1633 = vmatpush1.xpose.msra.mxu0 0.0
        %1634 = vmatprep.subr.mxu0 0.0
        %1635 = vmatpush1.xpose.msra.mxu0 0.0
        %1636 = vmatprep.subr.mxu0 0.0
        %1637 = vmatpush1.xpose.msra.mxu0 0.0
        %1638 = vmatprep.subr.mxu0 0.0
        %1639 = vmatpush1.xpose.msra.mxu0 0.0
        %1640 = vmatprep.subr.mxu0 0.0
        %1641 = vmatpush1.xpose.msra.mxu0 0.0
        %1642 = vmatprep.subr.mxu0 0.0
        %1643 = vmatpush1.xpose.msra.mxu0 0.0
        %1644 = vmatprep.subr.mxu0 0.0
        %1645 = vmatpush1.xpose.msra.mxu0 0.0
        %1646 = vmatprep.subr.mxu0 0.0
        %1647 = vmatpush1.xpose.msra.mxu0 0.0
        %1648 = vmatprep.subr.mxu0 0.0
        %1649 = vmatpush1.xpose.msra.mxu0 0.0
        %1650 = vmatprep.subr.mxu0 0.0
        %1651 = vmatpush1.xpose.msra.mxu0 0.0
        %1652 = vmatprep.subr.mxu0 0.0
        %1653 = vmatpush1.xpose.msra.mxu0 0.0
        %1654 = vmatprep.subr.mxu0 0.0
        %1655 = vmatpush1.xpose.msra.mxu0 0.0
        %1656 = vmatprep.subr.mxu0 0.0
        %1657 = vmatpush1.xpose.msra.mxu0 0.0
        %1658 = vmatprep.subr.mxu0 0.0
        %1659 = vmatpush1.xpose.msra.mxu0 0.0
        %1660 = vmatprep.subr.mxu0 0.0
        %1661 = vmatpush1.xpose.msra.mxu0 0.0
        %1662 = vmatprep.subr.mxu0 0.0
        %1663 = vmatpush1.xpose.msra.mxu0 0.0
        %1664 = vmatprep.subr.mxu0 0.0
        %1665 = vmatpush1.xpose.msra.mxu0 0.0
        %1666 = vmatprep.subr.mxu0 0.0
        %1667 = vmatpush1.xpose.msra.mxu0 0.0
        %1668 = vmatprep.subr.mxu0 0.0
        %1669 = vmatpush1.xpose.msra.mxu0 0.0
        %1670 = vmatprep.subr.mxu0 0.0
        %1671 = vmatpush1.xpose.msra.mxu0 0.0
        %1672 = vmatprep.subr.mxu0 0.0
        %1673 = vmatpush1.xpose.msra.mxu0 0.0
        %1674 = vmatprep.subr.mxu0 0.0
        %1675 = vmatpush1.xpose.msra.mxu0 0.0
        %1676 = vmatprep.subr.mxu0 0.0
        %1677 = vmatpush1.xpose.msra.mxu0 0.0
        %1678 = vmatprep.subr.mxu0 0.0
        %1679 = vmatpush1.xpose.msra.mxu0 0.0
        %1680 = vmatprep.subr.mxu0 0.0
        %1681 = vmatpush1.xpose.msra.mxu0 0.0
        %1682 = vmatprep.mubr.f32.mxu0 0.0
        %1683 = vmatmul.mubr.f32.gmra.mrb[0].mxu0 %v1614
        %v1684 = vpop.f32.mrb[0].mxu0
        %v1685 = vadd.f32 0.0, %v1684
        %v1686 = vpop.f32.mrb[0].mxu0
        %1687 = vdwg.mxu0
        %v1688 = vsel %vm1118, %v1685, -inf
        %1689 = vmax.xlane.f32.xlu0 %v1688
        %v1690 = vpop.xlane.xlu0 %1689
        %v1691 = vsub.f32 %v1685, %v1690
        %v1692 = vmul.f32 %v1691, 1.442695
        %v1693 = vpow.pop %v1692
        %v1694 = vsel %vm1118, %v1693, 0.0
        %1695 = vadd.xlane.f32.xlu0 %v1694
        %v1696 = vpop.xlane.xlu0 %1695
        %v1697 = vrcp.pop %v1696
        %v1698 = vmul.f32 %v1693, %v1697
        %1699 = vrot.lane.b32.xlu0 %v1115, 104
        %v1700 = vpop.permute.xlu0 %1699
        %v1703 = vsel %vm1118, %v1698, 0
        %1705 = vmatprep.subr.mxu0 0.0
        %1706 = vmatpush1.msra.mxu0 %v1700
        %1707 = vmatprep.subr.mxu0 0.0
        %1708 = vmatpush1.msra.mxu0 0.0
        %1709 = vmatprep.subr.mxu0 0.0
        %1710 = vmatpush1.msra.mxu0 0.0
        %1711 = vmatprep.subr.mxu0 0.0
        %1712 = vmatpush1.msra.mxu0 0.0
        %1713 = vmatprep.subr.mxu0 0.0
        %1714 = vmatpush1.msra.mxu0 0.0
        %1715 = vmatprep.subr.mxu0 0.0
        %1716 = vmatpush1.msra.mxu0 0.0
        %1717 = vmatprep.subr.mxu0 0.0
        %1718 = vmatpush1.msra.mxu0 0.0
        %1719 = vmatprep.subr.mxu0 0.0
        %1720 = vmatpush1.msra.mxu0 0.0
        %1721 = vmatprep.subr.mxu0 0.0
        %1722 = vmatpush1.msra.mxu0 0.0
        %1723 = vmatprep.subr.mxu0 0.0
        %1724 = vmatpush1.msra.mxu0 0.0
        %1725 = vmatprep.subr.mxu0 0.0
        %1726 = vmatpush1.msra.mxu0 0.0
        %1727 = vmatprep.subr.mxu0 0.0
        %1728 = vmatpush1.msra.mxu0 0.0
        %1729 = vmatprep.subr.mxu0 0.0
        %1730 = vmatpush1.msra.mxu0 0.0
        %1731 = vmatprep.subr.mxu0 0.0
        %1732 = vmatpush1.msra.mxu0 0.0
        %1733 = vmatprep.subr.mxu0 0.0
        %1734 = vmatpush1.msra.mxu0 0.0
        %1735 = vmatprep.subr.mxu0 0.0
        %1736 = vmatpush1.msra.mxu0 0.0
        %1737 = vmatprep.subr.mxu0 0.0
        %1738 = vmatpush1.msra.mxu0 0.0
        %1739 = vmatprep.subr.mxu0 0.0
        %1740 = vmatpush1.msra.mxu0 0.0
        %1741 = vmatprep.subr.mxu0 0.0
        %1742 = vmatpush1.msra.mxu0 0.0
        %1743 = vmatprep.subr.mxu0 0.0
        %1744 = vmatpush1.msra.mxu0 0.0
        %1745 = vmatprep.subr.mxu0 0.0
        %1746 = vmatpush1.msra.mxu0 0.0
        %1747 = vmatprep.subr.mxu0 0.0
        %1748 = vmatpush1.msra.mxu0 0.0
        %1749 = vmatprep.subr.mxu0 0.0
        %1750 = vmatpush1.msra.mxu0 0.0
        %1751 = vmatprep.subr.mxu0 0.0
        %1752 = vmatpush1.msra.mxu0 0.0
        %1753 = vmatprep.subr.mxu0 0.0
        %1754 = vmatpush1.msra.mxu0 0.0
        %1755 = vmatprep.subr.mxu0 0.0
        %1756 = vmatpush1.msra.mxu0 0.0
        %1757 = vmatprep.subr.mxu0 0.0
        %1758 = vmatpush1.msra.mxu0 0.0
        %1759 = vmatprep.subr.mxu0 0.0
        %1760 = vmatpush1.msra.mxu0 0.0
        %1761 = vmatprep.subr.mxu0 0.0
        %1762 = vmatpush1.msra.mxu0 0.0
        %1763 = vmatprep.subr.mxu0 0.0
        %1764 = vmatpush1.msra.mxu0 0.0
        %1765 = vmatprep.subr.mxu0 0.0
        %1766 = vmatpush1.msra.mxu0 0.0
        %1767 = vmatprep.subr.mxu0 0.0
        %1768 = vmatpush1.msra.mxu0 0.0
        %1769 = vmatprep.mubr.f32.mxu0 0.0
        %1770 = vmatmul.mubr.f32.gmra.mrb[0].mxu0 %v1703
        %v1771 = vpop.f32.mrb[0].mxu0
        %v1772 = vadd.f32 0.0, %v1771
        %v1773 = vpop.f32.mrb[0].mxu0
        %1774 = vdwg.mxu0
        %1776 = vrot.lane.b32.xlu0 %v1442, 8
        %v1777 = vpop.permute.xlu0 %1776
        %1780 = vrot.lane.b32.xlu0 %v1607, 16
        %v1781 = vpop.permute.xlu0 %1780
        %1784 = vrot.lane.b32.xlu0 %v1772, 24
        %v1785 = vpop.permute.xlu0 %1784
        %v1787 = vsel %vm1118, %v1276, %v1777
        %vm1788 = vcmask 130048
        %v1789 = vsel %vm1788, %v1787, %v1781
        %vm1790 = vcmask 195584
        %v1791 = vsel %vm1790, %v1789, %v1785
        %v1792 = vld [vmem:[%s9] sm:$0xff]
        %v1793 = vld [vmem:[%s9 + $0x8] sm:$0xff]
        %v1794 = vld [vmem:[%s9 + $0x10] sm:$0xff]
        %v1795 = vld [vmem:[%s9 + $0x18] sm:$0xff]
        %v1796 = vld [vmem:[#allocation17] sm:$0x1]
        %v1798 = vlaneseq
        %v1799 = vshrl.u32 %v1798, 7
        %v1800 = vsub.s32 0, %v1799
        %v1801 = vrot.slane %v1796, %v1800
        %v1804 = vsel %vm876, %v1791, 0
        %1806 = vmatprep.subr.mxu0 0.0
        %1807 = vmatpush1.msra.mxu0 %v1792
        %1808 = vmatprep.subr.mxu0 0.0
        %1809 = vmatpush1.msra.mxu0 %v1793
        %1810 = vmatprep.subr.mxu0 0.0
        %1811 = vmatpush1.msra.mxu0 %v1794
        %1812 = vmatprep.subr.mxu0 0.0
        %1813 = vmatpush1.msra.mxu0 %v1795
        %1814 = vmatprep.subr.mxu0 0.0
        %1815 = vmatpush1.msra.mxu0 0.0
        %1816 = vmatprep.subr.mxu0 0.0
        %1817 = vmatpush1.msra.mxu0 0.0
        %1818 = vmatprep.subr.mxu0 0.0
        %1819 = vmatpush1.msra.mxu0 0.0
        %1820 = vmatprep.subr.mxu0 0.0
        %1821 = vmatpush1.msra.mxu0 0.0
        %1822 = vmatprep.subr.mxu0 0.0
        %1823 = vmatpush1.msra.mxu0 0.0
        %1824 = vmatprep.subr.mxu0 0.0
        %1825 = vmatpush1.msra.mxu0 0.0
        %1826 = vmatprep.subr.mxu0 0.0
        %1827 = vmatpush1.msra.mxu0 0.0
        %1828 = vmatprep.subr.mxu0 0.0
        %1829 = vmatpush1.msra.mxu0 0.0
        %1830 = vmatprep.subr.mxu0 0.0
        %1831 = vmatpush1.msra.mxu0 0.0
        %1832 = vmatprep.subr.mxu0 0.0
        %1833 = vmatpush1.msra.mxu0 0.0
        %1834 = vmatprep.subr.mxu0 0.0
        %1835 = vmatpush1.msra.mxu0 0.0
        %1836 = vmatprep.subr.mxu0 0.0
        %1837 = vmatpush1.msra.mxu0 0.0
        %1838 = vmatprep.subr.mxu0 0.0
        %1839 = vmatpush1.msra.mxu0 0.0
        %1840 = vmatprep.subr.mxu0 0.0
        %1841 = vmatpush1.msra.mxu0 0.0
        %1842 = vmatprep.subr.mxu0 0.0
        %1843 = vmatpush1.msra.mxu0 0.0
        %1844 = vmatprep.subr.mxu0 0.0
        %1845 = vmatpush1.msra.mxu0 0.0
        %1846 = vmatprep.subr.mxu0 0.0
        %1847 = vmatpush1.msra.mxu0 0.0
        %1848 = vmatprep.subr.mxu0 0.0
        %1849 = vmatpush1.msra.mxu0 0.0
        %1850 = vmatprep.subr.mxu0 0.0
        %1851 = vmatpush1.msra.mxu0 0.0
        %1852 = vmatprep.subr.mxu0 0.0
        %1853 = vmatpush1.msra.mxu0 0.0
        %1854 = vmatprep.subr.mxu0 0.0
        %1855 = vmatpush1.msra.mxu0 0.0
        %1856 = vmatprep.subr.mxu0 0.0
        %1857 = vmatpush1.msra.mxu0 0.0
        %1858 = vmatprep.subr.mxu0 0.0
        %1859 = vmatpush1.msra.mxu0 0.0
        %1860 = vmatprep.subr.mxu0 0.0
        %1861 = vmatpush1.msra.mxu0 0.0
        %1862 = vmatprep.subr.mxu0 0.0
        %1863 = vmatpush1.msra.mxu0 0.0
        %1864 = vmatprep.subr.mxu0 0.0
        %1865 = vmatpush1.msra.mxu0 0.0
        %1866 = vmatprep.subr.mxu0 0.0
        %1867 = vmatpush1.msra.mxu0 0.0
        %1868 = vmatprep.subr.mxu0 0.0
        %1869 = vmatpush1.msra.mxu0 0.0
        %1870 = vmatprep.mubr.f32.mxu0 0.0
        %1871 = vmatmul.mubr.f32.gmra.mrb[0].mxu0 %v1804
        %v1872 = vpop.f32.mrb[0].mxu0
        %v1873 = vadd.f32 %v1801, %v1872
        %v1874 = vpop.f32.mrb[0].mxu0
        %1875 = vdwg.mxu0
        %v1876 = vld [vmem:[#allocation19] sm:$0xff]
        %v1877 = vld [vmem:[#allocation19 + $0x8] sm:$0xff]
        %v1878 = vld [vmem:[#allocation19 + $0x10] sm:$0xff]
        %v1879 = vld [vmem:[#allocation19 + $0x18] sm:$0xff]
        %v1880 = vld [vmem:[#allocation20] sm:$0x1]
        %v1882 = vlaneseq
        %v1883 = vshrl.u32 %v1882, 7
        %v1884 = vsub.s32 0, %v1883
        %v1885 = vrot.slane %v1880, %v1884
        %v1888 = vsel %vm876, %v1873, 0
        %1890 = vmatprep.subr.mxu0 0.0
        %1891 = vmatpush1.msra.mxu0 %v1876
        %1892 = vmatprep.subr.mxu0 0.0
        %1893 = vmatpush1.msra.mxu0 %v1877
        %1894 = vmatprep.subr.mxu0 0.0
        %1895 = vmatpush1.msra.mxu0 %v1878
        %1896 = vmatprep.subr.mxu0 0.0
        %1897 = vmatpush1.msra.mxu0 %v1879
        %1898 = vmatprep.subr.mxu0 0.0
        %1899 = vmatpush1.msra.mxu0 0.0
        %1900 = vmatprep.subr.mxu0 0.0
        %1901 = vmatpush1.msra.mxu0 0.0
        %1902 = vmatprep.subr.mxu0 0.0
        %1903 = vmatpush1.msra.mxu0 0.0
        %1904 = vmatprep.subr.mxu0 0.0
        %1905 = vmatpush1.msra.mxu0 0.0
        %1906 = vmatprep.subr.mxu0 0.0
        %1907 = vmatpush1.msra.mxu0 0.0
        %1908 = vmatprep.subr.mxu0 0.0
        %1909 = vmatpush1.msra.mxu0 0.0
        %1910 = vmatprep.subr.mxu0 0.0
        %1911 = vmatpush1.msra.mxu0 0.0
        %1912 = vmatprep.subr.mxu0 0.0
        %1913 = vmatpush1.msra.mxu0 0.0
        %1914 = vmatprep.subr.mxu0 0.0
        %1915 = vmatpush1.msra.mxu0 0.0
        %1916 = vmatprep.subr.mxu0 0.0
        %1917 = vmatpush1.msra.mxu0 0.0
        %1918 = vmatprep.subr.mxu0 0.0
        %1919 = vmatpush1.msra.mxu0 0.0
        %1920 = vmatprep.subr.mxu0 0.0
        %1921 = vmatpush1.msra.mxu0 0.0
        %1922 = vmatprep.subr.mxu0 0.0
        %1923 = vmatpush1.msra.mxu0 0.0
        %1924 = vmatprep.subr.mxu0 0.0
        %1925 = vmatpush1.msra.mxu0 0.0
        %1926 = vmatprep.subr.mxu0 0.0
        %1927 = vmatpush1.msra.mxu0 0.0
        %1928 = vmatprep.subr.mxu0 0.0
        %1929 = vmatpush1.msra.mxu0 0.0
        %1930 = vmatprep.subr.mxu0 0.0
        %1931 = vmatpush1.msra.mxu0 0.0
        %1932 = vmatprep.subr.mxu0 0.0
        %1933 = vmatpush1.msra.mxu0 0.0
        %1934 = vmatprep.subr.mxu0 0.0
        %1935 = vmatpush1.msra.mxu0 0.0
        %1936 = vmatprep.subr.mxu0 0.0
        %1937 = vmatpush1.msra.mxu0 0.0
        %1938 = vmatprep.subr.mxu0 0.0
        %1939 = vmatpush1.msra.mxu0 0.0
        %1940 = vmatprep.subr.mxu0 0.0
        %1941 = vmatpush1.msra.mxu0 0.0
        %1942 = vmatprep.subr.mxu0 0.0
        %1943 = vmatpush1.msra.mxu0 0.0
        %1944 = vmatprep.subr.mxu0 0.0
        %1945 = vmatpush1.msra.mxu0 0.0
        %1946 = vmatprep.subr.mxu0 0.0
        %1947 = vmatpush1.msra.mxu0 0.0
        %1948 = vmatprep.subr.mxu0 0.0
        %1949 = vmatpush1.msra.mxu0 0.0
        %1950 = vmatprep.subr.mxu0 0.0
        %1951 = vmatpush1.msra.mxu0 0.0
        %1952 = vmatprep.subr.mxu0 0.0
        %1953 = vmatpush1.msra.mxu0 0.0
        %1954 = vmatprep.mubr.f32.mxu0 0.0
        %1955 = vmatmul.mubr.f32.gmra.mrb[0].mxu0 %v1888
        %v1956 = vpop.f32.mrb[0].mxu0
        %v1957 = vadd.f32 %v1885, %v1956
        %v1958 = vpop.f32.mrb[0].mxu0
        %1959 = vdwg.mxu0
        %v1960 = vsel %vm876, %v1957, 0.0
        %1961 = vadd.xlane.f32.xlu0 %v1960
        %v1962 = vpop.xlane.xlu0 %1961
        %v1963 = vrcp.pop 32.0
        %v1964 = vmul.f32 %v1962, %v1963
        %v1965 = vsub.f32 %v1957, %v1964
        %v1966 = vmul.f32 %v1965, %v1965
        %v1967 = vsel %vm876, %v1966, 0.0
        %1968 = vadd.xlane.f32.xlu0 %v1967
        %v1969 = vpop.xlane.xlu0 %1968
        %v1970 = vmul.f32 %v1969, %v1963
        %v1971 = vadd.f32 %v1970, 1e-05
        %v1972 = vrsqrt.pop %v1971
        %v1973 = vmul.f32 %v1965, %v1972
        %v1974 = vld [vmem:[#allocation22] sm:$0x1]
        %v1976 = vlaneseq
        %v1977 = vshrl.u32 %v1976, 7
        %v1978 = vsub.s32 0, %v1977
        %v1979 = vrot.slane %v1974, %v1978
        %v1981 = vmul.f32 %v1973, %v1979
        %v1982 = vld [vmem:[#allocation23] sm:$0x1]
        %v1984 = vlaneseq
        %v1985 = vshrl.u32 %v1984, 7
        %v1986 = vsub.s32 0, %v1985
        %v1987 = vrot.slane %v1982, %v1986
        %v1989 = vadd.f32 %v1981, %v1987
        %v1990 = vld [vmem:[#allocation25] sm:$0xff]
        %v1991 = vld [vmem:[#allocation25 + $0x8] sm:$0xff]
        %v1992 = vld [vmem:[#allocation25 + $0x10] sm:$0xff]
        %v1993 = vld [vmem:[#allocation25 + $0x18] sm:$0xff]
        %v1994 = vld [vmem:[#allocation26] sm:$0x1]
        %v1996 = vlaneseq
        %v1997 = vshrl.u32 %v1996, 7
        %v1998 = vsub.s32 0, %v1997
        %v1999 = vrot.slane %v1994, %v1998
        %v2002 = vsel %vm876, %v1989, 0
        %2004 = vmatprep.subr.mxu0 0.0
        %2005 = vmatpush1.msra.mxu0 %v1990
        %2006 = vmatprep.subr.mxu0 0.0
        %2007 = vmatpush1.msra.mxu0 %v1991
        %2008 = vmatprep.subr.mxu0 0.0
        %2009 = vmatpush1.msra.mxu0 %v1992
        %2010 = vmatprep.subr.mxu0 0.0
        %2011 = vmatpush1.msra.mxu0 %v1993
        %2012 = vmatprep.subr.mxu0 0.0
        %2013 = vmatpush1.msra.mxu0 0.0
        %2014 = vmatprep.subr.mxu0 0.0
        %2015 = vmatpush1.msra.mxu0 0.0
        %2016 = vmatprep.subr.mxu0 0.0
        %2017 = vmatpush1.msra.mxu0 0.0
        %2018 = vmatprep.subr.mxu0 0.0
        %2019 = vmatpush1.msra.mxu0 0.0
        %2020 = vmatprep.subr.mxu0 0.0
        %2021 = vmatpush1.msra.mxu0 0.0
        %2022 = vmatprep.subr.mxu0 0.0
        %2023 = vmatpush1.msra.mxu0 0.0
        %2024 = vmatprep.subr.mxu0 0.0
        %2025 = vmatpush1.msra.mxu0 0.0
        %2026 = vmatprep.subr.mxu0 0.0
        %2027 = vmatpush1.msra.mxu0 0.0
        %2028 = vmatprep.subr.mxu0 0.0
        %2029 = vmatpush1.msra.mxu0 0.0
        %2030 = vmatprep.subr.mxu0 0.0
        %2031 = vmatpush1.msra.mxu0 0.0
        %2032 = vmatprep.subr.mxu0 0.0
        %2033 = vmatpush1.msra.mxu0 0.0
        %2034 = vmatprep.subr.mxu0 0.0
        %2035 = vmatpush1.msra.mxu0 0.0
        %2036 = vmatprep.subr.mxu0 0.0
        %2037 = vmatpush1.msra.mxu0 0.0
        %2038 = vmatprep.subr.mxu0 0.0
        %2039 = vmatpush1.msra.mxu0 0.0
        %2040 = vmatprep.subr.mxu0 0.0
        %2041 = vmatpush1.msra.mxu0 0.0
        %2042 = vmatprep.subr.mxu0 0.0
        %2043 = vmatpush1.msra.mxu0 0.0
        %2044 = vmatprep.subr.mxu0 0.0
        %2045 = vmatpush1.msra.mxu0 0.0
        %2046 = vmatprep.subr.mxu0 0.0
        %2047 = vmatpush1.msra.mxu0 0.0
        %2048 = vmatprep.subr.mxu0 0.0
        %2049 = vmatpush1.msra.mxu0 0.0
        %2050 = vmatprep.subr.mxu0 0.0
        %2051 = vmatpush1.msra.mxu0 0.0
        %2052 = vmatprep.subr.mxu0 0.0
        %2053 = vmatpush1.msra.mxu0 0.0
        %2054 = vmatprep.subr.mxu0 0.0
        %2055 = vmatpush1.msra.mxu0 0.0
        %2056 = vmatprep.subr.mxu0 0.0
        %2057 = vmatpush1.msra.mxu0 0.0
        %2058 = vmatprep.subr.mxu0 0.0
        %2059 = vmatpush1.msra.mxu0 0.0
        %2060 = vmatprep.subr.mxu0 0.0
        %2061 = vmatpush1.msra.mxu0 0.0
        %2062 = vmatprep.subr.mxu0 0.0
        %2063 = vmatpush1.msra.mxu0 0.0
        %2064 = vmatprep.subr.mxu0 0.0
        %2065 = vmatpush1.msra.mxu0 0.0
        %2066 = vmatprep.subr.mxu0 0.0
        %2067 = vmatpush1.msra.mxu0 0.0
        %2068 = vmatprep.mubr.f32.mxu0 0.0
        %2069 = vmatmul.mubr.f32.gmra.mrb[0].mxu0 %v2002
        %v2070 = vpop.f32.mrb[0].mxu0
        %v2071 = vadd.f32 %v1999, %v2070
        %v2072 = vpop.f32.mrb[0].mxu0
        %2073 = vdwg.mxu0
        %v2074 = vmax.f32 %v2071, 0.0
        %v2075 = vld [vmem:[%s17] sm:$0xff]
        %v2076 = vld [vmem:[%s17 + $0x8] sm:$0xff]
        %v2077 = vld [vmem:[%s17 + $0x10] sm:$0xff]
        %v2078 = vld [vmem:[%s17 + $0x18] sm:$0xff]
        %v2079 = vld [vmem:[%s18] sm:$0x1]
        %v2081 = vlaneseq
        %v2082 = vshrl.u32 %v2081, 7
        %v2083 = vsub.s32 0, %v2082
        %v2084 = vrot.slane %v2079, %v2083
        %v2087 = vsel %vm876, %v2074, 0
        %2089 = vmatprep.subr.mxu0 0.0
        %2090 = vmatpush1.msra.mxu0 %v2075
        %2091 = vmatprep.subr.mxu0 0.0
        %2092 = vmatpush1.msra.mxu0 %v2076
        %2093 = vmatprep.subr.mxu0 0.0
        %2094 = vmatpush1.msra.mxu0 %v2077
        %2095 = vmatprep.subr.mxu0 0.0
        %2096 = vmatpush1.msra.mxu0 %v2078
        %2097 = vmatprep.subr.mxu0 0.0
        %2098 = vmatpush1.msra.mxu0 0.0
        %2099 = vmatprep.subr.mxu0 0.0
        %2100 = vmatpush1.msra.mxu0 0.0
        %2101 = vmatprep.subr.mxu0 0.0
        %2102 = vmatpush1.msra.mxu0 0.0
        %2103 = vmatprep.subr.mxu0 0.0
        %2104 = vmatpush1.msra.mxu0 0.0
        %2105 = vmatprep.subr.mxu0 0.0
        %2106 = vmatpush1.msra.mxu0 0.0
        %2107 = vmatprep.subr.mxu0 0.0
        %2108 = vmatpush1.msra.mxu0 0.0
        %2109 = vmatprep.subr.mxu0 0.0
        %2110 = vmatpush1.msra.mxu0 0.0
        %2111 = vmatprep.subr.mxu0 0.0
        %2112 = vmatpush1.msra.mxu0 0.0
        %2113 = vmatprep.subr.mxu0 0.0
        %2114 = vmatpush1.msra.mxu0 0.0
        %2115 = vmatprep.subr.mxu0 0.0
        %2116 = vmatpush1.msra.mxu0 0.0
        %2117 = vmatprep.subr.mxu0 0.0
        %2118 = vmatpush1.msra.mxu0 0.0
        %2119 = vmatprep.subr.mxu0 0.0
        %2120 = vmatpush1.msra.mxu0 0.0
        %2121 = vmatprep.subr.mxu0 0.0
        %2122 = vmatpush1.msra.mxu0 0.0
        %2123 = vmatprep.subr.mxu0 0.0
        %2124 = vmatpush1.msra.mxu0 0.0
        %2125 = vmatprep.subr.mxu0 0.0
        %2126 = vmatpush1.msra.mxu0 0.0
        %2127 = vmatprep.subr.mxu0 0.0
        %2128 = vmatpush1.msra.mxu0 0.0
        %2129 = vmatprep.subr.mxu0 0.0
        %2130 = vmatpush1.msra.mxu0 0.0
        %2131 = vmatprep.subr.mxu0 0.0
        %2132 = vmatpush1.msra.mxu0 0.0
        %2133 = vmatprep.subr.mxu0 0.0
        %2134 = vmatpush1.msra.mxu0 0.0
        %2135 = vmatprep.subr.mxu0 0.0
        %2136 = vmatpush1.msra.mxu0 0.0
        %2137 = vmatprep.subr.mxu0 0.0
        %2138 = vmatpush1.msra.mxu0 0.0
        %2139 = vmatprep.subr.mxu0 0.0
        %2140 = vmatpush1.msra.mxu0 0.0
        %2141 = vmatprep.subr.mxu0 0.0
        %2142 = vmatpush1.msra.mxu0 0.0
        %2143 = vmatprep.subr.mxu0 0.0
        %2144 = vmatpush1.msra.mxu0 0.0
        %2145 = vmatprep.subr.mxu0 0.0
        %2146 = vmatpush1.msra.mxu0 0.0
        %2147 = vmatprep.subr.mxu0 0.0
        %2148 = vmatpush1.msra.mxu0 0.0
        %2149 = vmatprep.subr.mxu0 0.0
        %2150 = vmatpush1.msra.mxu0 0.0
        %2151 = vmatprep.subr.mxu0 0.0
        %2152 = vmatpush1.msra.mxu0 0.0
        %2153 = vmatprep.mubr.f32.mxu0 0.0
        %2154 = vmatmul.mubr.f32.gmra.mrb[0].mxu0 %v2087
        %v2155 = vpop.f32.mrb[0].mxu0
        %v2156 = vadd.f32 %v2084, %v2155
        %v2157 = vpop.f32.mrb[0].mxu0
        %2158 = vdwg.mxu0
        %2159 = vst [vmem:[%s861] sm:$0xff] %v2156
        %s2160 = sand.u32 %s468, 1
        %s2161 = scalar_lea.sflag [#allocation4], %s2160
        %s2162 = sand.u32 %s468, 1
        %s2163 = smul.addr %s2162, 8
        %s2164 = scalar_lea.vmem [#allocation28], %s2163
        // Predicated region
        $region161: #{tpu_custom_call.1} parent=95 // pred_check
          %p2165 = pneg %p478
        $region162: #{tpu_custom_call.1} parent=95 // pred_check_branch
          %2167 = sbr.rel (%p2165) target = $region164
        $region163: #{tpu_custom_call.1} parent=95 // pred_region
          %s2169 = ssub.s32 128, 128
          %2170 = vsyncadd %s2161, %s2169
          %s2171 = smul.addr %s46, 128
          %s2172 = scalar_lea.hbm %s19, %s2171
          %s2174 = sshll.u32 %s2164, 4
          %s2175 = int_to_ptr.vmem [resolvable:$true] %s2174
          %2177 = dma.vmem_to_hbm [thread:$0]  %s2175, 128, %s2172, %s2161
        $region164: #{tpu_custom_call.1} parent=95 // pred_fallthru
          _
      $region96: #{tpu_custom_call.1} parent=5 // pred_fallthru
        _
      %p2178 = scmp.le.s32.totalorder 2, %s41
      // Predicated region
      $region165: #{tpu_custom_call.1} parent=5 // pred_check
        %p2179 = pneg %p2178
      $region166: #{tpu_custom_call.1} parent=5 // pred_check_branch
        %2181 = sbr.rel (%p2179) target = $region168
      $region167: #{tpu_custom_call.1} parent=5 // pred_region
        %s2182 = ssub.s32 %s41, 2
        // Predicated region
        $region169: #{tpu_custom_call.1} parent=167 // pred_check
          %p2183 = pneg %p484
        $region170: #{tpu_custom_call.1} parent=167 // pred_check_branch
          %2185 = sbr.rel (%p2183) target = $region172
        $region171: #{tpu_custom_call.1} parent=167 // pred_region
          %s2186 = sand.u32 %s469, 1
          %s2187 = scalar_lea.sflag [#allocation4], %s2186
          %s2188 = sand.u32 %s469, 1
          %s2189 = smul.addr %s2188, 8
          %s2190 = scalar_lea.vmem [#allocation28], %s2189
          %2191 = dma.done %s2187, 128
        $region172: #{tpu_custom_call.1} parent=167 // pred_fallthru
          _
      $region168: #{tpu_custom_call.1} parent=5 // pred_fallthru
        _
    $region6: #{tpu_custom_call.1} parent=1 // loop_footer
      %s45 = sadd.s32 1, %s41
    $region7: #{tpu_custom_call.1} parent=1 // loop_footer_branch
      %40 = sbr.rel target = $region3
    $region8: #{tpu_custom_call.1} parent=1 // loop_exit
      _
    %2192 = vsyncpa [#allocation3], 1
    %s2193 = scalar_lea.sflag [#allocation3], 1
    %2194 = vsyncpa %s2193, 1
    %2195 = vsyncpa [#allocation6], 1
    %s2196 = scalar_lea.sflag [#allocation6], 1
    %2197 = vsyncpa %s2196, 1
    %2198 = vsyncpa [#allocation9], 1
    %2199 = vsyncpa [#allocation12], 1
    %2200 = vsyncpa [#allocation15], 1
    %2201 = vsyncpa [#allocation18], 1
    %2202 = vsyncpa [#allocation21], 1
    %2203 = vsyncpa [#allocation24], 1
    %2204 = vsyncpa [#allocation27], 1
    %2205 = vsyncpa [#allocation4], 1
    %s2206 = scalar_lea.sflag [#allocation4], 1
    %2207 = vsyncpa %s2206, 1

// kernel: tpu_custom_call.1
$region0: #{tpu_custom_call.1}
  #allocation0 [shape = 'u32[]', space=smem, size = 0x4, offset = 0x4, fixed_abs, tag = 'smem constant byte address 0x4 - core index']
  #allocation1 [shape = 'u32[144,128]{1,0:T(1,128)}', space=vmem, size = 0x12000, scoped, tag = 'internal scratch']
  %s0 = inlined_call_operand.hbm [shape: f32[16,32], index: 0, kind: input, shape index: {}]
  %s1 = inlined_call_operand.hbm [shape: f32[16,32], index: 1, kind: input, shape index: {}]
  %s2 = inlined_call_operand.hbm [shape: f32[16,32], index: 2, kind: input, shape index: {}]
  %s3 = inlined_call_operand.hbm [shape: f32[32,32], index: 3, kind: input, shape index: {}]
  %s4 = inlined_call_operand.hbm [shape: f32[1,32], index: 4, kind: input, shape index: {}]
  %s5 = inlined_call_operand.hbm [shape: f32[32,32], index: 5, kind: input, shape index: {}]
  %s6 = inlined_call_operand.hbm [shape: f32[1,32], index: 6, kind: input, shape index: {}]
  %s7 = inlined_call_operand.hbm [shape: f32[32,32], index: 7, kind: input, shape index: {}]
  %s8 = inlined_call_operand.hbm [shape: f32[1,32], index: 8, kind: input, shape index: {}]
  %s9 = inlined_call_operand.vmem [shape: f32[32,32], index: 9, kind: input, shape index: {}]
  %s10 = inlined_call_operand.hbm [shape: f32[1,32], index: 10, kind: input, shape index: {}]
  %s11 = inlined_call_operand.hbm [shape: f32[32,32], index: 11, kind: input, shape index: {}]
  %s12 = inlined_call_operand.hbm [shape: f32[1,32], index: 12, kind: input, shape index: {}]
  %s13 = inlined_call_operand.hbm [shape: f32[1,32], index: 13, kind: input, shape index: {}]
  %s14 = inlined_call_operand.hbm [shape: f32[1,32], index: 14, kind: input, shape index: {}]
  %s15 = inlined_call_operand.hbm [shape: f32[32,32], index: 15, kind: input, shape index: {}]
  %s16 = inlined_call_operand.hbm [shape: f32[1,32], index: 16, kind: input, shape index: {}]
  %s17 = inlined_call_operand.vmem [shape: f32[32,128], index: 17, kind: input, shape index: {}]
  %s18 = inlined_call_operand.vmem [shape: f32[1,128], index: 18, kind: input, shape index: {}]
  %s19 = inlined_call_operand.hbm [shape: f32[16,128], index: 19, kind: output, shape index: {}]
  %s20 = sld [smem:[#allocation0]]
  $region173: #{tpu_custom_call.1} parent=0
    _
  %s22 = ssub.s32 1, %s20
  %s23 = scalar_select 0, %s22, %s20
  $region1: #{tpu_custom_call.1} parent=0
    #allocation2 [shape = 'u8[8192]{0}', space=vmem, size = 0x2000, scoped, tag = 'input window, operand 0']
    #allocation3 [shape = 's32[2]{0}', space=sflag, size = 0x8, scoped, tag = 'scoped memory for tpu_custom_call.1']
    #allocation4 [shape = 's32[2]{0}', space=sflag, size = 0x8, scoped, tag = 'scoped memory for tpu_custom_call.1']
    #allocation5 [shape = 'u8[8192]{0}', space=vmem, size = 0x2000, scoped, tag = 'input window, operand 1']
    #allocation6 [shape = 's32[2]{0}', space=sflag, size = 0x8, scoped, tag = 'scoped memory for tpu_custom_call.1']
    #allocation7 [shape = 'u8[8192]{0}', space=vmem, size = 0x2000, scoped, tag = 'input window, operand 2']
    #allocation8 [shape = 'u8[16384]{0}', space=vmem, size = 0x4000, scoped, tag = 'input window, operand 3, single buffered']
    #allocation9 [shape = 's32[1]{0}', space=sflag, size = 0x4, scoped, tag = 'scoped memory for tpu_custom_call.1']
    #allocation10 [shape = 'u8[512]{0}', space=vmem, size = 0x400, scoped, tag = 'input window, operand 4, single buffered']
    #allocation11 [shape = 'u8[16384]{0}', space=vmem, size = 0x4000, scoped, tag = 'input window, operand 5, single buffered']
    #allocation12 [shape = 's32[1]{0}', space=sflag, size = 0x4, scoped, tag = 'scoped memory for tpu_custom_call.1']
    #allocation13 [shape = 'u8[512]{0}', space=vmem, size = 0x400, scoped, tag = 'input window, operand 6, single buffered']
    #allocation14 [shape = 'u8[16384]{0}', space=vmem, size = 0x4000, scoped, tag = 'input window, operand 7, single buffered']
    #allocation15 [shape = 's32[1]{0}', space=sflag, size = 0x4, scoped, tag = 'scoped memory for tpu_custom_call.1']
    #allocation16 [shape = 'u8[512]{0}', space=vmem, size = 0x400, scoped, tag = 'input window, operand 8, single buffered']
    #allocation17 [shape = 'u8[512]{0}', space=vmem, size = 0x400, scoped, tag = 'input window, operand 10, single buffered']
    #allocation18 [shape = 's32[1]{0}', space=sflag, size = 0x4, scoped, tag = 'scoped memory for tpu_custom_call.1']
    #allocation19 [shape = 'u8[16384]{0}', space=vmem, size = 0x4000, scoped, tag = 'input window, operand 11, single buffered']
    #allocation20 [shape = 'u8[512]{0}', space=vmem, size = 0x400, scoped, tag = 'input window, operand 12, single buffered']
    #allocation21 [shape = 's32[1]{0}', space=sflag, size = 0x4, scoped, tag = 'scoped memory for tpu_custom_call.1']
    #allocation22 [shape = 'u8[512]{0}', space=vmem, size = 0x400, scoped, tag = 'input window, operand 13, single buffered']
    #allocation23 [shape = 'u8[512]{0}', space=vmem, size = 0x400, scoped, tag = 'input window, operand 14, single buffered']
    #allocation24 [shape = 's32[1]{0}', space=sflag, size = 0x4, scoped, tag = 'scoped memory for tpu_custom_call.1']
    #allocation25 [shape = 'u8[16384]{0}', space=vmem, size = 0x4000, scoped, tag = 'input window, operand 15, single buffered']
    #allocation26 [shape = 'u8[512]{0}', space=vmem, size = 0x400, scoped, tag = 'input window, operand 16, single buffered']
    #allocation27 [shape = 's32[1]{0}', space=sflag, size = 0x4, scoped, tag = 'scoped memory for tpu_custom_call.1']
    #allocation28 [shape = 'u8[8192]{0}', space=vmem, size = 0x2000, scoped, tag = 'output window, operand 0']
    %24 = vsyncpa [#allocation3], 0
    %s25 = scalar_lea.sflag [#allocation3], 1
    %26 = vsyncpa %s25, 0
    %27 = vsyncpa [#allocation6], 0
    %s28 = scalar_lea.sflag [#allocation6], 1
    %29 = vsyncpa %s28, 0
    %30 = vsyncpa [#allocation9], 0
    %31 = vsyncpa [#allocation12], 0
    %32 = vsyncpa [#allocation15], 0
    %33 = vsyncpa [#allocation18], 0
    %34 = vsyncpa [#allocation21], 0
    %35 = vsyncpa [#allocation24], 0
    %36 = vsyncpa [#allocation27], 0
    %37 = vsyncpa [#allocation4], 0
    %s38 = scalar_lea.sflag [#allocation4], 1
    %39 = vsyncpa %s38, 0
    loop: start=0, step=1, limit=4
    $region2: #{tpu_custom_call.1} parent=1 // loop_pre_header
      _
    $region3: #{tpu_custom_call.1} parent=1 // loop_header
      %s41 = sphi 0, %s45
      %p42 = scmp.ge.s32.totalorder %s41, 4
      %s51 = sphi 0, %s53
      %s54 = sphi 0, %s51
      %s55 = sphi 0, %s54
      %s71 = sphi 0, %s55
      %s77 = sphi 0, %s79
      %s80 = sphi 0, %s77
      %s81 = sphi 0, %s80
      %s97 = sphi 0, %s81
      %s103 = sphi 0, %s105
      %s106 = sphi 0, %s103
      %s107 = sphi 0, %s106
      %s123 = sphi 0, %s107
      %s127 = sphi 0, %s127
      %s129 = sphi 0, %s127
      %s130 = sphi 0, %s129
      %s144 = sphi 0, %s130
      %s148 = sphi 0, %s148
      %s150 = sphi 0, %s148
      %s151 = sphi 0, %s150
      %s165 = sphi 0, %s151
      %s169 = sphi 0, %s169
      %s171 = sphi 0, %s169
      %s172 = sphi 0, %s171
      %s186 = sphi 0, %s172
      %s190 = sphi 0, %s190
      %s192 = sphi 0, %s190
      %s193 = sphi 0, %s192
      %s207 = sphi 0, %s193
      %s211 = sphi 0, %s211
      %s213 = sphi 0, %s211
      %s214 = sphi 0, %s213
      %s228 = sphi 0, %s214
      %s232 = sphi 0, %s232
      %s234 = sphi 0, %s232
      %s235 = sphi 0, %s234
      %s249 = sphi 0, %s235
      %s253 = sphi 0, %s253
      %s255 = sphi 0, %s253
      %s256 = sphi 0, %s255
      %s270 = sphi 0, %s256
      %s274 = sphi 0, %s274
      %s276 = sphi 0, %s274
      %s277 = sphi 0, %s276
      %s291 = sphi 0, %s277
      %s295 = sphi 0, %s295
      %s297 = sphi 0, %s295
      %s298 = sphi 0, %s297
      %s312 = sphi 0, %s298
      %s316 = sphi 0, %s316
      %s318 = sphi 0, %s316
      %s319 = sphi 0, %s318
      %s333 = sphi 0, %s319
      %s337 = sphi 0, %s337
      %s339 = sphi 0, %s337
      %s340 = sphi 0, %s339
      %s354 = sphi 0, %s340
      %s358 = sphi 0, %s358
      %s360 = sphi 0, %s358
      %s361 = sphi 0, %s360
      %s375 = sphi 0, %s361
      %s379 = sphi 0, %s379
      %s381 = sphi 0, %s379
      %s382 = sphi 0, %s381
      %s396 = sphi 0, %s382
      %s400 = sphi 0, %s400
      %s402 = sphi 0, %s400
      %s403 = sphi 0, %s402
      %s417 = sphi 0, %s403
      %s421 = sphi 0, %s421
      %s423 = sphi 0, %s421
      %s424 = sphi 0, %s423
      %s438 = sphi 0, %s424
      %s442 = sphi 0, %s442
      %s444 = sphi 0, %s442
      %s445 = sphi 0, %s444
      %s459 = sphi 0, %s445
      %s465 = sphi 0, %s467
      %s468 = sphi 0, %s465
      %s469 = sphi 0, %s468
      %s485 = sphi 0, %s469
    $region4: #{tpu_custom_call.1} parent=1 // loop_header_branch
      %44 = sbr.rel (%p42) target = $region8
    $region5: #{tpu_custom_call.1} parent=1 // loop_body
      %s46 = ssub.s32 %s41, 1
      %s47 = ssub.s32 %s41, 2
      %s48 = sadd.s32 %s41, 1
      %s49 = ssub.s32 %s41, %s48
      %p50 = scmp.eq.s32.totalorder %s49, 0
      %s52 = sadd.s32 %s51, 1
      %s53 = scalar_select %p50, %s51, %s52
      %p56 = pneg %p50
      %p57 = scmp.eq.s32.totalorder %s41, 1
      %p58 = por %p56, %p57
      %p59 = scmp.ne.s32.totalorder %s51, %s54
      %p60 = scmp.eq.s32.totalorder %s41, 0
      %p61 = por %p59, %p60
      %p62 = scmp.ne.s32.totalorder %s51, %s54
      %p63 = scmp.eq.s32.totalorder %s46, 1
      %p64 = por %p62, %p63
      %p65 = scmp.ne.s32.totalorder %s54, %s55
      %p66 = scmp.eq.s32.totalorder %s46, 0
      %p67 = por %p65, %p66
      %p68 = scmp.ne.s32.totalorder %s54, %s55
      %p69 = scmp.eq.s32.totalorder %s47, 1
      %p70 = por %p68, %p69
      %p72 = scmp.ne.s32.totalorder %s55, %s71
      %p73 = scmp.eq.s32.totalorder %s47, 0
      %p74 = por %p72, %p73
      %s75 = ssub.s32 %s41, %s48
      %p76 = scmp.eq.s32.totalorder %s75, 0
      %s78 = sadd.s32 %s77, 1
      %s79 = scalar_select %p76, %s77, %s78
      %p82 = pneg %p76
      %p83 = scmp.eq.s32.totalorder %s41, 1
      %p84 = por %p82, %p83
      %p85 = scmp.ne.s32.totalorder %s77, %s80
      %p86 = scmp.eq.s32.totalorder %s41, 0
      %p87 = por %p85, %p86
      %p88 = scmp.ne.s32.totalorder %s77, %s80
      %p89 = scmp.eq.s32.totalorder %s46, 1
      %p90 = por %p88, %p89
      %p91 = scmp.ne.s32.totalorder %s80, %s81
      %p92 = scmp.eq.s32.totalorder %s46, 0
      %p93 = por %p91, %p92
      %p94 = scmp.ne.s32.totalorder %s80, %s81
      %p95 = scmp.eq.s32.totalorder %s47, 1
      %p96 = por %p94, %p95
      %p98 = scmp.ne.s32.totalorder %s81, %s97
      %p99 = scmp.eq.s32.totalorder %s47, 0
      %p100 = por %p98, %p99
      %s101 = ssub.s32 %s41, %s48
      %p102 = scmp.eq.s32.totalorder %s101, 0
      %s104 = sadd.s32 %s103, 1
      %s105 = scalar_select %p102, %s103, %s104
      %p108 = pneg %p102
      %p109 = scmp.eq.s32.totalorder %s41, 1
      %p110 = por %p108, %p109
      %p111 = scmp.ne.s32.totalorder %s103, %s106
      %p112 = scmp.eq.s32.totalorder %s41, 0
      %p113 = por %p111, %p112
      %p114 = scmp.ne.s32.totalorder %s103, %s106
      %p115 = scmp.eq.s32.totalorder %s46, 1
      %p116 = por %p114, %p115
      %p117 = scmp.ne.s32.totalorder %s106, %s107
      %p118 = scmp.eq.s32.totalorder %s46, 0
      %p119 = por %p117, %p118
      %p120 = scmp.ne.s32.totalorder %s106, %s107
      %p121 = scmp.eq.s32.totalorder %s47, 1
      %p122 = por %p120, %p121
      %p124 = scmp.ne.s32.totalorder %s107, %s123
      %p125 = scmp.eq.s32.totalorder %s47, 0
      %p126 = por %p124, %p125
      %s128 = sadd.s32 %s127, 1
      %p131 = scmp.eq.s32.totalorder %s41, 1
      %p132 = scmp.ne.s32.totalorder %s127, %s129
      %p133 = scmp.eq.s32.totalorder %s41, 0
      %p134 = por %p132, %p133
      %p135 = scmp.ne.s32.totalorder %s127, %s129
      %p136 = scmp.eq.s32.totalorder %s46, 1
      %p137 = por %p135, %p136
      %p138 = scmp.ne.s32.totalorder %s129, %s130
      %p139 = scmp.eq.s32.totalorder %s46, 0
      %p140 = por %p138, %p139
      %p141 = scmp.ne.s32.totalorder %s129, %s130
      %p142 = scmp.eq.s32.totalorder %s47, 1
      %p143 = por %p141, %p142
      %p145 = scmp.ne.s32.totalorder %s130, %s144
      %p146 = scmp.eq.s32.totalorder %s47, 0
      %p147 = por %p145, %p146
      %s149 = sadd.s32 %s148, 1
      %p152 = scmp.eq.s32.totalorder %s41, 1
      %p153 = scmp.ne.s32.totalorder %s148, %s150
      %p154 = scmp.eq.s32.totalorder %s41, 0
      %p155 = por %p153, %p154
      %p156 = scmp.ne.s32.totalorder %s148, %s150
      %p157 = scmp.eq.s32.totalorder %s46, 1
      %p158 = por %p156, %p157
      %p159 = scmp.ne.s32.totalorder %s150, %s151
      %p160 = scmp.eq.s32.totalorder %s46, 0
      %p161 = por %p159, %p160
      %p162 = scmp.ne.s32.totalorder %s150, %s151
      %p163 = scmp.eq.s32.totalorder %s47, 1
      %p164 = por %p162, %p163
      %p166 = scmp.ne.s32.totalorder %s151, %s165
      %p167 = scmp.eq.s32.totalorder %s47, 0
      %p168 = por %p166, %p167
      %s170 = sadd.s32 %s169, 1
      %p173 = scmp.eq.s32.totalorder %s41, 1
      %p174 = scmp.ne.s32.totalorder %s169, %s171
      %p175 = scmp.eq.s32.totalorder %s41, 0
      %p176 = por %p174, %p175
      %p177 = scmp.ne.s32.totalorder %s169, %s171
      %p178 = scmp.eq.s32.totalorder %s46, 1
      %p179 = por %p177, %p178
      %p180 = scmp.ne.s32.totalorder %s171, %s172
      %p181 = scmp.eq.s32.totalorder %s46, 0
      %p182 = por %p180, %p181
      %p183 = scmp.ne.s32.totalorder %s171, %s172
      %p184 = scmp.eq.s32.totalorder %s47, 1
      %p185 = por %p183, %p184
      %p187 = scmp.ne.s32.totalorder %s172, %s186
      %p188 = scmp.eq.s32.totalorder %s47, 0
      %p189 = por %p187, %p188
      %s191 = sadd.s32 %s190, 1
      %p194 = scmp.eq.s32.totalorder %s41, 1
      %p195 = scmp.ne.s32.totalorder %s190, %s192
      %p196 = scmp.eq.s32.totalorder %s41, 0
      %p197 = por %p195, %p196
      %p198 = scmp.ne.s32.totalorder %s190, %s192
      %p199 = scmp.eq.s32.totalorder %s46, 1
      %p200 = por %p198, %p199
      %p201 = scmp.ne.s32.totalorder %s192, %s193
      %p202 = scmp.eq.s32.totalorder %s46, 0
      %p203 = por %p201, %p202
      %p204 = scmp.ne.s32.totalorder %s192, %s193
      %p205 = scmp.eq.s32.totalorder %s47, 1
      %p206 = por %p204, %p205
      %p208 = scmp.ne.s32.totalorder %s193, %s207
      %p209 = scmp.eq.s32.totalorder %s47, 0
      %p210 = por %p208, %p209
      %s212 = sadd.s32 %s211, 1
      %p215 = scmp.eq.s32.totalorder %s41, 1
      %p216 = scmp.ne.s32.totalorder %s211, %s213
      %p217 = scmp.eq.s32.totalorder %s41, 0
      %p218 = por %p216, %p217
      %p219 = scmp.ne.s32.totalorder %s211, %s213
      %p220 = scmp.eq.s32.totalorder %s46, 1
      %p221 = por %p219, %p220
      %p222 = scmp.ne.s32.totalorder %s213, %s214
      %p223 = scmp.eq.s32.totalorder %s46, 0
      %p224 = por %p222, %p223
      %p225 = scmp.ne.s32.totalorder %s213, %s214
      %p226 = scmp.eq.s32.totalorder %s47, 1
      %p227 = por %p225, %p226
      %p229 = scmp.ne.s32.totalorder %s214, %s228
      %p230 = scmp.eq.s32.totalorder %s47, 0
      %p231 = por %p229, %p230
      %s233 = sadd.s32 %s232, 1
      %p236 = scmp.eq.s32.totalorder %s41, 1
      %p237 = scmp.ne.s32.totalorder %s232, %s234
      %p238 = scmp.eq.s32.totalorder %s41, 0
      %p239 = por %p237, %p238
      %p240 = scmp.ne.s32.totalorder %s232, %s234
      %p241 = scmp.eq.s32.totalorder %s46, 1
      %p242 = por %p240, %p241
      %p243 = scmp.ne.s32.totalorder %s234, %s235
      %p244 = scmp.eq.s32.totalorder %s46, 0
      %p245 = por %p243, %p244
      %p246 = scmp.ne.s32.totalorder %s234, %s235
      %p247 = scmp.eq.s32.totalorder %s47, 1
      %p248 = por %p246, %p247
      %p250 = scmp.ne.s32.totalorder %s235, %s249
      %p251 = scmp.eq.s32.totalorder %s47, 0
      %p252 = por %p250, %p251
      %s254 = sadd.s32 %s253, 1
      %p257 = scmp.eq.s32.totalorder %s41, 1
      %p258 = scmp.ne.s32.totalorder %s253, %s255
      %p259 = scmp.eq.s32.totalorder %s41, 0
      %p260 = por %p258, %p259
      %p261 = scmp.ne.s32.totalorder %s253, %s255
      %p262 = scmp.eq.s32.totalorder %s46, 1
      %p263 = por %p261, %p262
      %p264 = scmp.ne.s32.totalorder %s255, %s256
      %p265 = scmp.eq.s32.totalorder %s46, 0
      %p266 = por %p264, %p265
      %p267 = scmp.ne.s32.totalorder %s255, %s256
      %p268 = scmp.eq.s32.totalorder %s47, 1
      %p269 = por %p267, %p268
      %p271 = scmp.ne.s32.totalorder %s256, %s270
      %p272 = scmp.eq.s32.totalorder %s47, 0
      %p273 = por %p271, %p272
      %s275 = sadd.s32 %s274, 1
      %p278 = scmp.eq.s32.totalorder %s41, 1
      %p279 = scmp.ne.s32.totalorder %s274, %s276
      %p280 = scmp.eq.s32.totalorder %s41, 0
      %p281 = por %p279, %p280
      %p282 = scmp.ne.s32.totalorder %s274, %s276
      %p283 = scmp.eq.s32.totalorder %s46, 1
      %p284 = por %p282, %p283
      %p285 = scmp.ne.s32.totalorder %s276, %s277
      %p286 = scmp.eq.s32.totalorder %s46, 0
      %p287 = por %p285, %p286
      %p288 = scmp.ne.s32.totalorder %s276, %s277
      %p289 = scmp.eq.s32.totalorder %s47, 1
      %p290 = por %p288, %p289
      %p292 = scmp.ne.s32.totalorder %s277, %s291
      %p293 = scmp.eq.s32.totalorder %s47, 0
      %p294 = por %p292, %p293
      %s296 = sadd.s32 %s295, 1
      %p299 = scmp.eq.s32.totalorder %s41, 1
      %p300 = scmp.ne.s32.totalorder %s295, %s297
      %p301 = scmp.eq.s32.totalorder %s41, 0
      %p302 = por %p300, %p301
      %p303 = scmp.ne.s32.totalorder %s295, %s297
      %p304 = scmp.eq.s32.totalorder %s46, 1
      %p305 = por %p303, %p304
      %p306 = scmp.ne.s32.totalorder %s297, %s298
      %p307 = scmp.eq.s32.totalorder %s46, 0
      %p308 = por %p306, %p307
      %p309 = scmp.ne.s32.totalorder %s297, %s298
      %p310 = scmp.eq.s32.totalorder %s47, 1
      %p311 = por %p309, %p310
      %p313 = scmp.ne.s32.totalorder %s298, %s312
      %p314 = scmp.eq.s32.totalorder %s47, 0
      %p315 = por %p313, %p314
      %s317 = sadd.s32 %s316, 1
      %p320 = scmp.eq.s32.totalorder %s41, 1
      %p321 = scmp.ne.s32.totalorder %s316, %s318
      %p322 = scmp.eq.s32.totalorder %s41, 0
      %p323 = por %p321, %p322
      %p324 = scmp.ne.s32.totalorder %s316, %s318
      %p325 = scmp.eq.s32.totalorder %s46, 1
      %p326 = por %p324, %p325
      %p327 = scmp.ne.s32.totalorder %s318, %s319
      %p328 = scmp.eq.s32.totalorder %s46, 0
      %p329 = por %p327, %p328
      %p330 = scmp.ne.s32.totalorder %s318, %s319
      %p331 = scmp.eq.s32.totalorder %s47, 1
      %p332 = por %p330, %p331
      %p334 = scmp.ne.s32.totalorder %s319, %s333
      %p335 = scmp.eq.s32.totalorder %s47, 0
      %p336 = por %p334, %p335
      %s338 = sadd.s32 %s337, 1
      %p341 = scmp.eq.s32.totalorder %s41, 1
      %p342 = scmp.ne.s32.totalorder %s337, %s339
      %p343 = scmp.eq.s32.totalorder %s41, 0
      %p344 = por %p342, %p343
      %p345 = scmp.ne.s32.totalorder %s337, %s339
      %p346 = scmp.eq.s32.totalorder %s46, 1
      %p347 = por %p345, %p346
      %p348 = scmp.ne.s32.totalorder %s339, %s340
      %p349 = scmp.eq.s32.totalorder %s46, 0
      %p350 = por %p348, %p349
      %p351 = scmp.ne.s32.totalorder %s339, %s340
      %p352 = scmp.eq.s32.totalorder %s47, 1
      %p353 = por %p351, %p352
      %p355 = scmp.ne.s32.totalorder %s340, %s354
      %p356 = scmp.eq.s32.totalorder %s47, 0
      %p357 = por %p355, %p356
      %s359 = sadd.s32 %s358, 1
      %p362 = scmp.eq.s32.totalorder %s41, 1
      %p363 = scmp.ne.s32.totalorder %s358, %s360
      %p364 = scmp.eq.s32.totalorder %s41, 0
      %p365 = por %p363, %p364
      %p366 = scmp.ne.s32.totalorder %s358, %s360
      %p367 = scmp.eq.s32.totalorder %s46, 1
      %p368 = por %p366, %p367
      %p369 = scmp.ne.s32.totalorder %s360, %s361
      %p370 = scmp.eq.s32.totalorder %s46, 0
      %p371 = por %p369, %p370
      %p372 = scmp.ne.s32.totalorder %s360, %s361
      %p373 = scmp.eq.s32.totalorder %s47, 1
      %p374 = por %p372, %p373
      %p376 = scmp.ne.s32.totalorder %s361, %s375
      %p377 = scmp.eq.s32.totalorder %s47, 0
      %p378 = por %p376, %p377
      %s380 = sadd.s32 %s379, 1
      %p383 = scmp.eq.s32.totalorder %s41, 1
      %p384 = scmp.ne.s32.totalorder %s379, %s381
      %p385 = scmp.eq.s32.totalorder %s41, 0
      %p386 = por %p384, %p385
      %p387 = scmp.ne.s32.totalorder %s379, %s381
      %p388 = scmp.eq.s32.totalorder %s46, 1
      %p389 = por %p387, %p388
      %p390 = scmp.ne.s32.totalorder %s381, %s382
      %p391 = scmp.eq.s32.totalorder %s46, 0
      %p392 = por %p390, %p391
      %p393 = scmp.ne.s32.totalorder %s381, %s382
      %p394 = scmp.eq.s32.totalorder %s47, 1
      %p395 = por %p393, %p394
      %p397 = scmp.ne.s32.totalorder %s382, %s396
      %p398 = scmp.eq.s32.totalorder %s47, 0
      %p399 = por %p397, %p398
      %s401 = sadd.s32 %s400, 1
      %p404 = scmp.eq.s32.totalorder %s41, 1
      %p405 = scmp.ne.s32.totalorder %s400, %s402
      %p406 = scmp.eq.s32.totalorder %s41, 0
      %p407 = por %p405, %p406
      %p408 = scmp.ne.s32.totalorder %s400, %s402
      %p409 = scmp.eq.s32.totalorder %s46, 1
      %p410 = por %p408, %p409
      %p411 = scmp.ne.s32.totalorder %s402, %s403
      %p412 = scmp.eq.s32.totalorder %s46, 0
      %p413 = por %p411, %p412
      %p414 = scmp.ne.s32.totalorder %s402, %s403
      %p415 = scmp.eq.s32.totalorder %s47, 1
      %p416 = por %p414, %p415
      %p418 = scmp.ne.s32.totalorder %s403, %s417
      %p419 = scmp.eq.s32.totalorder %s47, 0
      %p420 = por %p418, %p419
      %s422 = sadd.s32 %s421, 1
      %p425 = scmp.eq.s32.totalorder %s41, 1
      %p426 = scmp.ne.s32.totalorder %s421, %s423
      %p427 = scmp.eq.s32.totalorder %s41, 0
      %p428 = por %p426, %p427
      %p429 = scmp.ne.s32.totalorder %s421, %s423
      %p430 = scmp.eq.s32.totalorder %s46, 1
      %p431 = por %p429, %p430
      %p432 = scmp.ne.s32.totalorder %s423, %s424
      %p433 = scmp.eq.s32.totalorder %s46, 0
      %p434 = por %p432, %p433
      %p435 = scmp.ne.s32.totalorder %s423, %s424
      %p436 = scmp.eq.s32.totalorder %s47, 1
      %p437 = por %p435, %p436
      %p439 = scmp.ne.s32.totalorder %s424, %s438
      %p440 = scmp.eq.s32.totalorder %s47, 0
      %p441 = por %p439, %p440
      %s443 = sadd.s32 %s442, 1
      %p446 = scmp.eq.s32.totalorder %s41, 1
      %p447 = scmp.ne.s32.totalorder %s442, %s444
      %p448 = scmp.eq.s32.totalorder %s41, 0
      %p449 = por %p447, %p448
      %p450 = scmp.ne.s32.totalorder %s442, %s444
      %p451 = scmp.eq.s32.totalorder %s46, 1
      %p452 = por %p450, %p451
      %p453 = scmp.ne.s32.totalorder %s444, %s445
      %p454 = scmp.eq.s32.totalorder %s46, 0
      %p455 = por %p453, %p454
      %p456 = scmp.ne.s32.totalorder %s444, %s445
      %p457 = scmp.eq.s32.totalorder %s47, 1
      %p458 = por %p456, %p457
      %p460 = scmp.ne.s32.totalorder %s445, %s459
      %p461 = scmp.eq.s32.totalorder %s47, 0
      %p462 = por %p460, %p461
      %s463 = ssub.s32 %s41, %s48
      %p464 = scmp.eq.s32.totalorder %s463, 0
      %s466 = sadd.s32 %s465, 1
      %s467 = scalar_select %p464, %s465, %s466
      %p470 = pneg %p464
      %p471 = scmp.eq.s32.totalorder %s41, 1
      %p472 = por %p470, %p471
      %p473 = scmp.ne.s32.totalorder %s465, %s468
      %p474 = scmp.eq.s32.totalorder %s41, 0
      %p475 = por %p473, %p474
      %p476 = scmp.ne.s32.totalorder %s465, %s468
      %p477 = scmp.eq.s32.totalorder %s46, 1
      %p478 = por %p476, %p477
      %p479 = scmp.ne.s32.totalorder %s468, %s469
      %p480 = scmp.eq.s32.totalorder %s46, 0
      %p481 = por %p479, %p480
      %p482 = scmp.ne.s32.totalorder %s468, %s469
      %p483 = scmp.eq.s32.totalorder %s47, 1
      %p484 = por %p482, %p483
      %p486 = scmp.ne.s32.totalorder %s469, %s485
      %p487 = scmp.eq.s32.totalorder %s47, 0
      %p488 = por %p486, %p487
      %p489 = scmp.le.s32.totalorder 1, %s41
      %p490 = scmp.lt.s32.totalorder %s41, 3
      %p491 = pnand %p489, %p490
      %p492 = pneg %p491
      // Predicated region
      $region9: #{tpu_custom_call.1} parent=5 // pred_check
        _
      $region10: #{tpu_custom_call.1} parent=5 // pred_check_branch
        %494 = sbr.rel (%p491) target = $region12
      $region11: #{tpu_custom_call.1} parent=5 // pred_region
        %s495 = ssub.s32 %s41, 1
        // Predicated region
        $region13: #{tpu_custom_call.1} parent=11 // pred_check
          %p496 = pneg %p140
        $region14: #{tpu_custom_call.1} parent=11 // pred_check_branch
          %498 = sbr.rel (%p496) target = $region16
        $region15: #{tpu_custom_call.1} parent=11 // pred_region
          %s500 = ssub.s32 512, 512
          %501 = vsyncadd [#allocation9], %s500
          %s502 = sshll.u32 [#allocation8], 4
          %s503 = int_to_ptr.vmem [resolvable:$true] %s502
          %508 = dma.hbm_to_vmem [thread:$0]  %s3, 512, %s503, [#allocation9], 128, 128, 8
        $region16: #{tpu_custom_call.1} parent=11 // pred_fallthru
          _
        // Predicated region
        $region17: #{tpu_custom_call.1} parent=11 // pred_check
          %p509 = pneg %p161
        $region18: #{tpu_custom_call.1} parent=11 // pred_check_branch
          %511 = sbr.rel (%p509) target = $region20
        $region19: #{tpu_custom_call.1} parent=11 // pred_region
          %s513 = ssub.s32 16, 16
          %514 = vsyncadd [#allocation9], %s513
          %s516 = sshll.u32 [#allocation10], 4
          %s517 = int_to_ptr.vmem [resolvable:$true] %s516
          %519 = dma.hbm_to_vmem [thread:$0]  %s4, 16, %s517, [#allocation9]
        $region20: #{tpu_custom_call.1} parent=11 // pred_fallthru
          _
        // Predicated region
        $region21: #{tpu_custom_call.1} parent=11 // pred_check
          %p520 = pneg %p182
        $region22: #{tpu_custom_call.1} parent=11 // pred_check_branch
          %522 = sbr.rel (%p520) target = $region24
        $region23: #{tpu_custom_call.1} parent=11 // pred_region
          %s524 = ssub.s32 512, 512
          %525 = vsyncadd [#allocation12], %s524
          %s526 = sshll.u32 [#allocation11], 4
          %s527 = int_to_ptr.vmem [resolvable:$true] %s526
          %532 = dma.hbm_to_vmem [thread:$0]  %s5, 512, %s527, [#allocation12], 128, 128, 8
        $region24: #{tpu_custom_call.1} parent=11 // pred_fallthru
          _
        // Predicated region
        $region25: #{tpu_custom_call.1} parent=11 // pred_check
          %p533 = pneg %p203
        $region26: #{tpu_custom_call.1} parent=11 // pred_check_branch
          %535 = sbr.rel (%p533) target = $region28
        $region27: #{tpu_custom_call.1} parent=11 // pred_region
          %s537 = ssub.s32 16, 16
          %538 = vsyncadd [#allocation12], %s537
          %s540 = sshll.u32 [#allocation13], 4
          %s541 = int_to_ptr.vmem [resolvable:$true] %s540
          %543 = dma.hbm_to_vmem [thread:$0]  %s6, 16, %s541, [#allocation12]
        $region28: #{tpu_custom_call.1} parent=11 // pred_fallthru
          _
        // Predicated region
        $region29: #{tpu_custom_call.1} parent=11 // pred_check
          %p544 = pneg %p224
        $region30: #{tpu_custom_call.1} parent=11 // pred_check_branch
          %546 = sbr.rel (%p544) target = $region32
        $region31: #{tpu_custom_call.1} parent=11 // pred_region
          %s548 = ssub.s32 512, 512
          %549 = vsyncadd [#allocation15], %s548
          %s550 = sshll.u32 [#allocation14], 4
          %s551 = int_to_ptr.vmem [resolvable:$true] %s550
          %556 = dma.hbm_to_vmem [thread:$0]  %s7, 512, %s551, [#allocation15], 128, 128, 8
        $region32: #{tpu_custom_call.1} parent=11 // pred_fallthru
          _
        // Predicated region
        $region33: #{tpu_custom_call.1} parent=11 // pred_check
          %p557 = pneg %p245
        $region34: #{tpu_custom_call.1} parent=11 // pred_check_branch
          %559 = sbr.rel (%p557) target = $region36
        $region35: #{tpu_custom_call.1} parent=11 // pred_region
          %s561 = ssub.s32 16, 16
          %562 = vsyncadd [#allocation15], %s561
          %s564 = sshll.u32 [#allocation16], 4
          %s565 = int_to_ptr.vmem [resolvable:$true] %s564
          %567 = dma.hbm_to_vmem [thread:$0]  %s8, 16, %s565, [#allocation15]
        $region36: #{tpu_custom_call.1} parent=11 // pred_fallthru
          _
        // Predicated region
        $region37: #{tpu_custom_call.1} parent=11 // pred_check
          %p568 = pneg %p266
        $region38: #{tpu_custom_call.1} parent=11 // pred_check_branch
          %570 = sbr.rel (%p568) target = $region40
        $region39: #{tpu_custom_call.1} parent=11 // pred_region
          _
        $region40: #{tpu_custom_call.1} parent=11 // pred_fallthru
          _
        // Predicated region
        $region41: #{tpu_custom_call.1} parent=11 // pred_check
          %p571 = pneg %p287
        $region42: #{tpu_custom_call.1} parent=11 // pred_check_branch
          %573 = sbr.rel (%p571) target = $region44
        $region43: #{tpu_custom_call.1} parent=11 // pred_region
          %s575 = ssub.s32 16, 16
          %576 = vsyncadd [#allocation18], %s575
          %s578 = sshll.u32 [#allocation17], 4
          %s579 = int_to_ptr.vmem [resolvable:$true] %s578
          %581 = dma.hbm_to_vmem [thread:$0]  %s10, 16, %s579, [#allocation18]
        $region44: #{tpu_custom_call.1} parent=11 // pred_fallthru
          _
        // Predicated region
        $region45: #{tpu_custom_call.1} parent=11 // pred_check
          %p582 = pneg %p308
        $region46: #{tpu_custom_call.1} parent=11 // pred_check_branch
          %584 = sbr.rel (%p582) target = $region48
        $region47: #{tpu_custom_call.1} parent=11 // pred_region
          %s586 = ssub.s32 512, 512
          %587 = vsyncadd [#allocation18], %s586
          %s588 = sshll.u32 [#allocation19], 4
          %s589 = int_to_ptr.vmem [resolvable:$true] %s588
          %594 = dma.hbm_to_vmem [thread:$0]  %s11, 512, %s589, [#allocation18], 128, 128, 8
        $region48: #{tpu_custom_call.1} parent=11 // pred_fallthru
          _
        // Predicated region
        $region49: #{tpu_custom_call.1} parent=11 // pred_check
          %p595 = pneg %p329
        $region50: #{tpu_custom_call.1} parent=11 // pred_check_branch
          %597 = sbr.rel (%p595) target = $region52
        $region51: #{tpu_custom_call.1} parent=11 // pred_region
          %s599 = ssub.s32 16, 16
          %600 = vsyncadd [#allocation21], %s599
          %s602 = sshll.u32 [#allocation20], 4
          %s603 = int_to_ptr.vmem [resolvable:$true] %s602
          %605 = dma.hbm_to_vmem [thread:$0]  %s12, 16, %s603, [#allocation21]
        $region52: #{tpu_custom_call.1} parent=11 // pred_fallthru
          _
        // Predicated region
        $region53: #{tpu_custom_call.1} parent=11 // pred_check
          %p606 = pneg %p350
        $region54: #{tpu_custom_call.1} parent=11 // pred_check_branch
          %608 = sbr.rel (%p606) target = $region56
        $region55: #{tpu_custom_call.1} parent=11 // pred_region
          %s610 = ssub.s32 16, 16
          %611 = vsyncadd [#allocation21], %s610
          %s613 = sshll.u32 [#allocation22], 4
          %s614 = int_to_ptr.vmem [resolvable:$true] %s613
          %616 = dma.hbm_to_vmem [thread:$0]  %s13, 16, %s614, [#allocation21]
        $region56: #{tpu_custom_call.1} parent=11 // pred_fallthru
          _
        // Predicated region
        $region57: #{tpu_custom_call.1} parent=11 // pred_check
          %p617 = pneg %p371
        $region58: #{tpu_custom_call.1} parent=11 // pred_check_branch
          %619 = sbr.rel (%p617) target = $region60
        $region59: #{tpu_custom_call.1} parent=11 // pred_region
          %s621 = ssub.s32 16, 16
          %622 = vsyncadd [#allocation24], %s621
          %s624 = sshll.u32 [#allocation23], 4
          %s625 = int_to_ptr.vmem [resolvable:$true] %s624
          %627 = dma.hbm_to_vmem [thread:$0]  %s14, 16, %s625, [#allocation24]
        $region60: #{tpu_custom_call.1} parent=11 // pred_fallthru
          _
        // Predicated region
        $region61: #{tpu_custom_call.1} parent=11 // pred_check
          %p628 = pneg %p392
        $region62: #{tpu_custom_call.1} parent=11 // pred_check_branch
          %630 = sbr.rel (%p628) target = $region64
        $region63: #{tpu_custom_call.1} parent=11 // pred_region
          %s632 = ssub.s32 512, 512
          %633 = vsyncadd [#allocation24], %s632
          %s634 = sshll.u32 [#allocation25], 4
          %s635 = int_to_ptr.vmem [resolvable:$true] %s634
          %640 = dma.hbm_to_vmem [thread:$0]  %s15, 512, %s635, [#allocation24], 128, 128, 8
        $region64: #{tpu_custom_call.1} parent=11 // pred_fallthru
          _
        // Predicated region
        $region65: #{tpu_custom_call.1} parent=11 // pred_check
          %p641 = pneg %p413
        $region66: #{tpu_custom_call.1} parent=11 // pred_check_branch
          %643 = sbr.rel (%p641) target = $region68
        $region67: #{tpu_custom_call.1} parent=11 // pred_region
          %s645 = ssub.s32 16, 16
          %646 = vsyncadd [#allocation27], %s645
          %s648 = sshll.u32 [#allocation26], 4
          %s649 = int_to_ptr.vmem [resolvable:$true] %s648
          %651 = dma.hbm_to_vmem [thread:$0]  %s16, 16, %s649, [#allocation27]
        $region68: #{tpu_custom_call.1} parent=11 // pred_fallthru
          _
        // Predicated region
        $region69: #{tpu_custom_call.1} parent=11 // pred_check
          %p652 = pneg %p434
        $region70: #{tpu_custom_call.1} parent=11 // pred_check_branch
          %654 = sbr.rel (%p652) target = $region72
        $region71: #{tpu_custom_call.1} parent=11 // pred_region
          _
        $region72: #{tpu_custom_call.1} parent=11 // pred_fallthru
          _
        // Predicated region
        $region73: #{tpu_custom_call.1} parent=11 // pred_check
          %p655 = pneg %p455
        $region74: #{tpu_custom_call.1} parent=11 // pred_check_branch
          %657 = sbr.rel (%p655) target = $region76
        $region75: #{tpu_custom_call.1} parent=11 // pred_region
          _
        $region76: #{tpu_custom_call.1} parent=11 // pred_fallthru
          _
      $region12: #{tpu_custom_call.1} parent=5 // pred_fallthru
        _
      %p658 = scmp.lt.s32.totalorder %s41, 2
      // Predicated region
      $region77: #{tpu_custom_call.1} parent=5 // pred_check
        %p659 = pneg %p658
      $region78: #{tpu_custom_call.1} parent=5 // pred_check_branch
        %661 = sbr.rel (%p659) target = $region80
      $region79: #{tpu_custom_call.1} parent=5 // pred_region
        // Predicated region
        $region81: #{tpu_custom_call.1} parent=79 // pred_check
          %p662 = pneg %p61
        $region82: #{tpu_custom_call.1} parent=79 // pred_check_branch
          %664 = sbr.rel (%p662) target = $region84
        $region83: #{tpu_custom_call.1} parent=79 // pred_region
          %s665 = sand.u32 %s51, 1
          %s666 = scalar_lea.sflag [#allocation3], %s665
          %s667 = sand.u32 %s51, 1
          %s668 = smul.addr %s667, 8
          %s669 = scalar_lea.vmem [#allocation2], %s668
          %s671 = ssub.s32 128, 128
          %672 = vsyncadd %s666, %s671
          %s673 = smul.addr %s41, 128
          %s674 = scalar_lea.hbm %s0, %s673
          %s676 = sshll.u32 %s669, 4
          %s677 = int_to_ptr.vmem [resolvable:$true] %s676
          %679 = dma.hbm_to_vmem [thread:$0]  %s674, 128, %s677, %s666
        $region84: #{tpu_custom_call.1} parent=79 // pred_fallthru
          _
        // Predicated region
        $region85: #{tpu_custom_call.1} parent=79 // pred_check
          %p680 = pneg %p87
        $region86: #{tpu_custom_call.1} parent=79 // pred_check_branch
          %682 = sbr.rel (%p680) target = $region88
        $region87: #{tpu_custom_call.1} parent=79 // pred_region
          %s683 = sand.u32 %s41, 1
          %s684 = scalar_lea.sflag [#allocation6], %s683
          %s685 = sand.u32 %s77, 1
          %s686 = smul.addr %s685, 8
          %s687 = scalar_lea.vmem [#allocation5], %s686
          %s689 = ssub.s32 128, 128
          %690 = vsyncadd %s684, %s689
          %s691 = smul.addr %s41, 128
          %s692 = scalar_lea.hbm %s1, %s691
          %s694 = sshll.u32 %s687, 4
          %s695 = int_to_ptr.vmem [resolvable:$true] %s694
          %697 = dma.hbm_to_vmem [thread:$0]  %s692, 128, %s695, %s684
        $region88: #{tpu_custom_call.1} parent=79 // pred_fallthru
          _
        // Predicated region
        $region89: #{tpu_custom_call.1} parent=79 // pred_check
          %p698 = pneg %p113
        $region90: #{tpu_custom_call.1} parent=79 // pred_check_branch
          %700 = sbr.rel (%p698) target = $region92
        $region91: #{tpu_custom_call.1} parent=79 // pred_region
          %s701 = sand.u32 %s41, 1
          %s702 = scalar_lea.sflag [#allocation6], %s701
          %s703 = sand.u32 %s103, 1
          %s704 = smul.addr %s703, 8
          %s705 = scalar_lea.vmem [#allocation7], %s704
          %s707 = ssub.s32 128, 128
          %708 = vsyncadd %s702, %s707
          %s709 = smul.addr %s41, 128
          %s710 = scalar_lea.hbm %s2, %s709
          %s712 = sshll.u32 %s705, 4
          %s713 = int_to_ptr.vmem [resolvable:$true] %s712
          %715 = dma.hbm_to_vmem [thread:$0]  %s710, 128, %s713, %s702
        $region92: #{tpu_custom_call.1} parent=79 // pred_fallthru
          _
      $region80: #{tpu_custom_call.1} parent=5 // pred_fallthru
        _
      %p716 = scmp.le.s32.totalorder 1, %s41
      %p717 = scmp.lt.s32.totalorder %s41, 3
      %p718 = pnand %p716, %p717
      %p719 = pneg %p718
      // Predicated region
      $region93: #{tpu_custom_call.1} parent=5 // pred_check
        _
      $region94: #{tpu_custom_call.1} parent=5 // pred_check_branch
        %721 = sbr.rel (%p718) target = $region96
      $region95: #{tpu_custom_call.1} parent=5 // pred_region
        %s722 = ssub.s32 %s41, 1
        %s723 = sand.u32 %s54, 1
        %s724 = scalar_lea.sflag [#allocation3], %s723
        %s725 = sand.u32 %s54, 1
        %s726 = smul.addr %s725, 8
        %s727 = scalar_lea.vmem [#allocation2], %s726
        // Predicated region
        $region97: #{tpu_custom_call.1} parent=95 // pred_check
          %p728 = pneg %p67
        $region98: #{tpu_custom_call.1} parent=95 // pred_check_branch
          %730 = sbr.rel (%p728) target = $region100
        $region99: #{tpu_custom_call.1} parent=95 // pred_region
          %731 = dma.done %s724, 128
        $region100: #{tpu_custom_call.1} parent=95 // pred_fallthru
          _
        %s732 = sand.u32 %s46, 1
        %s733 = scalar_lea.sflag [#allocation6], %s732
        %s734 = sand.u32 %s80, 1
        %s735 = smul.addr %s734, 8
        %s736 = scalar_lea.vmem [#allocation5], %s735
        // Predicated region
        $region101: #{tpu_custom_call.1} parent=95 // pred_check
          %p737 = pneg %p93
        $region102: #{tpu_custom_call.1} parent=95 // pred_check_branch
          %739 = sbr.rel (%p737) target = $region104
        $region103: #{tpu_custom_call.1} parent=95 // pred_region
          %740 = dma.done %s733, 128
        $region104: #{tpu_custom_call.1} parent=95 // pred_fallthru
          _
        %s741 = sand.u32 %s46, 1
        %s742 = scalar_lea.sflag [#allocation6], %s741
        %s743 = sand.u32 %s106, 1
        %s744 = smul.addr %s743, 8
        %s745 = scalar_lea.vmem [#allocation7], %s744
        // Predicated region
        $region105: #{tpu_custom_call.1} parent=95 // pred_check
          %p746 = pneg %p119
        $region106: #{tpu_custom_call.1} parent=95 // pred_check_branch
          %748 = sbr.rel (%p746) target = $region108
        $region107: #{tpu_custom_call.1} parent=95 // pred_region
          %749 = dma.done %s742, 128
        $region108: #{tpu_custom_call.1} parent=95 // pred_fallthru
          _
        // Predicated region
        $region109: #{tpu_custom_call.1} parent=95 // pred_check
          %p750 = pneg %p140
        $region110: #{tpu_custom_call.1} parent=95 // pred_check_branch
          %752 = sbr.rel (%p750) target = $region112
        $region111: #{tpu_custom_call.1} parent=95 // pred_region
          %753 = dma.done [#allocation9], 512
        $region112: #{tpu_custom_call.1} parent=95 // pred_fallthru
          _
        // Predicated region
        $region113: #{tpu_custom_call.1} parent=95 // pred_check
          %p754 = pneg %p161
        $region114: #{tpu_custom_call.1} parent=95 // pred_check_branch
          %756 = sbr.rel (%p754) target = $region116
        $region115: #{tpu_custom_call.1} parent=95 // pred_region
          %757 = dma.done [#allocation9], 16
        $region116: #{tpu_custom_call.1} parent=95 // pred_fallthru
          _
        // Predicated region
        $region117: #{tpu_custom_call.1} parent=95 // pred_check
          %p758 = pneg %p182
        $region118: #{tpu_custom_call.1} parent=95 // pred_check_branch
          %760 = sbr.rel (%p758) target = $region120
        $region119: #{tpu_custom_call.1} parent=95 // pred_region
          %761 = dma.done [#allocation12], 512
        $region120: #{tpu_custom_call.1} parent=95 // pred_fallthru
          _
        // Predicated region
        $region121: #{tpu_custom_call.1} parent=95 // pred_check
          %p762 = pneg %p203
        $region122: #{tpu_custom_call.1} parent=95 // pred_check_branch
          %764 = sbr.rel (%p762) target = $region124
        $region123: #{tpu_custom_call.1} parent=95 // pred_region
          %765 = dma.done [#allocation12], 16
        $region124: #{tpu_custom_call.1} parent=95 // pred_fallthru
          _
        // Predicated region
        $region125: #{tpu_custom_call.1} parent=95 // pred_check
          %p766 = pneg %p224
        $region126: #{tpu_custom_call.1} parent=95 // pred_check_branch
          %768 = sbr.rel (%p766) target = $region128
        $region127: #{tpu_custom_call.1} parent=95 // pred_region
          %769 = dma.done [#allocation15], 512
        $region128: #{tpu_custom_call.1} parent=95 // pred_fallthru
          _
        // Predicated region
        $region129: #{tpu_custom_call.1} parent=95 // pred_check
          %p770 = pneg %p245
        $region130: #{tpu_custom_call.1} parent=95 // pred_check_branch
          %772 = sbr.rel (%p770) target = $region132
        $region131: #{tpu_custom_call.1} parent=95 // pred_region
          %773 = dma.done [#allocation15], 16
        $region132: #{tpu_custom_call.1} parent=95 // pred_fallthru
          _
        // Predicated region
        $region133: #{tpu_custom_call.1} parent=95 // pred_check
          %p774 = pneg %p287
        $region134: #{tpu_custom_call.1} parent=95 // pred_check_branch
          %776 = sbr.rel (%p774) target = $region136
        $region135: #{tpu_custom_call.1} parent=95 // pred_region
          %777 = dma.done [#allocation18], 16
        $region136: #{tpu_custom_call.1} parent=95 // pred_fallthru
          _
        // Predicated region
        $region137: #{tpu_custom_call.1} parent=95 // pred_check
          %p778 = pneg %p308
        $region138: #{tpu_custom_call.1} parent=95 // pred_check_branch
          %780 = sbr.rel (%p778) target = $region140
        $region139: #{tpu_custom_call.1} parent=95 // pred_region
          %781 = dma.done [#allocation18], 512
        $region140: #{tpu_custom_call.1} parent=95 // pred_fallthru
          _
        // Predicated region
        $region141: #{tpu_custom_call.1} parent=95 // pred_check
          %p782 = pneg %p329
        $region142: #{tpu_custom_call.1} parent=95 // pred_check_branch
          %784 = sbr.rel (%p782) target = $region144
        $region143: #{tpu_custom_call.1} parent=95 // pred_region
          %785 = dma.done [#allocation21], 16
        $region144: #{tpu_custom_call.1} parent=95 // pred_fallthru
          _
        // Predicated region
        $region145: #{tpu_custom_call.1} parent=95 // pred_check
          %p786 = pneg %p350
        $region146: #{tpu_custom_call.1} parent=95 // pred_check_branch
          %788 = sbr.rel (%p786) target = $region148
        $region147: #{tpu_custom_call.1} parent=95 // pred_region
          %789 = dma.done [#allocation21], 16
        $region148: #{tpu_custom_call.1} parent=95 // pred_fallthru
          _
        // Predicated region
        $region149: #{tpu_custom_call.1} parent=95 // pred_check
          %p790 = pneg %p371
        $region150: #{tpu_custom_call.1} parent=95 // pred_check_branch
          %792 = sbr.rel (%p790) target = $region152
        $region151: #{tpu_custom_call.1} parent=95 // pred_region
          %793 = dma.done [#allocation24], 16
        $region152: #{tpu_custom_call.1} parent=95 // pred_fallthru
          _
        // Predicated region
        $region153: #{tpu_custom_call.1} parent=95 // pred_check
          %p794 = pneg %p392
        $region154: #{tpu_custom_call.1} parent=95 // pred_check_branch
          %796 = sbr.rel (%p794) target = $region156
        $region155: #{tpu_custom_call.1} parent=95 // pred_region
          %797 = dma.done [#allocation24], 512
        $region156: #{tpu_custom_call.1} parent=95 // pred_fallthru
          _
        // Predicated region
        $region157: #{tpu_custom_call.1} parent=95 // pred_check
          %p798 = pneg %p413
        $region158: #{tpu_custom_call.1} parent=95 // pred_check_branch
          %800 = sbr.rel (%p798) target = $region160
        $region159: #{tpu_custom_call.1} parent=95 // pred_region
          %801 = dma.done [#allocation27], 16
        $region160: #{tpu_custom_call.1} parent=95 // pred_fallthru
          _
        %s802 = sand.u32 %s54, 1
        %s803 = scalar_lea.sflag [#allocation3], %s802
        %s804 = sand.u32 %s54, 1
        %s805 = smul.addr %s804, 8
        %s806 = scalar_lea.vmem [#allocation2], %s805
        %p807 = pneg %p67
        %p808 = pneg %p64
        %s809 = sand.u32 %s46, 1
        %s810 = scalar_lea.sflag [#allocation6], %s809
        %s811 = sand.u32 %s80, 1
        %s812 = smul.addr %s811, 8
        %s813 = scalar_lea.vmem [#allocation5], %s812
        %p814 = pneg %p93
        %p815 = pneg %p90
        %s816 = sand.u32 %s46, 1
        %s817 = scalar_lea.sflag [#allocation6], %s816
        %s818 = sand.u32 %s106, 1
        %s819 = smul.addr %s818, 8
        %s820 = scalar_lea.vmem [#allocation7], %s819
        %p821 = pneg %p119
        %p822 = pneg %p116
        %p823 = pneg %p140
        %p824 = pneg %p137
        %p825 = pneg %p161
        %p826 = pneg %p158
        %p827 = pneg %p182
        %p828 = pneg %p179
        %p829 = pneg %p203
        %p830 = pneg %p200
        %p831 = pneg %p224
        %p832 = pneg %p221
        %p833 = pneg %p245
        %p834 = pneg %p242
        %p835 = pneg %p266
        %p836 = pneg %p263
        %p837 = pneg %p287
        %p838 = pneg %p284
        %p839 = pneg %p308
        %p840 = pneg %p305
        %p841 = pneg %p329
        %p842 = pneg %p326
        %p843 = pneg %p350
        %p844 = pneg %p347
        %p845 = pneg %p371
        %p846 = pneg %p368
        %p847 = pneg %p392
        %p848 = pneg %p389
        %p849 = pneg %p413
        %p850 = pneg %p410
        %p851 = pneg %p434
        %p852 = pneg %p431
        %p853 = pneg %p455
        %p854 = pneg %p452
        %p855 = pneg %p481
        %p856 = pneg %p478
        %s857 = sand.u32 %s468, 1
        %s858 = scalar_lea.sflag [#allocation4], %s857
        %s859 = sand.u32 %s468, 1
        %s860 = smul.addr %s859, 8
        %s861 = scalar_lea.vmem [#allocation28], %s860
        %v862 = vld [vmem:[%s727] sm:$0xff]
        %v863 = vld [vmem:[%s736] sm:$0xff]
        %v864 = vld [vmem:[%s745] sm:$0xff]
        %v865 = vld [vmem:[#allocation8] sm:$0xff]
        %v866 = vld [vmem:[#allocation8 + $0x8] sm:$0xff]
        %v867 = vld [vmem:[#allocation8 + $0x10] sm:$0xff]
        %v868 = vld [vmem:[#allocation8 + $0x18] sm:$0xff]
        %v869 = vld [vmem:[#allocation10] sm:$0x1]
        %v871 = vlaneseq
        %v872 = vshrl.u32 %v871, 7
        %v873 = vsub.s32 0, %v872
        %v874 = vrot.slane %v869, %v873
        %vm876 = vcmask 261120
        %v878 = vsel %vm876, %v862, 0
        %880 = vmatprep.subr.mxu0 0.0
        %881 = vmatpush1.msra.mxu0 %v865
        %882 = vmatprep.subr.mxu0 0.0
        %883 = vmatpush1.msra.mxu0 %v866
        %884 = vmatprep.subr.mxu0 0.0
        %885 = vmatpush1.msra.mxu0 %v867
        %886 = vmatprep.subr.mxu0 0.0
        %887 = vmatpush1.msra.mxu0 %v868
        %888 = vmatprep.subr.mxu0 0.0
        %889 = vmatpush1.msra.mxu0 0.0
        %890 = vmatprep.subr.mxu0 0.0
        %891 = vmatpush1.msra.mxu0 0.0
        %892 = vmatprep.subr.mxu0 0.0
        %893 = vmatpush1.msra.mxu0 0.0
        %894 = vmatprep.subr.mxu0 0.0
        %895 = vmatpush1.msra.mxu0 0.0
        %896 = vmatprep.subr.mxu0 0.0
        %897 = vmatpush1.msra.mxu0 0.0
        %898 = vmatprep.subr.mxu0 0.0
        %899 = vmatpush1.msra.mxu0 0.0
        %900 = vmatprep.subr.mxu0 0.0
        %901 = vmatpush1.msra.mxu0 0.0
        %902 = vmatprep.subr.mxu0 0.0
        %903 = vmatpush1.msra.mxu0 0.0
        %904 = vmatprep.subr.mxu0 0.0
        %905 = vmatpush1.msra.mxu0 0.0
        %906 = vmatprep.subr.mxu0 0.0
        %907 = vmatpush1.msra.mxu0 0.0
        %908 = vmatprep.subr.mxu0 0.0
        %909 = vmatpush1.msra.mxu0 0.0
        %910 = vmatprep.subr.mxu0 0.0
        %911 = vmatpush1.msra.mxu0 0.0
        %912 = vmatprep.subr.mxu0 0.0
        %913 = vmatpush1.msra.mxu0 0.0
        %914 = vmatprep.subr.mxu0 0.0
        %915 = vmatpush1.msra.mxu0 0.0
        %916 = vmatprep.subr.mxu0 0.0
        %917 = vmatpush1.msra.mxu0 0.0
        %918 = vmatprep.subr.mxu0 0.0
        %919 = vmatpush1.msra.mxu0 0.0
        %920 = vmatprep.subr.mxu0 0.0
        %921 = vmatpush1.msra.mxu0 0.0
        %922 = vmatprep.subr.mxu0 0.0
        %923 = vmatpush1.msra.mxu0 0.0
        %924 = vmatprep.subr.mxu0 0.0
        %925 = vmatpush1.msra.mxu0 0.0
        %926 = vmatprep.subr.mxu0 0.0
        %927 = vmatpush1.msra.mxu0 0.0
        %928 = vmatprep.subr.mxu0 0.0
        %929 = vmatpush1.msra.mxu0 0.0
        %930 = vmatprep.subr.mxu0 0.0
        %931 = vmatpush1.msra.mxu0 0.0
        %932 = vmatprep.subr.mxu0 0.0
        %933 = vmatpush1.msra.mxu0 0.0
        %934 = vmatprep.subr.mxu0 0.0
        %935 = vmatpush1.msra.mxu0 0.0
        %936 = vmatprep.subr.mxu0 0.0
        %937 = vmatpush1.msra.mxu0 0.0
        %938 = vmatprep.subr.mxu0 0.0
        %939 = vmatpush1.msra.mxu0 0.0
        %940 = vmatprep.subr.mxu0 0.0
        %941 = vmatpush1.msra.mxu0 0.0
        %942 = vmatprep.subr.mxu0 0.0
        %943 = vmatpush1.msra.mxu0 0.0
        %944 = vmatprep.mubr.f32.mxu0 0.0
        %945 = vmatmul.mubr.f32.gmra.mrb[0].mxu0 %v878
        %v946 = vpop.f32.mrb[0].mxu0
        %v947 = vadd.f32 %v874, %v946
        %v948 = vpop.f32.mrb[0].mxu0
        %949 = vdwg.mxu0
        %v950 = vld [vmem:[#allocation11] sm:$0xff]
        %v951 = vld [vmem:[#allocation11 + $0x8] sm:$0xff]
        %v952 = vld [vmem:[#allocation11 + $0x10] sm:$0xff]
        %v953 = vld [vmem:[#allocation11 + $0x18] sm:$0xff]
        %v954 = vld [vmem:[#allocation13] sm:$0x1]
        %v956 = vlaneseq
        %v957 = vshrl.u32 %v956, 7
        %v958 = vsub.s32 0, %v957
        %v959 = vrot.slane %v954, %v958
        %v962 = vsel %vm876, %v863, 0
        %964 = vmatprep.subr.mxu0 0.0
        %965 = vmatpush1.msra.mxu0 %v950
        %966 = vmatprep.subr.mxu0 0.0
        %967 = vmatpush1.msra.mxu0 %v951
        %968 = vmatprep.subr.mxu0 0.0
        %969 = vmatpush1.msra.mxu0 %v952
        %970 = vmatprep.subr.mxu0 0.0
        %971 = vmatpush1.msra.mxu0 %v953
        %972 = vmatprep.subr.mxu0 0.0
        %973 = vmatpush1.msra.mxu0 0.0
        %974 = vmatprep.subr.mxu0 0.0
        %975 = vmatpush1.msra.mxu0 0.0
        %976 = vmatprep.subr.mxu0 0.0
        %977 = vmatpush1.msra.mxu0 0.0
        %978 = vmatprep.subr.mxu0 0.0
        %979 = vmatpush1.msra.mxu0 0.0
        %980 = vmatprep.subr.mxu0 0.0
        %981 = vmatpush1.msra.mxu0 0.0
        %982 = vmatprep.subr.mxu0 0.0
        %983 = vmatpush1.msra.mxu0 0.0
        %984 = vmatprep.subr.mxu0 0.0
        %985 = vmatpush1.msra.mxu0 0.0
        %986 = vmatprep.subr.mxu0 0.0
        %987 = vmatpush1.msra.mxu0 0.0
        %988 = vmatprep.subr.mxu0 0.0
        %989 = vmatpush1.msra.mxu0 0.0
        %990 = vmatprep.subr.mxu0 0.0
        %991 = vmatpush1.msra.mxu0 0.0
        %992 = vmatprep.subr.mxu0 0.0
        %993 = vmatpush1.msra.mxu0 0.0
        %994 = vmatprep.subr.mxu0 0.0
        %995 = vmatpush1.msra.mxu0 0.0
        %996 = vmatprep.subr.mxu0 0.0
        %997 = vmatpush1.msra.mxu0 0.0
        %998 = vmatprep.subr.mxu0 0.0
        %999 = vmatpush1.msra.mxu0 0.0
        %1000 = vmatprep.subr.mxu0 0.0
        %1001 = vmatpush1.msra.mxu0 0.0
        %1002 = vmatprep.subr.mxu0 0.0
        %1003 = vmatpush1.msra.mxu0 0.0
        %1004 = vmatprep.subr.mxu0 0.0
        %1005 = vmatpush1.msra.mxu0 0.0
        %1006 = vmatprep.subr.mxu0 0.0
        %1007 = vmatpush1.msra.mxu0 0.0
        %1008 = vmatprep.subr.mxu0 0.0
        %1009 = vmatpush1.msra.mxu0 0.0
        %1010 = vmatprep.subr.mxu0 0.0
        %1011 = vmatpush1.msra.mxu0 0.0
        %1012 = vmatprep.subr.mxu0 0.0
        %1013 = vmatpush1.msra.mxu0 0.0
        %1014 = vmatprep.subr.mxu0 0.0
        %1015 = vmatpush1.msra.mxu0 0.0
        %1016 = vmatprep.subr.mxu0 0.0
        %1017 = vmatpush1.msra.mxu0 0.0
        %1018 = vmatprep.subr.mxu0 0.0
        %1019 = vmatpush1.msra.mxu0 0.0
        %1020 = vmatprep.subr.mxu0 0.0
        %1021 = vmatpush1.msra.mxu0 0.0
        %1022 = vmatprep.subr.mxu0 0.0
        %1023 = vmatpush1.msra.mxu0 0.0
        %1024 = vmatprep.subr.mxu0 0.0
        %1025 = vmatpush1.msra.mxu0 0.0
        %1026 = vmatprep.subr.mxu0 0.0
        %1027 = vmatpush1.msra.mxu0 0.0
        %1028 = vmatprep.mubr.f32.mxu0 0.0
        %1029 = vmatmul.mubr.f32.gmra.mrb[0].mxu0 %v962
        %v1030 = vpop.f32.mrb[0].mxu0
        %v1031 = vadd.f32 %v959, %v1030
        %v1032 = vpop.f32.mrb[0].mxu0
        %1033 = vdwg.mxu0
        %v1034 = vld [vmem:[#allocation14] sm:$0xff]
        %v1035 = vld [vmem:[#allocation14 + $0x8] sm:$0xff]
        %v1036 = vld [vmem:[#allocation14 + $0x10] sm:$0xff]
        %v1037 = vld [vmem:[#allocation14 + $0x18] sm:$0xff]
        %v1038 = vld [vmem:[#allocation16] sm:$0x1]
        %v1040 = vlaneseq
        %v1041 = vshrl.u32 %v1040, 7
        %v1042 = vsub.s32 0, %v1041
        %v1043 = vrot.slane %v1038, %v1042
        %v1046 = vsel %vm876, %v864, 0
        %1048 = vmatprep.subr.mxu0 0.0
        %1049 = vmatpush1.msra.mxu0 %v1034
        %1050 = vmatprep.subr.mxu0 0.0
        %1051 = vmatpush1.msra.mxu0 %v1035
        %1052 = vmatprep.subr.mxu0 0.0
        %1053 = vmatpush1.msra.mxu0 %v1036
        %1054 = vmatprep.subr.mxu0 0.0
        %1055 = vmatpush1.msra.mxu0 %v1037
        %1056 = vmatprep.subr.mxu0 0.0
        %1057 = vmatpush1.msra.mxu0 0.0
        %1058 = vmatprep.subr.mxu0 0.0
        %1059 = vmatpush1.msra.mxu0 0.0
        %1060 = vmatprep.subr.mxu0 0.0
        %1061 = vmatpush1.msra.mxu0 0.0
        %1062 = vmatprep.subr.mxu0 0.0
        %1063 = vmatpush1.msra.mxu0 0.0
        %1064 = vmatprep.subr.mxu0 0.0
        %1065 = vmatpush1.msra.mxu0 0.0
        %1066 = vmatprep.subr.mxu0 0.0
        %1067 = vmatpush1.msra.mxu0 0.0
        %1068 = vmatprep.subr.mxu0 0.0
        %1069 = vmatpush1.msra.mxu0 0.0
        %1070 = vmatprep.subr.mxu0 0.0
        %1071 = vmatpush1.msra.mxu0 0.0
        %1072 = vmatprep.subr.mxu0 0.0
        %1073 = vmatpush1.msra.mxu0 0.0
        %1074 = vmatprep.subr.mxu0 0.0
        %1075 = vmatpush1.msra.mxu0 0.0
        %1076 = vmatprep.subr.mxu0 0.0
        %1077 = vmatpush1.msra.mxu0 0.0
        %1078 = vmatprep.subr.mxu0 0.0
        %1079 = vmatpush1.msra.mxu0 0.0
        %1080 = vmatprep.subr.mxu0 0.0
        %1081 = vmatpush1.msra.mxu0 0.0
        %1082 = vmatprep.subr.mxu0 0.0
        %1083 = vmatpush1.msra.mxu0 0.0
        %1084 = vmatprep.subr.mxu0 0.0
        %1085 = vmatpush1.msra.mxu0 0.0
        %1086 = vmatprep.subr.mxu0 0.0
        %1087 = vmatpush1.msra.mxu0 0.0
        %1088 = vmatprep.subr.mxu0 0.0
        %1089 = vmatpush1.msra.mxu0 0.0
        %1090 = vmatprep.subr.mxu0 0.0
        %1091 = vmatpush1.msra.mxu0 0.0
        %1092 = vmatprep.subr.mxu0 0.0
        %1093 = vmatpush1.msra.mxu0 0.0
        %1094 = vmatprep.subr.mxu0 0.0
        %1095 = vmatpush1.msra.mxu0 0.0
        %1096 = vmatprep.subr.mxu0 0.0
        %1097 = vmatpush1.msra.mxu0 0.0
        %1098 = vmatprep.subr.mxu0 0.0
        %1099 = vmatpush1.msra.mxu0 0.0
        %1100 = vmatprep.subr.mxu0 0.0
        %1101 = vmatpush1.msra.mxu0 0.0
        %1102 = vmatprep.subr.mxu0 0.0
        %1103 = vmatpush1.msra.mxu0 0.0
        %1104 = vmatprep.subr.mxu0 0.0
        %1105 = vmatpush1.msra.mxu0 0.0
        %1106 = vmatprep.subr.mxu0 0.0
        %1107 = vmatpush1.msra.mxu0 0.0
        %1108 = vmatprep.subr.mxu0 0.0
        %1109 = vmatpush1.msra.mxu0 0.0
        %1110 = vmatprep.subr.mxu0 0.0
        %1111 = vmatpush1.msra.mxu0 0.0
        %1112 = vmatprep.mubr.f32.mxu0 0.0
        %1113 = vmatmul.mubr.f32.gmra.mrb[0].mxu0 %v1046
        %v1114 = vpop.f32.mrb[0].mxu0
        %v1115 = vadd.f32 %v1043, %v1114
        %v1116 = vpop.f32.mrb[0].mxu0
        %1117 = vdwg.mxu0
        %vm1118 = vcmask 64512
        %v1120 = vsel %vm1118, %v947, 0
        %v1123 = vsel %vm1118, %v1031, 0
        %1125 = vmatprep.subr.mxu0 0.0
        %1126 = vmatpush1.xpose.msra.mxu0 %v1123
        %1127 = vmatprep.subr.mxu0 0.0
        %1128 = vmatpush1.xpose.msra.mxu0 0.0
        %1129 = vmatprep.subr.mxu0 0.0
        %1130 = vmatpush1.xpose.msra.mxu0 0.0
        %1131 = vmatprep.subr.mxu0 0.0
        %1132 = vmatpush1.xpose.msra.mxu0 0.0
        %1133 = vmatprep.subr.mxu0 0.0
        %1134 = vmatpush1.xpose.msra.mxu0 0.0
        %1135 = vmatprep.subr.mxu0 0.0
        %1136 = vmatpush1.xpose.msra.mxu0 0.0
        %1137 = vmatprep.subr.mxu0 0.0
        %1138 = vmatpush1.xpose.msra.mxu0 0.0
        %1139 = vmatprep.subr.mxu0 0.0
        %1140 = vmatpush1.xpose.msra.mxu0 0.0
        %1141 = vmatprep.subr.mxu0 0.0
        %1142 = vmatpush1.xpose.msra.mxu0 0.0
        %1143 = vmatprep.subr.mxu0 0.0
        %1144 = vmatpush1.xpose.msra.mxu0 0.0
        %1145 = vmatprep.subr.mxu0 0.0
        %1146 = vmatpush1.xpose.msra.mxu0 0.0
        %1147 = vmatprep.subr.mxu0 0.0
        %1148 = vmatpush1.xpose.msra.mxu0 0.0
        %1149 = vmatprep.subr.mxu0 0.0
        %1150 = vmatpush1.xpose.msra.mxu0 0.0
        %1151 = vmatprep.subr.mxu0 0.0
        %1152 = vmatpush1.xpose.msra.mxu0 0.0
        %1153 = vmatprep.subr.mxu0 0.0
        %1154 = vmatpush1.xpose.msra.mxu0 0.0
        %1155 = vmatprep.subr.mxu0 0.0
        %1156 = vmatpush1.xpose.msra.mxu0 0.0
        %1157 = vmatprep.subr.mxu0 0.0
        %1158 = vmatpush1.xpose.msra.mxu0 0.0
        %1159 = vmatprep.subr.mxu0 0.0
        %1160 = vmatpush1.xpose.msra.mxu0 0.0
        %1161 = vmatprep.subr.mxu0 0.0
        %1162 = vmatpush1.xpose.msra.mxu0 0.0
        %1163 = vmatprep.subr.mxu0 0.0
        %1164 = vmatpush1.xpose.msra.mxu0 0.0
        %1165 = vmatprep.subr.mxu0 0.0
        %1166 = vmatpush1.xpose.msra.mxu0 0.0
        %1167 = vmatprep.subr.mxu0 0.0
        %1168 = vmatpush1.xpose.msra.mxu0 0.0
        %1169 = vmatprep.subr.mxu0 0.0
        %1170 = vmatpush1.xpose.msra.mxu0 0.0
        %1171 = vmatprep.subr.mxu0 0.0
        %1172 = vmatpush1.xpose.msra.mxu0 0.0
        %1173 = vmatprep.subr.mxu0 0.0
        %1174 = vmatpush1.xpose.msra.mxu0 0.0
        %1175 = vmatprep.subr.mxu0 0.0
        %1176 = vmatpush1.xpose.msra.mxu0 0.0
        %1177 = vmatprep.subr.mxu0 0.0
        %1178 = vmatpush1.xpose.msra.mxu0 0.0
        %1179 = vmatprep.subr.mxu0 0.0
        %1180 = vmatpush1.xpose.msra.mxu0 0.0
        %1181 = vmatprep.subr.mxu0 0.0
        %1182 = vmatpush1.xpose.msra.mxu0 0.0
        %1183 = vmatprep.subr.mxu0 0.0
        %1184 = vmatpush1.xpose.msra.mxu0 0.0
        %1185 = vmatprep.subr.mxu0 0.0
        %1186 = vmatpush1.xpose.msra.mxu0 0.0
        %1187 = vmatprep.subr.mxu0 0.0
        %1188 = vmatpush1.xpose.msra.mxu0 0.0
        %1189 = vmatprep.mubr.f32.mxu0 0.0
        %1190 = vmatmul.mubr.f32.gmra.mrb[0].mxu0 %v1120
        %v1191 = vpop.f32.mrb[0].mxu0
        %v1192 = vadd.f32 0.0, %v1191
        %v1193 = vpop.f32.mrb[0].mxu0
        %1194 = vdwg.mxu0
        %v1195 = vsel %vm1118, %v1192, -inf
        %1196 = vmax.xlane.f32.xlu0 %v1195
        %v1197 = vpop.xlane.xlu0 %1196
        %v1198 = vsub.f32 %v1192, %v1197
        %v1199 = vmul.f32 %v1198, 1.442695
        %v1200 = vpow.pop %v1199
        %v1201 = vsel %vm1118, %v1200, 0.0
        %1202 = vadd.xlane.f32.xlu0 %v1201
        %v1203 = vpop.xlane.xlu0 %1202
        %v1204 = vrcp.pop %v1203
        %v1205 = vmul.f32 %v1200, %v1204
        %v1207 = vsel %vm1118, %v1205, 0
        %1209 = vmatprep.subr.mxu0 0.0
        %1210 = vmatpush1.msra.mxu0 %v1115
        %1211 = vmatprep.subr.mxu0 0.0
        %1212 = vmatpush1.msra.mxu0 0.0
        %1213 = vmatprep.subr.mxu0 0.0
        %1214 = vmatpush1.msra.mxu0 0.0
        %1215 = vmatprep.subr.mxu0 0.0
        %1216 = vmatpush1.msra.mxu0 0.0
        %1217 = vmatprep.subr.mxu0 0.0
        %1218 = vmatpush1.msra.mxu0 0.0
        %1219 = vmatprep.subr.mxu0 0.0
        %1220 = vmatpush1.msra.mxu0 0.0
        %1221 = vmatprep.subr.mxu0 0.0
        %1222 = vmatpush1.msra.mxu0 0.0
        %1223 = vmatprep.subr.mxu0 0.0
        %1224 = vmatpush1.msra.mxu0 0.0
        %1225 = vmatprep.subr.mxu0 0.0
        %1226 = vmatpush1.msra.mxu0 0.0
        %1227 = vmatprep.subr.mxu0 0.0
        %1228 = vmatpush1.msra.mxu0 0.0
        %1229 = vmatprep.subr.mxu0 0.0
        %1230 = vmatpush1.msra.mxu0 0.0
        %1231 = vmatprep.subr.mxu0 0.0
        %1232 = vmatpush1.msra.mxu0 0.0
        %1233 = vmatprep.subr.mxu0 0.0
        %1234 = vmatpush1.msra.mxu0 0.0
        %1235 = vmatprep.subr.mxu0 0.0
        %1236 = vmatpush1.msra.mxu0 0.0
        %1237 = vmatprep.subr.mxu0 0.0
        %1238 = vmatpush1.msra.mxu0 0.0
        %1239 = vmatprep.subr.mxu0 0.0
        %1240 = vmatpush1.msra.mxu0 0.0
        %1241 = vmatprep.subr.mxu0 0.0
        %1242 = vmatpush1.msra.mxu0 0.0
        %1243 = vmatprep.subr.mxu0 0.0
        %1244 = vmatpush1.msra.mxu0 0.0
        %1245 = vmatprep.subr.mxu0 0.0
        %1246 = vmatpush1.msra.mxu0 0.0
        %1247 = vmatprep.subr.mxu0 0.0
        %1248 = vmatpush1.msra.mxu0 0.0
        %1249 = vmatprep.subr.mxu0 0.0
        %1250 = vmatpush1.msra.mxu0 0.0
        %1251 = vmatprep.subr.mxu0 0.0
        %1252 = vmatpush1.msra.mxu0 0.0
        %1253 = vmatprep.subr.mxu0 0.0
        %1254 = vmatpush1.msra.mxu0 0.0
        %1255 = vmatprep.subr.mxu0 0.0
        %1256 = vmatpush1.msra.mxu0 0.0
        %1257 = vmatprep.subr.mxu0 0.0
        %1258 = vmatpush1.msra.mxu0 0.0
        %1259 = vmatprep.subr.mxu0 0.0
        %1260 = vmatpush1.msra.mxu0 0.0
        %1261 = vmatprep.subr.mxu0 0.0
        %1262 = vmatpush1.msra.mxu0 0.0
        %1263 = vmatprep.subr.mxu0 0.0
        %1264 = vmatpush1.msra.mxu0 0.0
        %1265 = vmatprep.subr.mxu0 0.0
        %1266 = vmatpush1.msra.mxu0 0.0
        %1267 = vmatprep.subr.mxu0 0.0
        %1268 = vmatpush1.msra.mxu0 0.0
        %1269 = vmatprep.subr.mxu0 0.0
        %1270 = vmatpush1.msra.mxu0 0.0
        %1271 = vmatprep.subr.mxu0 0.0
        %1272 = vmatpush1.msra.mxu0 0.0
        %1273 = vmatprep.mubr.f32.mxu0 0.0
        %1274 = vmatmul.mubr.f32.gmra.mrb[0].mxu0 %v1207
        %v1275 = vpop.f32.mrb[0].mxu0
        %v1276 = vadd.f32 0.0, %v1275
        %v1277 = vpop.f32.mrb[0].mxu0
        %1278 = vdwg.mxu0
        %1279 = vrot.lane.b32.xlu0 %v947, 120
        %v1280 = vpop.permute.xlu0 %1279
        %1281 = vrot.lane.b32.xlu0 %v1031, 120
        %v1282 = vpop.permute.xlu0 %1281
        %v1283 = vsel %vm1118, %v1280, 0
        %v1285 = vsel %vm1118, %v1282, 0
        %1287 = vmatprep.subr.mxu0 0.0
        %1288 = vmatpush1.xpose.msra.mxu0 %v1285
        %1289 = vmatprep.subr.mxu0 0.0
        %1290 = vmatpush1.xpose.msra.mxu0 0.0
        %1291 = vmatprep.subr.mxu0 0.0
        %1292 = vmatpush1.xpose.msra.mxu0 0.0
        %1293 = vmatprep.subr.mxu0 0.0
        %1294 = vmatpush1.xpose.msra.mxu0 0.0
        %1295 = vmatprep.subr.mxu0 0.0
        %1296 = vmatpush1.xpose.msra.mxu0 0.0
        %1297 = vmatprep.subr.mxu0 0.0
        %1298 = vmatpush1.xpose.msra.mxu0 0.0
        %1299 = vmatprep.subr.mxu0 0.0
        %1300 = vmatpush1.xpose.msra.mxu0 0.0
        %1301 = vmatprep.subr.mxu0 0.0
        %1302 = vmatpush1.xpose.msra.mxu0 0.0
        %1303 = vmatprep.subr.mxu0 0.0
        %1304 = vmatpush1.xpose.msra.mxu0 0.0
        %1305 = vmatprep.subr.mxu0 0.0
        %1306 = vmatpush1.xpose.msra.mxu0 0.0
        %1307 = vmatprep.subr.mxu0 0.0
        %1308 = vmatpush1.xpose.msra.mxu0 0.0
        %1309 = vmatprep.subr.mxu0 0.0
        %1310 = vmatpush1.xpose.msra.mxu0 0.0
        %1311 = vmatprep.subr.mxu0 0.0
        %1312 = vmatpush1.xpose.msra.mxu0 0.0
        %1313 = vmatprep.subr.mxu0 0.0
        %1314 = vmatpush1.xpose.msra.mxu0 0.0
        %1315 = vmatprep.subr.mxu0 0.0
        %1316 = vmatpush1.xpose.msra.mxu0 0.0
        %1317 = vmatprep.subr.mxu0 0.0
        %1318 = vmatpush1.xpose.msra.mxu0 0.0
        %1319 = vmatprep.subr.mxu0 0.0
        %1320 = vmatpush1.xpose.msra.mxu0 0.0
        %1321 = vmatprep.subr.mxu0 0.0
        %1322 = vmatpush1.xpose.msra.mxu0 0.0
        %1323 = vmatprep.subr.mxu0 0.0
        %1324 = vmatpush1.xpose.msra.mxu0 0.0
        %1325 = vmatprep.subr.mxu0 0.0
        %1326 = vmatpush1.xpose.msra.mxu0 0.0
        %1327 = vmatprep.subr.mxu0 0.0
        %1328 = vmatpush1.xpose.msra.mxu0 0.0
        %1329 = vmatprep.subr.mxu0 0.0
        %1330 = vmatpush1.xpose.msra.mxu0 0.0
        %1331 = vmatprep.subr.mxu0 0.0
        %1332 = vmatpush1.xpose.msra.mxu0 0.0
        %1333 = vmatprep.subr.mxu0 0.0
        %1334 = vmatpush1.xpose.msra.mxu0 0.0
        %1335 = vmatprep.subr.mxu0 0.0
        %1336 = vmatpush1.xpose.msra.mxu0 0.0
        %1337 = vmatprep.subr.mxu0 0.0
        %1338 = vmatpush1.xpose.msra.mxu0 0.0
        %1339 = vmatprep.subr.mxu0 0.0
        %1340 = vmatpush1.xpose.msra.mxu0 0.0
        %1341 = vmatprep.subr.mxu0 0.0
        %1342 = vmatpush1.xpose.msra.mxu0 0.0
        %1343 = vmatprep.subr.mxu0 0.0
        %1344 = vmatpush1.xpose.msra.mxu0 0.0
        %1345 = vmatprep.subr.mxu0 0.0
        %1346 = vmatpush1.xpose.msra.mxu0 0.0
        %1347 = vmatprep.subr.mxu0 0.0
        %1348 = vmatpush1.xpose.msra.mxu0 0.0
        %1349 = vmatprep.subr.mxu0 0.0
        %1350 = vmatpush1.xpose.msra.mxu0 0.0
        %1351 = vmatprep.mubr.f32.mxu0 0.0
        %1352 = vmatmul.mubr.f32.gmra.mrb[0].mxu0 %v1283
        %v1353 = vpop.f32.mrb[0].mxu0
        %v1354 = vadd.f32 0.0, %v1353
        %v1355 = vpop.f32.mrb[0].mxu0
        %1356 = vdwg.mxu0
        %v1357 = vsel %vm1118, %v1354, -inf
        %1358 = vmax.xlane.f32.xlu0 %v1357
        %v1359 = vpop.xlane.xlu0 %1358
        %v1360 = vsub.f32 %v1354, %v1359
        %v1361 = vmul.f32 %v1360, 1.442695
        %v1362 = vpow.pop %v1361
        %v1363 = vsel %vm1118, %v1362, 0.0
        %1364 = vadd.xlane.f32.xlu0 %v1363
        %v1365 = vpop.xlane.xlu0 %1364
        %v1366 = vrcp.pop %v1365
        %v1367 = vmul.f32 %v1362, %v1366
        %1369 = vrot.lane.b32.xlu0 %v1115, 120
        %v1370 = vpop.permute.xlu0 %1369
        %v1373 = vsel %vm1118, %v1367, 0
        %1375 = vmatprep.subr.mxu0 0.0
        %1376 = vmatpush1.msra.mxu0 %v1370
        %1377 = vmatprep.subr.mxu0 0.0
        %1378 = vmatpush1.msra.mxu0 0.0
        %1379 = vmatprep.subr.mxu0 0.0
        %1380 = vmatpush1.msra.mxu0 0.0
        %1381 = vmatprep.subr.mxu0 0.0
        %1382 = vmatpush1.msra.mxu0 0.0
        %1383 = vmatprep.subr.mxu0 0.0
        %1384 = vmatpush1.msra.mxu0 0.0
        %1385 = vmatprep.subr.mxu0 0.0
        %1386 = vmatpush1.msra.mxu0 0.0
        %1387 = vmatprep.subr.mxu0 0.0
        %1388 = vmatpush1.msra.mxu0 0.0
        %1389 = vmatprep.subr.mxu0 0.0
        %1390 = vmatpush1.msra.mxu0 0.0
        %1391 = vmatprep.subr.mxu0 0.0
        %1392 = vmatpush1.msra.mxu0 0.0
        %1393 = vmatprep.subr.mxu0 0.0
        %1394 = vmatpush1.msra.mxu0 0.0
        %1395 = vmatprep.subr.mxu0 0.0
        %1396 = vmatpush1.msra.mxu0 0.0
        %1397 = vmatprep.subr.mxu0 0.0
        %1398 = vmatpush1.msra.mxu0 0.0
        %1399 = vmatprep.subr.mxu0 0.0
        %1400 = vmatpush1.msra.mxu0 0.0
        %1401 = vmatprep.subr.mxu0 0.0
        %1402 = vmatpush1.msra.mxu0 0.0
        %1403 = vmatprep.subr.mxu0 0.0
        %1404 = vmatpush1.msra.mxu0 0.0
        %1405 = vmatprep.subr.mxu0 0.0
        %1406 = vmatpush1.msra.mxu0 0.0
        %1407 = vmatprep.subr.mxu0 0.0
        %1408 = vmatpush1.msra.mxu0 0.0
        %1409 = vmatprep.subr.mxu0 0.0
        %1410 = vmatpush1.msra.mxu0 0.0
        %1411 = vmatprep.subr.mxu0 0.0
        %1412 = vmatpush1.msra.mxu0 0.0
        %1413 = vmatprep.subr.mxu0 0.0
        %1414 = vmatpush1.msra.mxu0 0.0
        %1415 = vmatprep.subr.mxu0 0.0
        %1416 = vmatpush1.msra.mxu0 0.0
        %1417 = vmatprep.subr.mxu0 0.0
        %1418 = vmatpush1.msra.mxu0 0.0
        %1419 = vmatprep.subr.mxu0 0.0
        %1420 = vmatpush1.msra.mxu0 0.0
        %1421 = vmatprep.subr.mxu0 0.0
        %1422 = vmatpush1.msra.mxu0 0.0
        %1423 = vmatprep.subr.mxu0 0.0
        %1424 = vmatpush1.msra.mxu0 0.0
        %1425 = vmatprep.subr.mxu0 0.0
        %1426 = vmatpush1.msra.mxu0 0.0
        %1427 = vmatprep.subr.mxu0 0.0
        %1428 = vmatpush1.msra.mxu0 0.0
        %1429 = vmatprep.subr.mxu0 0.0
        %1430 = vmatpush1.msra.mxu0 0.0
        %1431 = vmatprep.subr.mxu0 0.0
        %1432 = vmatpush1.msra.mxu0 0.0
        %1433 = vmatprep.subr.mxu0 0.0
        %1434 = vmatpush1.msra.mxu0 0.0
        %1435 = vmatprep.subr.mxu0 0.0
        %1436 = vmatpush1.msra.mxu0 0.0
        %1437 = vmatprep.subr.mxu0 0.0
        %1438 = vmatpush1.msra.mxu0 0.0
        %1439 = vmatprep.mubr.f32.mxu0 0.0
        %1440 = vmatmul.mubr.f32.gmra.mrb[0].mxu0 %v1373
        %v1441 = vpop.f32.mrb[0].mxu0
        %v1442 = vadd.f32 0.0, %v1441
        %v1443 = vpop.f32.mrb[0].mxu0
        %1444 = vdwg.mxu0
        %1445 = vrot.lane.b32.xlu0 %v947, 112
        %v1446 = vpop.permute.xlu0 %1445
        %1447 = vrot.lane.b32.xlu0 %v1031, 112
        %v1448 = vpop.permute.xlu0 %1447
        %v1449 = vsel %vm1118, %v1446, 0
        %v1451 = vsel %vm1118, %v1448, 0
        %1453 = vmatprep.subr.mxu0 0.0
        %1454 = vmatpush1.xpose.msra.mxu0 %v1451
        %1455 = vmatprep.subr.mxu0 0.0
        %1456 = vmatpush1.xpose.msra.mxu0 0.0
        %1457 = vmatprep.subr.mxu0 0.0
        %1458 = vmatpush1.xpose.msra.mxu0 0.0
        %1459 = vmatprep.subr.mxu0 0.0
        %1460 = vmatpush1.xpose.msra.mxu0 0.0
        %1461 = vmatprep.subr.mxu0 0.0
        %1462 = vmatpush1.xpose.msra.mxu0 0.0
        %1463 = vmatprep.subr.mxu0 0.0
        %1464 = vmatpush1.xpose.msra.mxu0 0.0
        %1465 = vmatprep.subr.mxu0 0.0
        %1466 = vmatpush1.xpose.msra.mxu0 0.0
        %1467 = vmatprep.subr.mxu0 0.0
        %1468 = vmatpush1.xpose.msra.mxu0 0.0
        %1469 = vmatprep.subr.mxu0 0.0
        %1470 = vmatpush1.xpose.msra.mxu0 0.0
        %1471 = vmatprep.subr.mxu0 0.0
        %1472 = vmatpush1.xpose.msra.mxu0 0.0
        %1473 = vmatprep.subr.mxu0 0.0
        %1474 = vmatpush1.xpose.msra.mxu0 0.0
        %1475 = vmatprep.subr.mxu0 0.0
        %1476 = vmatpush1.xpose.msra.mxu0 0.0
        %1477 = vmatprep.subr.mxu0 0.0
        %1478 = vmatpush1.xpose.msra.mxu0 0.0
        %1479 = vmatprep.subr.mxu0 0.0
        %1480 = vmatpush1.xpose.msra.mxu0 0.0
        %1481 = vmatprep.subr.mxu0 0.0
        %1482 = vmatpush1.xpose.msra.mxu0 0.0
        %1483 = vmatprep.subr.mxu0 0.0
        %1484 = vmatpush1.xpose.msra.mxu0 0.0
        %1485 = vmatprep.subr.mxu0 0.0
        %1486 = vmatpush1.xpose.msra.mxu0 0.0
        %1487 = vmatprep.subr.mxu0 0.0
        %1488 = vmatpush1.xpose.msra.mxu0 0.0
        %1489 = vmatprep.subr.mxu0 0.0
        %1490 = vmatpush1.xpose.msra.mxu0 0.0
        %1491 = vmatprep.subr.mxu0 0.0
        %1492 = vmatpush1.xpose.msra.mxu0 0.0
        %1493 = vmatprep.subr.mxu0 0.0
        %1494 = vmatpush1.xpose.msra.mxu0 0.0
        %1495 = vmatprep.subr.mxu0 0.0
        %1496 = vmatpush1.xpose.msra.mxu0 0.0
        %1497 = vmatprep.subr.mxu0 0.0
        %1498 = vmatpush1.xpose.msra.mxu0 0.0
        %1499 = vmatprep.subr.mxu0 0.0
        %1500 = vmatpush1.xpose.msra.mxu0 0.0
        %1501 = vmatprep.subr.mxu0 0.0
        %1502 = vmatpush1.xpose.msra.mxu0 0.0
        %1503 = vmatprep.subr.mxu0 0.0
        %1504 = vmatpush1.xpose.msra.mxu0 0.0
        %1505 = vmatprep.subr.mxu0 0.0
        %1506 = vmatpush1.xpose.msra.mxu0 0.0
        %1507 = vmatprep.subr.mxu0 0.0
        %1508 = vmatpush1.xpose.msra.mxu0 0.0
        %1509 = vmatprep.subr.mxu0 0.0
        %1510 = vmatpush1.xpose.msra.mxu0 0.0
        %1511 = vmatprep.subr.mxu0 0.0
        %1512 = vmatpush1.xpose.msra.mxu0 0.0
        %1513 = vmatprep.subr.mxu0 0.0
        %1514 = vmatpush1.xpose.msra.mxu0 0.0
        %1515 = vmatprep.subr.mxu0 0.0
        %1516 = vmatpush1.xpose.msra.mxu0 0.0
        %1517 = vmatprep.mubr.f32.mxu0 0.0
        %1518 = vmatmul.mubr.f32.gmra.mrb[0].mxu0 %v1449
        %v1519 = vpop.f32.mrb[0].mxu0
        %v1520 = vadd.f32 0.0, %v1519
        %v1521 = vpop.f32.mrb[0].mxu0
        %1522 = vdwg.mxu0
        %v1523 = vsel %vm1118, %v1520, -inf
        %1524 = vmax.xlane.f32.xlu0 %v1523
        %v1525 = vpop.xlane.xlu0 %1524
        %v1526 = vsub.f32 %v1520, %v1525
        %v1527 = vmul.f32 %v1526, 1.442695
        %v1528 = vpow.pop %v1527
        %v1529 = vsel %vm1118, %v1528, 0.0
        %1530 = vadd.xlane.f32.xlu0 %v1529
        %v1531 = vpop.xlane.xlu0 %1530
        %v1532 = vrcp.pop %v1531
        %v1533 = vmul.f32 %v1528, %v1532
        %1534 = vrot.lane.b32.xlu0 %v1115, 112
        %v1535 = vpop.permute.xlu0 %1534
        %v1538 = vsel %vm1118, %v1533, 0
        %1540 = vmatprep.subr.mxu0 0.0
        %1541 = vmatpush1.msra.mxu0 %v1535
        %1542 = vmatprep.subr.mxu0 0.0
        %1543 = vmatpush1.msra.mxu0 0.0
        %1544 = vmatprep.subr.mxu0 0.0
        %1545 = vmatpush1.msra.mxu0 0.0
        %1546 = vmatprep.subr.mxu0 0.0
        %1547 = vmatpush1.msra.mxu0 0.0
        %1548 = vmatprep.subr.mxu0 0.0
        %1549 = vmatpush1.msra.mxu0 0.0
        %1550 = vmatprep.subr.mxu0 0.0
        %1551 = vmatpush1.msra.mxu0 0.0
        %1552 = vmatprep.subr.mxu0 0.0
        %1553 = vmatpush1.msra.mxu0 0.0
        %1554 = vmatprep.subr.mxu0 0.0
        %1555 = vmatpush1.msra.mxu0 0.0
        %1556 = vmatprep.subr.mxu0 0.0
        %1557 = vmatpush1.msra.mxu0 0.0
        %1558 = vmatprep.subr.mxu0 0.0
        %1559 = vmatpush1.msra.mxu0 0.0
        %1560 = vmatprep.subr.mxu0 0.0
        %1561 = vmatpush1.msra.mxu0 0.0
        %1562 = vmatprep.subr.mxu0 0.0
        %1563 = vmatpush1.msra.mxu0 0.0
        %1564 = vmatprep.subr.mxu0 0.0
        %1565 = vmatpush1.msra.mxu0 0.0
        %1566 = vmatprep.subr.mxu0 0.0
        %1567 = vmatpush1.msra.mxu0 0.0
        %1568 = vmatprep.subr.mxu0 0.0
        %1569 = vmatpush1.msra.mxu0 0.0
        %1570 = vmatprep.subr.mxu0 0.0
        %1571 = vmatpush1.msra.mxu0 0.0
        %1572 = vmatprep.subr.mxu0 0.0
        %1573 = vmatpush1.msra.mxu0 0.0
        %1574 = vmatprep.subr.mxu0 0.0
        %1575 = vmatpush1.msra.mxu0 0.0
        %1576 = vmatprep.subr.mxu0 0.0
        %1577 = vmatpush1.msra.mxu0 0.0
        %1578 = vmatprep.subr.mxu0 0.0
        %1579 = vmatpush1.msra.mxu0 0.0
        %1580 = vmatprep.subr.mxu0 0.0
        %1581 = vmatpush1.msra.mxu0 0.0
        %1582 = vmatprep.subr.mxu0 0.0
        %1583 = vmatpush1.msra.mxu0 0.0
        %1584 = vmatprep.subr.mxu0 0.0
        %1585 = vmatpush1.msra.mxu0 0.0
        %1586 = vmatprep.subr.mxu0 0.0
        %1587 = vmatpush1.msra.mxu0 0.0
        %1588 = vmatprep.subr.mxu0 0.0
        %1589 = vmatpush1.msra.mxu0 0.0
        %1590 = vmatprep.subr.mxu0 0.0
        %1591 = vmatpush1.msra.mxu0 0.0
        %1592 = vmatprep.subr.mxu0 0.0
        %1593 = vmatpush1.msra.mxu0 0.0
        %1594 = vmatprep.subr.mxu0 0.0
        %1595 = vmatpush1.msra.mxu0 0.0
        %1596 = vmatprep.subr.mxu0 0.0
        %1597 = vmatpush1.msra.mxu0 0.0
        %1598 = vmatprep.subr.mxu0 0.0
        %1599 = vmatpush1.msra.mxu0 0.0
        %1600 = vmatprep.subr.mxu0 0.0
        %1601 = vmatpush1.msra.mxu0 0.0
        %1602 = vmatprep.subr.mxu0 0.0
        %1603 = vmatpush1.msra.mxu0 0.0
        %1604 = vmatprep.mubr.f32.mxu0 0.0
        %1605 = vmatmul.mubr.f32.gmra.mrb[0].mxu0 %v1538
        %v1606 = vpop.f32.mrb[0].mxu0
        %v1607 = vadd.f32 0.0, %v1606
        %v1608 = vpop.f32.mrb[0].mxu0
        %1609 = vdwg.mxu0
        %1610 = vrot.lane.b32.xlu0 %v947, 104
        %v1611 = vpop.permute.xlu0 %1610
        %1612 = vrot.lane.b32.xlu0 %v1031, 104
        %v1613 = vpop.permute.xlu0 %1612
        %v1614 = vsel %vm1118, %v1611, 0
        %v1616 = vsel %vm1118, %v1613, 0
        %1618 = vmatprep.subr.mxu0 0.0
        %1619 = vmatpush1.xpose.msra.mxu0 %v1616
        %1620 = vmatprep.subr.mxu0 0.0
        %1621 = vmatpush1.xpose.msra.mxu0 0.0
        %1622 = vmatprep.subr.mxu0 0.0
        %1623 = vmatpush1.xpose.msra.mxu0 0.0
        %1624 = vmatprep.subr.mxu0 0.0
        %1625 = vmatpush1.xpose.msra.mxu0 0.0
        %1626 = vmatprep.subr.mxu0 0.0
        %1627 = vmatpush1.xpose.msra.mxu0 0.0
        %1628 = vmatprep.subr.mxu0 0.0
        %1629 = vmatpush1.xpose.msra.mxu0 0.0
        %1630 = vmatprep.subr.mxu0 0.0
        %1631 = vmatpush1.xpose.msra.mxu0 0.0
        %1632 = vmatprep.subr.mxu0 0.0
        %1633 = vmatpush1.xpose.msra.mxu0 0.0
        %1634 = vmatprep.subr.mxu0 0.0
        %1635 = vmatpush1.xpose.msra.mxu0 0.0
        %1636 = vmatprep.subr.mxu0 0.0
        %1637 = vmatpush1.xpose.msra.mxu0 0.0
        %1638 = vmatprep.subr.mxu0 0.0
        %1639 = vmatpush1.xpose.msra.mxu0 0.0
        %1640 = vmatprep.subr.mxu0 0.0
        %1641 = vmatpush1.xpose.msra.mxu0 0.0
        %1642 = vmatprep.subr.mxu0 0.0
        %1643 = vmatpush1.xpose.msra.mxu0 0.0
        %1644 = vmatprep.subr.mxu0 0.0
        %1645 = vmatpush1.xpose.msra.mxu0 0.0
        %1646 = vmatprep.subr.mxu0 0.0
        %1647 = vmatpush1.xpose.msra.mxu0 0.0
        %1648 = vmatprep.subr.mxu0 0.0
        %1649 = vmatpush1.xpose.msra.mxu0 0.0
        %1650 = vmatprep.subr.mxu0 0.0
        %1651 = vmatpush1.xpose.msra.mxu0 0.0
        %1652 = vmatprep.subr.mxu0 0.0
        %1653 = vmatpush1.xpose.msra.mxu0 0.0
        %1654 = vmatprep.subr.mxu0 0.0
        %1655 = vmatpush1.xpose.msra.mxu0 0.0
        %1656 = vmatprep.subr.mxu0 0.0
        %1657 = vmatpush1.xpose.msra.mxu0 0.0
        %1658 = vmatprep.subr.mxu0 0.0
        %1659 = vmatpush1.xpose.msra.mxu0 0.0
        %1660 = vmatprep.subr.mxu0 0.0
        %1661 = vmatpush1.xpose.msra.mxu0 0.0
        %1662 = vmatprep.subr.mxu0 0.0
        %1663 = vmatpush1.xpose.msra.mxu0 0.0
        %1664 = vmatprep.subr.mxu0 0.0
        %1665 = vmatpush1.xpose.msra.mxu0 0.0
        %1666 = vmatprep.subr.mxu0 0.0
        %1667 = vmatpush1.xpose.msra.mxu0 0.0
        %1668 = vmatprep.subr.mxu0 0.0
        %1669 = vmatpush1.xpose.msra.mxu0 0.0
        %1670 = vmatprep.subr.mxu0 0.0
        %1671 = vmatpush1.xpose.msra.mxu0 0.0
        %1672 = vmatprep.subr.mxu0 0.0
        %1673 = vmatpush1.xpose.msra.mxu0 0.0
        %1674 = vmatprep.subr.mxu0 0.0
        %1675 = vmatpush1.xpose.msra.mxu0 0.0
        %1676 = vmatprep.subr.mxu0 0.0
        %1677 = vmatpush1.xpose.msra.mxu0 0.0
        %1678 = vmatprep.subr.mxu0 0.0
        %1679 = vmatpush1.xpose.msra.mxu0 0.0
        %1680 = vmatprep.subr.mxu0 0.0
        %1681 = vmatpush1.xpose.msra.mxu0 0.0
        %1682 = vmatprep.mubr.f32.mxu0 0.0
        %1683 = vmatmul.mubr.f32.gmra.mrb[0].mxu0 %v1614
        %v1684 = vpop.f32.mrb[0].mxu0
        %v1685 = vadd.f32 0.0, %v1684
        %v1686 = vpop.f32.mrb[0].mxu0
        %1687 = vdwg.mxu0
        %v1688 = vsel %vm1118, %v1685, -inf
        %1689 = vmax.xlane.f32.xlu0 %v1688
        %v1690 = vpop.xlane.xlu0 %1689
        %v1691 = vsub.f32 %v1685, %v1690
        %v1692 = vmul.f32 %v1691, 1.442695
        %v1693 = vpow.pop %v1692
        %v1694 = vsel %vm1118, %v1693, 0.0
        %1695 = vadd.xlane.f32.xlu0 %v1694
        %v1696 = vpop.xlane.xlu0 %1695
        %v1697 = vrcp.pop %v1696
        %v1698 = vmul.f32 %v1693, %v1697
        %1699 = vrot.lane.b32.xlu0 %v1115, 104
        %v1700 = vpop.permute.xlu0 %1699
        %v1703 = vsel %vm1118, %v1698, 0
        %1705 = vmatprep.subr.mxu0 0.0
        %1706 = vmatpush1.msra.mxu0 %v1700
        %1707 = vmatprep.subr.mxu0 0.0
        %1708 = vmatpush1.msra.mxu0 0.0
        %1709 = vmatprep.subr.mxu0 0.0
        %1710 = vmatpush1.msra.mxu0 0.0
        %1711 = vmatprep.subr.mxu0 0.0
        %1712 = vmatpush1.msra.mxu0 0.0
        %1713 = vmatprep.subr.mxu0 0.0
        %1714 = vmatpush1.msra.mxu0 0.0
        %1715 = vmatprep.subr.mxu0 0.0
        %1716 = vmatpush1.msra.mxu0 0.0
        %1717 = vmatprep.subr.mxu0 0.0
        %1718 = vmatpush1.msra.mxu0 0.0
        %1719 = vmatprep.subr.mxu0 0.0
        %1720 = vmatpush1.msra.mxu0 0.0
        %1721 = vmatprep.subr.mxu0 0.0
        %1722 = vmatpush1.msra.mxu0 0.0
        %1723 = vmatprep.subr.mxu0 0.0
        %1724 = vmatpush1.msra.mxu0 0.0
        %1725 = vmatprep.subr.mxu0 0.0
        %1726 = vmatpush1.msra.mxu0 0.0
        %1727 = vmatprep.subr.mxu0 0.0
        %1728 = vmatpush1.msra.mxu0 0.0
        %1729 = vmatprep.subr.mxu0 0.0
        %1730 = vmatpush1.msra.mxu0 0.0
        %1731 = vmatprep.subr.mxu0 0.0
        %1732 = vmatpush1.msra.mxu0 0.0
        %1733 = vmatprep.subr.mxu0 0.0
        %1734 = vmatpush1.msra.mxu0 0.0
        %1735 = vmatprep.subr.mxu0 0.0
        %1736 = vmatpush1.msra.mxu0 0.0
        %1737 = vmatprep.subr.mxu0 0.0
        %1738 = vmatpush1.msra.mxu0 0.0
        %1739 = vmatprep.subr.mxu0 0.0
        %1740 = vmatpush1.msra.mxu0 0.0
        %1741 = vmatprep.subr.mxu0 0.0
        %1742 = vmatpush1.msra.mxu0 0.0
        %1743 = vmatprep.subr.mxu0 0.0
        %1744 = vmatpush1.msra.mxu0 0.0
        %1745 = vmatprep.subr.mxu0 0.0
        %1746 = vmatpush1.msra.mxu0 0.0
        %1747 = vmatprep.subr.mxu0 0.0
        %1748 = vmatpush1.msra.mxu0 0.0
        %1749 = vmatprep.subr.mxu0 0.0
        %1750 = vmatpush1.msra.mxu0 0.0
        %1751 = vmatprep.subr.mxu0 0.0
        %1752 = vmatpush1.msra.mxu0 0.0
        %1753 = vmatprep.subr.mxu0 0.0
        %1754 = vmatpush1.msra.mxu0 0.0
        %1755 = vmatprep.subr.mxu0 0.0
        %1756 = vmatpush1.msra.mxu0 0.0
        %1757 = vmatprep.subr.mxu0 0.0
        %1758 = vmatpush1.msra.mxu0 0.0
        %1759 = vmatprep.subr.mxu0 0.0
        %1760 = vmatpush1.msra.mxu0 0.0
        %1761 = vmatprep.subr.mxu0 0.0
        %1762 = vmatpush1.msra.mxu0 0.0
        %1763 = vmatprep.subr.mxu0 0.0
        %1764 = vmatpush1.msra.mxu0 0.0
        %1765 = vmatprep.subr.mxu0 0.0
        %1766 = vmatpush1.msra.mxu0 0.0
        %1767 = vmatprep.subr.mxu0 0.0
        %1768 = vmatpush1.msra.mxu0 0.0
        %1769 = vmatprep.mubr.f32.mxu0 0.0
        %1770 = vmatmul.mubr.f32.gmra.mrb[0].mxu0 %v1703
        %v1771 = vpop.f32.mrb[0].mxu0
        %v1772 = vadd.f32 0.0, %v1771
        %v1773 = vpop.f32.mrb[0].mxu0
        %1774 = vdwg.mxu0
        %1776 = vrot.lane.b32.xlu0 %v1442, 8
        %v1777 = vpop.permute.xlu0 %1776
        %1780 = vrot.lane.b32.xlu0 %v1607, 16
        %v1781 = vpop.permute.xlu0 %1780
        %1784 = vrot.lane.b32.xlu0 %v1772, 24
        %v1785 = vpop.permute.xlu0 %1784
        %v1787 = vsel %vm1118, %v1276, %v1777
        %vm1788 = vcmask 130048
        %v1789 = vsel %vm1788, %v1787, %v1781
        %vm1790 = vcmask 195584
        %v1791 = vsel %vm1790, %v1789, %v1785
        %v1792 = vld [vmem:[%s9] sm:$0xff]
        %v1793 = vld [vmem:[%s9 + $0x8] sm:$0xff]
        %v1794 = vld [vmem:[%s9 + $0x10] sm:$0xff]
        %v1795 = vld [vmem:[%s9 + $0x18] sm:$0xff]
        %v1796 = vld [vmem:[#allocation17] sm:$0x1]
        %v1798 = vlaneseq
        %v1799 = vshrl.u32 %v1798, 7
        %v1800 = vsub.s32 0, %v1799
        %v1801 = vrot.slane %v1796, %v1800
        %v1804 = vsel %vm876, %v1791, 0
        %1806 = vmatprep.subr.mxu0 0.0
        %1807 = vmatpush1.msra.mxu0 %v1792
        %1808 = vmatprep.subr.mxu0 0.0
        %1809 = vmatpush1.msra.mxu0 %v1793
        %1810 = vmatprep.subr.mxu0 0.0
        %1811 = vmatpush1.msra.mxu0 %v1794
        %1812 = vmatprep.subr.mxu0 0.0
        %1813 = vmatpush1.msra.mxu0 %v1795
        %1814 = vmatprep.subr.mxu0 0.0
        %1815 = vmatpush1.msra.mxu0 0.0
        %1816 = vmatprep.subr.mxu0 0.0
        %1817 = vmatpush1.msra.mxu0 0.0
        %1818 = vmatprep.subr.mxu0 0.0
        %1819 = vmatpush1.msra.mxu0 0.0
        %1820 = vmatprep.subr.mxu0 0.0
        %1821 = vmatpush1.msra.mxu0 0.0
        %1822 = vmatprep.subr.mxu0 0.0
        %1823 = vmatpush1.msra.mxu0 0.0
        %1824 = vmatprep.subr.mxu0 0.0
        %1825 = vmatpush1.msra.mxu0 0.0
        %1826 = vmatprep.subr.mxu0 0.0
        %1827 = vmatpush1.msra.mxu0 0.0
        %1828 = vmatprep.subr.mxu0 0.0
        %1829 = vmatpush1.msra.mxu0 0.0
        %1830 = vmatprep.subr.mxu0 0.0
        %1831 = vmatpush1.msra.mxu0 0.0
        %1832 = vmatprep.subr.mxu0 0.0
        %1833 = vmatpush1.msra.mxu0 0.0
        %1834 = vmatprep.subr.mxu0 0.0
        %1835 = vmatpush1.msra.mxu0 0.0
        %1836 = vmatprep.subr.mxu0 0.0
        %1837 = vmatpush1.msra.mxu0 0.0
        %1838 = vmatprep.subr.mxu0 0.0
        %1839 = vmatpush1.msra.mxu0 0.0
        %1840 = vmatprep.subr.mxu0 0.0
        %1841 = vmatpush1.msra.mxu0 0.0
        %1842 = vmatprep.subr.mxu0 0.0
        %1843 = vmatpush1.msra.mxu0 0.0
        %1844 = vmatprep.subr.mxu0 0.0
        %1845 = vmatpush1.msra.mxu0 0.0
        %1846 = vmatprep.subr.mxu0 0.0
        %1847 = vmatpush1.msra.mxu0 0.0
        %1848 = vmatprep.subr.mxu0 0.0
        %1849 = vmatpush1.msra.mxu0 0.0
        %1850 = vmatprep.subr.mxu0 0.0
        %1851 = vmatpush1.msra.mxu0 0.0
        %1852 = vmatprep.subr.mxu0 0.0
        %1853 = vmatpush1.msra.mxu0 0.0
        %1854 = vmatprep.subr.mxu0 0.0
        %1855 = vmatpush1.msra.mxu0 0.0
        %1856 = vmatprep.subr.mxu0 0.0
        %1857 = vmatpush1.msra.mxu0 0.0
        %1858 = vmatprep.subr.mxu0 0.0
        %1859 = vmatpush1.msra.mxu0 0.0
        %1860 = vmatprep.subr.mxu0 0.0
        %1861 = vmatpush1.msra.mxu0 0.0
        %1862 = vmatprep.subr.mxu0 0.0
        %1863 = vmatpush1.msra.mxu0 0.0
        %1864 = vmatprep.subr.mxu0 0.0
        %1865 = vmatpush1.msra.mxu0 0.0
        %1866 = vmatprep.subr.mxu0 0.0
        %1867 = vmatpush1.msra.mxu0 0.0
        %1868 = vmatprep.subr.mxu0 0.0
        %1869 = vmatpush1.msra.mxu0 0.0
        %1870 = vmatprep.mubr.f32.mxu0 0.0
        %1871 = vmatmul.mubr.f32.gmra.mrb[0].mxu0 %v1804
        %v1872 = vpop.f32.mrb[0].mxu0
        %v1873 = vadd.f32 %v1801, %v1872
        %v1874 = vpop.f32.mrb[0].mxu0
        %1875 = vdwg.mxu0
        %v1876 = vld [vmem:[#allocation19] sm:$0xff]
        %v1877 = vld [vmem:[#allocation19 + $0x8] sm:$0xff]
        %v1878 = vld [vmem:[#allocation19 + $0x10] sm:$0xff]
        %v1879 = vld [vmem:[#allocation19 + $0x18] sm:$0xff]
        %v1880 = vld [vmem:[#allocation20] sm:$0x1]
        %v1882 = vlaneseq
        %v1883 = vshrl.u32 %v1882, 7
        %v1884 = vsub.s32 0, %v1883
        %v1885 = vrot.slane %v1880, %v1884
        %v1888 = vsel %vm876, %v1873, 0
        %1890 = vmatprep.subr.mxu0 0.0
        %1891 = vmatpush1.msra.mxu0 %v1876
        %1892 = vmatprep.subr.mxu0 0.0
        %1893 = vmatpush1.msra.mxu0 %v1877
        %1894 = vmatprep.subr.mxu0 0.0
        %1895 = vmatpush1.msra.mxu0 %v1878
        %1896 = vmatprep.subr.mxu0 0.0
        %1897 = vmatpush1.msra.mxu0 %v1879
        %1898 = vmatprep.subr.mxu0 0.0
        %1899 = vmatpush1.msra.mxu0 0.0
        %1900 = vmatprep.subr.mxu0 0.0
        %1901 = vmatpush1.msra.mxu0 0.0
        %1902 = vmatprep.subr.mxu0 0.0
        %1903 = vmatpush1.msra.mxu0 0.0
        %1904 = vmatprep.subr.mxu0 0.0
        %1905 = vmatpush1.msra.mxu0 0.0
        %1906 = vmatprep.subr.mxu0 0.0
        %1907 = vmatpush1.msra.mxu0 0.0
        %1908 = vmatprep.subr.mxu0 0.0
        %1909 = vmatpush1.msra.mxu0 0.0
        %1910 = vmatprep.subr.mxu0 0.0
        %1911 = vmatpush1.msra.mxu0 0.0
        %1912 = vmatprep.subr.mxu0 0.0
        %1913 = vmatpush1.msra.mxu0 0.0
        %1914 = vmatprep.subr.mxu0 0.0
        %1915 = vmatpush1.msra.mxu0 0.0
        %1916 = vmatprep.subr.mxu0 0.0
        %1917 = vmatpush1.msra.mxu0 0.0
        %1918 = vmatprep.subr.mxu0 0.0
        %1919 = vmatpush1.msra.mxu0 0.0
        %1920 = vmatprep.subr.mxu0 0.0
        %1921 = vmatpush1.msra.mxu0 0.0
        %1922 = vmatprep.subr.mxu0 0.0
        %1923 = vmatpush1.msra.mxu0 0.0
        %1924 = vmatprep.subr.mxu0 0.0
        %1925 = vmatpush1.msra.mxu0 0.0
        %1926 = vmatprep.subr.mxu0 0.0
        %1927 = vmatpush1.msra.mxu0 0.0
        %1928 = vmatprep.subr.mxu0 0.0
        %1929 = vmatpush1.msra.mxu0 0.0
        %1930 = vmatprep.subr.mxu0 0.0
        %1931 = vmatpush1.msra.mxu0 0.0
        %1932 = vmatprep.subr.mxu0 0.0
        %1933 = vmatpush1.msra.mxu0 0.0
        %1934 = vmatprep.subr.mxu0 0.0
        %1935 = vmatpush1.msra.mxu0 0.0
        %1936 = vmatprep.subr.mxu0 0.0
        %1937 = vmatpush1.msra.mxu0 0.0
        %1938 = vmatprep.subr.mxu0 0.0
        %1939 = vmatpush1.msra.mxu0 0.0
        %1940 = vmatprep.subr.mxu0 0.0
        %1941 = vmatpush1.msra.mxu0 0.0
        %1942 = vmatprep.subr.mxu0 0.0
        %1943 = vmatpush1.msra.mxu0 0.0
        %1944 = vmatprep.subr.mxu0 0.0
        %1945 = vmatpush1.msra.mxu0 0.0
        %1946 = vmatprep.subr.mxu0 0.0
        %1947 = vmatpush1.msra.mxu0 0.0
        %1948 = vmatprep.subr.mxu0 0.0
        %1949 = vmatpush1.msra.mxu0 0.0
        %1950 = vmatprep.subr.mxu0 0.0
        %1951 = vmatpush1.msra.mxu0 0.0
        %1952 = vmatprep.subr.mxu0 0.0
        %1953 = vmatpush1.msra.mxu0 0.0
        %1954 = vmatprep.mubr.f32.mxu0 0.0
        %1955 = vmatmul.mubr.f32.gmra.mrb[0].mxu0 %v1888
        %v1956 = vpop.f32.mrb[0].mxu0
        %v1957 = vadd.f32 %v1885, %v1956
        %v1958 = vpop.f32.mrb[0].mxu0
        %1959 = vdwg.mxu0
        %v1960 = vsel %vm876, %v1957, 0.0
        %1961 = vadd.xlane.f32.xlu0 %v1960
        %v1962 = vpop.xlane.xlu0 %1961
        %v1963 = vrcp.pop 32.0
        %v1964 = vmul.f32 %v1962, %v1963
        %v1965 = vsub.f32 %v1957, %v1964
        %v1966 = vmul.f32 %v1965, %v1965
        %v1967 = vsel %vm876, %v1966, 0.0
        %1968 = vadd.xlane.f32.xlu0 %v1967
        %v1969 = vpop.xlane.xlu0 %1968
        %v1970 = vmul.f32 %v1969, %v1963
        %v1971 = vadd.f32 %v1970, 1e-05
        %v1972 = vrsqrt.pop %v1971
        %v1973 = vmul.f32 %v1965, %v1972
        %v1974 = vld [vmem:[#allocation22] sm:$0x1]
        %v1976 = vlaneseq
        %v1977 = vshrl.u32 %v1976, 7
        %v1978 = vsub.s32 0, %v1977
        %v1979 = vrot.slane %v1974, %v1978
        %v1981 = vmul.f32 %v1973, %v1979
        %v1982 = vld [vmem:[#allocation23] sm:$0x1]
        %v1984 = vlaneseq
        %v1985 = vshrl.u32 %v1984, 7
        %v1986 = vsub.s32 0, %v1985
        %v1987 = vrot.slane %v1982, %v1986
        %v1989 = vadd.f32 %v1981, %v1987
        %v1990 = vld [vmem:[#allocation25] sm:$0xff]
        %v1991 = vld [vmem:[#allocation25 + $0x8] sm:$0xff]
        %v1992 = vld [vmem:[#allocation25 + $0x10] sm:$0xff]
        %v1993 = vld [vmem:[#allocation25 + $0x18] sm:$0xff]
        %v1994 = vld [vmem:[#allocation26] sm:$0x1]
        %v1996 = vlaneseq
        %v1997 = vshrl.u32 %v1996, 7
        %v1998 = vsub.s32 0, %v1997
        %v1999 = vrot.slane %v1994, %v1998
        %v2002 = vsel %vm876, %v1989, 0
        %2004 = vmatprep.subr.mxu0 0.0
        %2005 = vmatpush1.msra.mxu0 %v1990
        %2006 = vmatprep.subr.mxu0 0.0
        %2007 = vmatpush1.msra.mxu0 %v1991
        %2008 = vmatprep.subr.mxu0 0.0
        %2009 = vmatpush1.msra.mxu0 %v1992
        %2010 = vmatprep.subr.mxu0 0.0
        %2011 = vmatpush1.msra.mxu0 %v1993
        %2012 = vmatprep.subr.mxu0 0.0
        %2013 = vmatpush1.msra.mxu0 0.0
        %2014 = vmatprep.subr.mxu0 0.0
        %2015 = vmatpush1.msra.mxu0 0.0
        %2016 = vmatprep.subr.mxu0 0.0
        %2017 = vmatpush1.msra.mxu0 0.0
        %2018 = vmatprep.subr.mxu0 0.0
        %2019 = vmatpush1.msra.mxu0 0.0
        %2020 = vmatprep.subr.mxu0 0.0
        %2021 = vmatpush1.msra.mxu0 0.0
        %2022 = vmatprep.subr.mxu0 0.0
        %2023 = vmatpush1.msra.mxu0 0.0
        %2024 = vmatprep.subr.mxu0 0.0
        %2025 = vmatpush1.msra.mxu0 0.0
        %2026 = vmatprep.subr.mxu0 0.0
        %2027 = vmatpush1.msra.mxu0 0.0
        %2028 = vmatprep.subr.mxu0 0.0
        %2029 = vmatpush1.msra.mxu0 0.0
        %2030 = vmatprep.subr.mxu0 0.0
        %2031 = vmatpush1.msra.mxu0 0.0
        %2032 = vmatprep.subr.mxu0 0.0
        %2033 = vmatpush1.msra.mxu0 0.0
        %2034 = vmatprep.subr.mxu0 0.0
        %2035 = vmatpush1.msra.mxu0 0.0
        %2036 = vmatprep.subr.mxu0 0.0
        %2037 = vmatpush1.msra.mxu0 0.0
        %2038 = vmatprep.subr.mxu0 0.0
        %2039 = vmatpush1.msra.mxu0 0.0
        %2040 = vmatprep.subr.mxu0 0.0
        %2041 = vmatpush1.msra.mxu0 0.0
        %2042 = vmatprep.subr.mxu0 0.0
        %2043 = vmatpush1.msra.mxu0 0.0
        %2044 = vmatprep.subr.mxu0 0.0
        %2045 = vmatpush1.msra.mxu0 0.0
        %2046 = vmatprep.subr.mxu0 0.0
        %2047 = vmatpush1.msra.mxu0 0.0
        %2048 = vmatprep.subr.mxu0 0.0
        %2049 = vmatpush1.msra.mxu0 0.0
        %2050 = vmatprep.subr.mxu0 0.0
        %2051 = vmatpush1.msra.mxu0 0.0
        %2052 = vmatprep.subr.mxu0 0.0
        %2053 = vmatpush1.msra.mxu0 0.0
        %2054 = vmatprep.subr.mxu0 0.0
        %2055 = vmatpush1.msra.mxu0 0.0
        %2056 = vmatprep.subr.mxu0 0.0
        %2057 = vmatpush1.msra.mxu0 0.0
        %2058 = vmatprep.subr.mxu0 0.0
        %2059 = vmatpush1.msra.mxu0 0.0
        %2060 = vmatprep.subr.mxu0 0.0
        %2061 = vmatpush1.msra.mxu0 0.0
        %2062 = vmatprep.subr.mxu0 0.0
        %2063 = vmatpush1.msra.mxu0 0.0
        %2064 = vmatprep.subr.mxu0 0.0
        %2065 = vmatpush1.msra.mxu0 0.0
        %2066 = vmatprep.subr.mxu0 0.0
        %2067 = vmatpush1.msra.mxu0 0.0
        %2068 = vmatprep.mubr.f32.mxu0 0.0
        %2069 = vmatmul.mubr.f32.gmra.mrb[0].mxu0 %v2002
        %v2070 = vpop.f32.mrb[0].mxu0
        %v2071 = vadd.f32 %v1999, %v2070
        %v2072 = vpop.f32.mrb[0].mxu0
        %2073 = vdwg.mxu0
        %v2074 = vmax.f32 %v2071, 0.0
        %v2075 = vld [vmem:[%s17] sm:$0xff]
        %v2076 = vld [vmem:[%s17 + $0x8] sm:$0xff]
        %v2077 = vld [vmem:[%s17 + $0x10] sm:$0xff]
        %v2078 = vld [vmem:[%s17 + $0x18] sm:$0xff]
        %v2079 = vld [vmem:[%s18] sm:$0x1]
        %v2081 = vlaneseq
        %v2082 = vshrl.u32 %v2081, 7
        %v2083 = vsub.s32 0, %v2082
        %v2084 = vrot.slane %v2079, %v2083
        %v2087 = vsel %vm876, %v2074, 0
        %2089 = vmatprep.subr.mxu0 0.0
        %2090 = vmatpush1.msra.mxu0 %v2075
        %2091 = vmatprep.subr.mxu0 0.0
        %2092 = vmatpush1.msra.mxu0 %v2076
        %2093 = vmatprep.subr.mxu0 0.0
        %2094 = vmatpush1.msra.mxu0 %v2077
        %2095 = vmatprep.subr.mxu0 0.0
        %2096 = vmatpush1.msra.mxu0 %v2078
        %2097 = vmatprep.subr.mxu0 0.0
        %2098 = vmatpush1.msra.mxu0 0.0
        %2099 = vmatprep.subr.mxu0 0.0
        %2100 = vmatpush1.msra.mxu0 0.0
        %2101 = vmatprep.subr.mxu0 0.0
        %2102 = vmatpush1.msra.mxu0 0.0
        %2103 = vmatprep.subr.mxu0 0.0
        %2104 = vmatpush1.msra.mxu0 0.0
        %2105 = vmatprep.subr.mxu0 0.0
        %2106 = vmatpush1.msra.mxu0 0.0
        %2107 = vmatprep.subr.mxu0 0.0
        %2108 = vmatpush1.msra.mxu0 0.0
        %2109 = vmatprep.subr.mxu0 0.0
        %2110 = vmatpush1.msra.mxu0 0.0
        %2111 = vmatprep.subr.mxu0 0.0
        %2112 = vmatpush1.msra.mxu0 0.0
        %2113 = vmatprep.subr.mxu0 0.0
        %2114 = vmatpush1.msra.mxu0 0.0
        %2115 = vmatprep.subr.mxu0 0.0
        %2116 = vmatpush1.msra.mxu0 0.0
        %2117 = vmatprep.subr.mxu0 0.0
        %2118 = vmatpush1.msra.mxu0 0.0
        %2119 = vmatprep.subr.mxu0 0.0
        %2120 = vmatpush1.msra.mxu0 0.0
        %2121 = vmatprep.subr.mxu0 0.0
        %2122 = vmatpush1.msra.mxu0 0.0
        %2123 = vmatprep.subr.mxu0 0.0
        %2124 = vmatpush1.msra.mxu0 0.0
        %2125 = vmatprep.subr.mxu0 0.0
        %2126 = vmatpush1.msra.mxu0 0.0
        %2127 = vmatprep.subr.mxu0 0.0
        %2128 = vmatpush1.msra.mxu0 0.0
        %2129 = vmatprep.subr.mxu0 0.0
        %2130 = vmatpush1.msra.mxu0 0.0
        %2131 = vmatprep.subr.mxu0 0.0
        %2132 = vmatpush1.msra.mxu0 0.0
        %2133 = vmatprep.subr.mxu0 0.0
        %2134 = vmatpush1.msra.mxu0 0.0
        %2135 = vmatprep.subr.mxu0 0.0
        %2136 = vmatpush1.msra.mxu0 0.0
        %2137 = vmatprep.subr.mxu0 0.0
        %2138 = vmatpush1.msra.mxu0 0.0
        %2139 = vmatprep.subr.mxu0 0.0
        %2140 = vmatpush1.msra.mxu0 0.0
        %2141 = vmatprep.subr.mxu0 0.0
        %2142 = vmatpush1.msra.mxu0 0.0
        %2143 = vmatprep.subr.mxu0 0.0
        %2144 = vmatpush1.msra.mxu0 0.0
        %2145 = vmatprep.subr.mxu0 0.0
        %2146 = vmatpush1.msra.mxu0 0.0
        %2147 = vmatprep.subr.mxu0 0.0
        %2148 = vmatpush1.msra.mxu0 0.0
        %2149 = vmatprep.subr.mxu0 0.0
        %2150 = vmatpush1.msra.mxu0 0.0
        %2151 = vmatprep.subr.mxu0 0.0
        %2152 = vmatpush1.msra.mxu0 0.0
        %2153 = vmatprep.mubr.f32.mxu0 0.0
        %2154 = vmatmul.mubr.f32.gmra.mrb[0].mxu0 %v2087
        %v2155 = vpop.f32.mrb[0].mxu0
        %v2156 = vadd.f32 %v2084, %v2155
        %v2157 = vpop.f32.mrb[0].mxu0
        %2158 = vdwg.mxu0
        %2159 = vst [vmem:[%s861] sm:$0xff] %v2156
        %s2160 = sand.u32 %s468, 1
        %s2161 = scalar_lea.sflag [#allocation4], %s2160
        %s2162 = sand.u32 %s468, 1
        %s2163 = smul.addr %s2162, 8
        %s2164 = scalar_lea.vmem [#allocation28], %s2163
        // Predicated region
        $region161: #{tpu_custom_call.1} parent=95 // pred_check
          %p2165 = pneg %p478
        $region162: #{tpu_custom_call.1} parent=95 // pred_check_branch
          %2167 = sbr.rel (%p2165) target = $region164
        $region163: #{tpu_custom_call.1} parent=95 // pred_region
          %s2169 = ssub.s32 128, 128
          %2170 = vsyncadd %s2161, %s2169
          %s2171 = smul.addr %s46, 128
          %s2172 = scalar_lea.hbm %s19, %s2171
          %s2174 = sshll.u32 %s2164, 4
          %s2175 = int_to_ptr.vmem [resolvable:$true] %s2174
          %2177 = dma.vmem_to_hbm [thread:$0]  %s2175, 128, %s2172, %s2161
        $region164: #{tpu_custom_call.1} parent=95 // pred_fallthru
          _
      $region96: #{tpu_custom_call.1} parent=5 // pred_fallthru
        _
      %p2178 = scmp.le.s32.totalorder 2, %s41
      // Predicated region
      $region165: #{tpu_custom_call.1} parent=5 // pred_check
        %p2179 = pneg %p2178
      $region166: #{tpu_custom_call.1} parent=5 // pred_check_branch
        %2181 = sbr.rel (%p2179) target = $region168
      $region167: #{tpu_custom_call.1} parent=5 // pred_region
        %s2182 = ssub.s32 %s41, 2
        // Predicated region
        $region169: #{tpu_custom_call.1} parent=167 // pred_check
          %p2183 = pneg %p484
        $region170: #{tpu_custom_call.1} parent=167 // pred_check_branch
          %2185 = sbr.rel (%p2183) target = $region172
        $region171: #{tpu_custom_call.1} parent=167 // pred_region
          %s2186 = sand.u32 %s469, 1
          %s2187 = scalar_lea.sflag [#allocation4], %s2186
          %s2188 = sand.u32 %s469, 1
          %s2189 = smul.addr %s2188, 8
          %s2190 = scalar_lea.vmem [#allocation28], %s2189
          %2191 = dma.done %s2187, 128
        $region172: #{tpu_custom_call.1} parent=167 // pred_fallthru
          _
      $region168: #{tpu_custom_call.1} parent=5 // pred_fallthru
        _
    $region6: #{tpu_custom_call.1} parent=1 // loop_footer
      %s45 = sadd.s32 1, %s41
    $region7: #{tpu_custom_call.1} parent=1 // loop_footer_branch
      %40 = sbr.rel target = $region3
    $region8: #{tpu_custom_call.1} parent=1 // loop_exit
      _
    %2192 = vsyncpa [#allocation3], 1
    %s2193 = scalar_lea.sflag [#allocation3], 1
    %2194 = vsyncpa %s2193, 1
    %2195 = vsyncpa [#allocation6], 1
    %s2196 = scalar_lea.sflag [#allocation6], 1
    %2197 = vsyncpa %s2196, 1
    %2198 = vsyncpa [#allocation9], 1
    %2199 = vsyncpa [#allocation12], 1
    %2200 = vsyncpa [#allocation15], 1
    %2201 = vsyncpa [#allocation18], 1
    %2202 = vsyncpa [#allocation21], 1
    %2203 = vsyncpa [#allocation24], 1
    %2204 = vsyncpa [#allocation27], 1
    %2205 = vsyncpa [#allocation4], 1
    %s2206 = scalar_lea.sflag [#allocation4], 1
    %2207 = vsyncpa %s2206, 1

</llo_original>
